<compile_context>
chip_gen: v7x
topology: tpu7x:2x2x1
jax: 0.10.0
libtpu: 0.0.40
codegen_flags: <defaults>
</compile_context>

<pallas_src>
import math

import jax
import jax.numpy as jnp
import numpy as np
from jax import lax
from jax.experimental import pallas as pl
from jax.experimental.pallas import tpu as pltpu


def char_model_kernel(x_ref, h0_ref, c0_ref,
                      w_ih0_ref, w_ihr_ref, w_hh_ref, bias_ref,
                      w_lin_ref, b_lin_ref,
                      out_ref, hn_ref, cn_ref,
                      seq_a, seq_b, gx_ref):
    T, B, _ = x_ref.shape
    L, _, H = hn_ref.shape
    G = 4 * H

    def cell(gates, c_prev):
        # PyTorch gate order: i, f, g, o. Full-width EUP passes, then lane slices.
        sig = jax.nn.sigmoid(gates)                      # (B, 4H)
        th = jnp.tanh(gates)                             # (B, 4H)
        i = sig[:, 0:H]
        f = sig[:, H:2 * H]
        g = th[:, 2 * H:3 * H]
        o = sig[:, 3 * H:4 * H]
        c_new = f * c_prev + i * g
        h_new = o * jnp.tanh(c_new)
        return h_new, c_new

    bufs = [seq_a, seq_b]

    # ---- layer 0 (input_size = 1): x @ W_ih^T degenerates to a broadcast mul.
    # Hoist the whole input contribution (incl. bias) out of the recurrence.
    gx_ref[...] = (x_ref[...] * w_ih0_ref[...].reshape(1, 1, G)
                   + bias_ref[pl.ds(0, 1), :].reshape(1, 1, G))   # (T, B, 4H)

    w_hh0_t = w_hh_ref[0]                                 # (H, 4H), pre-transposed

    def step0(t, carry):
        h_prev, c_prev = carry
        gates = gx_ref[t] + jnp.dot(h_prev, w_hh0_t,
                                    preferred_element_type=jnp.float32)
        h_new, c_new = cell(gates, c_prev)
        bufs[0][t] = h_new
        return (h_new, c_new)

    h_fin, c_fin = lax.fori_loop(0, T, step0, (h0_ref[0], c0_ref[0]), unroll=True)
    hn_ref[0] = h_fin
    cn_ref[0] = c_fin

    # ---- layers 1 .. L-1 (input_size = H) ----
    for l in range(1, L):
        in_buf = bufs[(l - 1) % 2]
        out_buf = bufs[l % 2]
        w_ih_t = w_ihr_ref[l - 1]                         # (H, 4H), pre-transposed
        w_hh_t = w_hh_ref[l]                              # (H, 4H), pre-transposed

        # One MXU call for the whole sequence's input contribution (+ bias).
        gx = (jnp.dot(in_buf[...].reshape(T * B, H), w_ih_t,
                      preferred_element_type=jnp.float32)
              + bias_ref[pl.ds(l, 1), :])                 # (T*B, 4H)
        gx_ref[...] = gx.reshape(T, B, G)

        def step(t, carry, out_buf=out_buf, w_hh_t=w_hh_t):
            h_prev, c_prev = carry
            gates = gx_ref[t] + jnp.dot(h_prev, w_hh_t,
                                        preferred_element_type=jnp.float32)
            h_new, c_new = cell(gates, c_prev)
            out_buf[t] = h_new
            return (h_new, c_new)

        h_fin, c_fin = lax.fori_loop(0, T, step, (h0_ref[l], c0_ref[l]),
                                     unroll=True)
        hn_ref[l] = h_fin
        cn_ref[l] = c_fin

    # Dropout is identity in eval mode.
    # TODO(synk): training-mode dropout (p=0.2, stochastic mask) not implemented.

    # ---- final Linear over all time steps (lane-dense padded output width) ----
    seq = bufs[(L - 1) % 2][...]                          # (T, B, H)
    logits = (jnp.dot(seq.reshape(T * B, H), w_lin_ref[...],
                      preferred_element_type=jnp.float32)
              + b_lin_ref[...])                           # (T*B, Vp)
    out_ref[...] = logits.reshape(out_ref.shape)


def char_model_forward(x, h0, c0, params):
    """x: (B, T, 1) batch_first; h0/c0: (L, B, H). Returns (out (B,T,V), (hn, cn))."""
    B, T, _ = x.shape
    L, _, H = h0.shape
    V = params["w_lin"].shape[0]
    Vp = ((V + 127) // 128) * 128                         # lane-dense output width

    x_tm = jnp.transpose(x, (1, 0, 2))                    # (T, B, 1) time-major

    # Host/XLA-side weight prep: pre-transpose, pre-add biases, pad Linear width.
    w_ih0 = params["w_ih0"].reshape(1, 4 * H)             # (1, 4H)
    if L > 1:
        w_ihr_t = jnp.transpose(params["w_ihr"], (0, 2, 1))   # (L-1, H, 4H)
    else:
        w_ihr_t = jnp.zeros((1, H, 4 * H), jnp.float32)       # dummy, unused
    w_hh_t = jnp.transpose(params["w_hh"], (0, 2, 1))     # (L, H, 4H)
    bias = params["b_ih"] + params["b_hh"]                # (L, 4H)
    w_lin_t = jnp.zeros((H, Vp), jnp.float32).at[:, :V].set(params["w_lin"].T)
    b_lin = jnp.zeros((1, Vp), jnp.float32).at[:, :V].set(
        params["b_lin"].reshape(1, V))

    out_shapes = (
        jax.ShapeDtypeStruct((T, B, Vp), jnp.float32),
        jax.ShapeDtypeStruct((L, B, H), jnp.float32),
        jax.ShapeDtypeStruct((L, B, H), jnp.float32),
    )

    def full_spec(shape):
        nd = len(shape)
        return pl.BlockSpec(shape, lambda i, nd=nd: (0,) * nd)

    inputs = (x_tm, h0, c0, w_ih0, w_ihr_t, w_hh_t, bias, w_lin_t, b_lin)

    out_tm, hn, cn = pl.pallas_call(
        char_model_kernel,
        out_shape=out_shapes,
        grid=(1,),
        in_specs=[full_spec(a.shape) for a in inputs],
        out_specs=[full_spec(s.shape) for s in out_shapes],
        scratch_shapes=[pltpu.VMEM((T, B, H), jnp.float32),      # seq ping
                        pltpu.VMEM((T, B, H), jnp.float32),      # seq pong
                        pltpu.VMEM((T, B, 4 * H), jnp.float32)], # hoisted gx
        compiler_params=pltpu.CompilerParams(dimension_semantics=("arbitrary",)),
    )(*inputs)

    out = jnp.transpose(out_tm[:, :, :V], (1, 0, 2))      # (B, T, V)
    return out, (hn, cn)


def reference_forward(x, h0, c0, p):
    """Pure-JAX reference of the PyTorch forward (eval mode)."""
    B, T, _ = x.shape
    L, _, H = h0.shape
    h = [h0[l] for l in range(L)]
    c = [c0[l] for l in range(L)]
    seq = x
    for l in range(L):
        w_ih = p["w_ih0"] if l == 0 else p["w_ihr"][l - 1]
        w_hh = p["w_hh"][l]
        b = p["b_ih"][l] + p["b_hh"][l]
        outs = []
        for t in range(T):
            gates = seq[:, t, :] @ w_ih.T + h[l] @ w_hh.T + b
            i = jax.nn.sigmoid(gates[:, :H])
            f = jax.nn.sigmoid(gates[:, H:2 * H])
            g = jnp.tanh(gates[:, 2 * H:3 * H])
            o = jax.nn.sigmoid(gates[:, 3 * H:])
            c[l] = f * c[l] + i * g
            h[l] = o * jnp.tanh(c[l])
            outs.append(h[l])
        seq = jnp.stack(outs, axis=1)
    out = seq @ p["w_lin"].T + p["b_lin"][0]
    return out, (jnp.stack(h), jnp.stack(c))


if __name__ == "__main__":
    # Model hyper-params (n_vocab, hidden_size, n_layer) and small shapes.
    V, H, L = 64, 32, 2
    B, T = 2, 8

    key = jax.random.PRNGKey(0)
    keys = jax.random.split(key, 10)
    k = 1.0 / math.sqrt(H)
    u = lambda kk, shp: jax.random.uniform(kk, shp, jnp.float32, minval=-k, maxval=k)

    params = {
        "w_ih0": u(keys[0], (4 * H, 1)),         # layer-0 input weight (input_size=1)
        "w_ihr": u(keys[1], (L - 1, 4 * H, H)),  # input weights for layers 1..L-1
        "w_hh":  u(keys[2], (L, 4 * H, H)),
        "b_ih":  u(keys[3], (L, 4 * H)),
        "b_hh":  u(keys[4], (L, 4 * H)),
        "w_lin": u(keys[5], (V, H)),
        "b_lin": u(keys[6], (1, V)),
    }

    x = jax.random.normal(keys[7], (B, T, 1), jnp.float32)
    h0 = jax.random.normal(keys[8], (L, B, H), jnp.float32)
    c0 = jax.random.normal(keys[9], (L, B, H), jnp.float32)

    out, (hn, cn) = char_model_forward(x, h0, c0, params)
    jax.block_until_ready((out, hn, cn))

    ref_out, (ref_hn, ref_cn) = reference_forward(x, h0, c0, params)
    np.testing.assert_allclose(np.asarray(out), np.asarray(ref_out), rtol=1e-5, atol=1e-5)
    np.testing.assert_allclose(np.asarray(hn), np.asarray(ref_hn), rtol=1e-5, atol=1e-5)
    np.testing.assert_allclose(np.asarray(cn), np.asarray(ref_cn), rtol=1e-5, atol=1e-5)

    print("KERNEL_OK")
</pallas_src>

<mosaic_0001>
module attributes {stable_mosaic.version = 11 : i64} {
  func.func @char_model_kernel(%arg0: i32, %arg1: memref<8x2x1xf32, #tpu.memory_space<vmem>>, %arg2: memref<2x2x32xf32, #tpu.memory_space<vmem>>, %arg3: memref<2x2x32xf32, #tpu.memory_space<vmem>>, %arg4: memref<1x128xf32, #tpu.memory_space<vmem>>, %arg5: memref<1x32x128xf32, #tpu.memory_space<vmem>>, %arg6: memref<2x32x128xf32, #tpu.memory_space<vmem>>, %arg7: memref<2x128xf32, #tpu.memory_space<vmem>>, %arg8: memref<32x128xf32, #tpu.memory_space<vmem>>, %arg9: memref<1x128xf32, #tpu.memory_space<vmem>>, %arg10: memref<8x2x128xf32, #tpu.memory_space<vmem>>, %arg11: memref<2x2x32xf32, #tpu.memory_space<vmem>>, %arg12: memref<2x2x32xf32, #tpu.memory_space<vmem>>, %arg13: memref<8x2x32xf32, #tpu.memory_space<vmem>>, %arg14: memref<8x2x32xf32, #tpu.memory_space<vmem>>, %arg15: memref<8x2x128xf32, #tpu.memory_space<vmem>>) attributes {dimension_semantics = [#tpu.dimension_semantics<arbitrary>], iteration_bounds = array<i64: 1>, scalar_prefetch = 0 : i64, scratch_operands = 3 : i64, tpu.core_type = #tpu.core_type<tc>, window_params = [{pipeline_mode = #tpu.pipeline_mode<synchronous>, transform_indices = @transform_0, window_bounds = array<i64: 8, 2, 1>}, {pipeline_mode = #tpu.pipeline_mode<synchronous>, transform_indices = @transform_1, window_bounds = array<i64: 2, 2, 32>}, {pipeline_mode = #tpu.pipeline_mode<synchronous>, transform_indices = @transform_2, window_bounds = array<i64: 2, 2, 32>}, {pipeline_mode = #tpu.pipeline_mode<synchronous>, transform_indices = @transform_3, window_bounds = array<i64: 1, 128>}, {pipeline_mode = #tpu.pipeline_mode<synchronous>, transform_indices = @transform_4, window_bounds = array<i64: 1, 32, 128>}, {pipeline_mode = #tpu.pipeline_mode<synchronous>, transform_indices = @transform_5, window_bounds = array<i64: 2, 32, 128>}, {pipeline_mode = #tpu.pipeline_mode<synchronous>, transform_indices = @transform_6, window_bounds = array<i64: 2, 128>}, {pipeline_mode = #tpu.pipeline_mode<synchronous>, transform_indices = @transform_7, window_bounds = array<i64: 32, 128>}, {pipeline_mode = #tpu.pipeline_mode<synchronous>, transform_indices = @transform_8, window_bounds = array<i64: 1, 128>}, {pipeline_mode = #tpu.pipeline_mode<synchronous>, transform_indices = @transform_9, window_bounds = array<i64: 8, 2, 128>}, {pipeline_mode = #tpu.pipeline_mode<synchronous>, transform_indices = @transform_10, window_bounds = array<i64: 2, 2, 32>}, {pipeline_mode = #tpu.pipeline_mode<synchronous>, transform_indices = @transform_11, window_bounds = array<i64: 2, 2, 32>}]} {
    %c0 = arith.constant 0 : index
    %c0_0 = arith.constant 0 : index
    %c0_1 = arith.constant 0 : index
    %0 = vector.load %arg1[%c0, %c0_0, %c0_1] : memref<8x2x1xf32, #tpu.memory_space<vmem>>, vector<8x2x1xf32>
    %c0_2 = arith.constant 0 : index
    %c0_3 = arith.constant 0 : index
    %1 = vector.load %arg4[%c0_2, %c0_3] : memref<1x128xf32, #tpu.memory_space<vmem>>, vector<1x128xf32>
    %2 = vector.shape_cast %1 : vector<1x128xf32> to vector<1x1x128xf32>
    %3 = vector.broadcast %0 : vector<8x2x1xf32> to vector<8x2x128xf32>
    %4 = vector.broadcast %2 : vector<1x1x128xf32> to vector<8x2x128xf32>
    %5 = arith.mulf %3, %4 : vector<8x2x128xf32>
    %c0_4 = arith.constant 0 : index
    %c0_5 = arith.constant 0 : index
    %6 = vector.load %arg7[%c0_4, %c0_5] : memref<2x128xf32, #tpu.memory_space<vmem>>, vector<1x128xf32>
    %7 = vector.shape_cast %6 : vector<1x128xf32> to vector<1x1x128xf32>
    %8 = vector.broadcast %7 : vector<1x1x128xf32> to vector<8x2x128xf32>
    %9 = arith.addf %5, %8 : vector<8x2x128xf32>
    %c0_6 = arith.constant 0 : index
    %c0_7 = arith.constant 0 : index
    %c0_8 = arith.constant 0 : index
    %10 = vector.load %arg15[%c0_6, %c0_7, %c0_8] : memref<8x2x128xf32, #tpu.memory_space<vmem>>, vector<8x2x128xf32>
    tpu.vector_store %arg15[%c0_6, %c0_7, %c0_8], %9 {strides = array<i32>} : memref<8x2x128xf32, #tpu.memory_space<vmem>>, vector<8x2x128xf32>,
    %c0_9 = arith.constant 0 : index
    %c0_10 = arith.constant 0 : index
    %c0_11 = arith.constant 0 : index
    %11 = vector.load %arg6[%c0_9, %c0_10, %c0_11] : memref<2x32x128xf32, #tpu.memory_space<vmem>>, vector<1x32x128xf32>
    %12 = vector.shape_cast %11 : vector<1x32x128xf32> to vector<32x128xf32>
    %c0_12 = arith.constant 0 : index
    %c0_13 = arith.constant 0 : index
    %c0_14 = arith.constant 0 : index
    %13 = vector.load %arg2[%c0_12, %c0_13, %c0_14] : memref<2x2x32xf32, #tpu.memory_space<vmem>>, vector<1x2x32xf32>
    %14 = vector.shape_cast %13 : vector<1x2x32xf32> to vector<2x32xf32>
    %c0_15 = arith.constant 0 : index
    %c0_16 = arith.constant 0 : index
    %c0_17 = arith.constant 0 : index
    %15 = vector.load %arg3[%c0_15, %c0_16, %c0_17] : memref<2x2x32xf32, #tpu.memory_space<vmem>>, vector<1x2x32xf32>
    %16 = vector.shape_cast %15 : vector<1x2x32xf32> to vector<2x32xf32>
    %c0_i32 = arith.constant 0 : i32
    %17 = arith.index_cast %c0_i32 : i32 to index
    %c0_18 = arith.constant 0 : index
    %c0_19 = arith.constant 0 : index
    %18 = vector.load %arg15[%17, %c0_18, %c0_19] : memref<8x2x128xf32, #tpu.memory_space<vmem>>, vector<1x2x128xf32>
    %19 = vector.shape_cast %18 : vector<1x2x128xf32> to vector<2x128xf32>
    %cst = arith.constant dense<0.000000e+00> : vector<2x128xf32>
    %20 = tpu.matmul %14, %12, %cst {dimension_numbers = #tpu.dot_dimension_numbers<[1], [0], [0], [1], [0, 0, 1, 1], [], []>} : vector<2x32xf32>, vector<32x128xf32>, vector<2x128xf32> -> vector<2x128xf32>
    %21 = arith.addf %19, %20 : vector<2x128xf32>
    %22 = arith.negf %21 : vector<2x128xf32>
    %23 = math.exp %22 : vector<2x128xf32>
    %cst_20 = arith.constant 1.000000e+00 : f32
    %24 = vector.broadcast %cst_20 : f32 to vector<2x128xf32>
    %25 = arith.addf %24, %23 : vector<2x128xf32>
    %26 = arith.divf %24, %25 : vector<2x128xf32>
    %27 = math.tanh %21 : vector<2x128xf32>
    %28 = vector.extract_strided_slice %26 {offsets = [0, 0], sizes = [2, 32], strides = [1, 1]} : vector<2x128xf32> to vector<2x32xf32>
    %29 = vector.extract_strided_slice %26 {offsets = [0, 32], sizes = [2, 32], strides = [1, 1]} : vector<2x128xf32> to vector<2x32xf32>
    %30 = vector.extract_strided_slice %27 {offsets = [0, 64], sizes = [2, 32], strides = [1, 1]} : vector<2x128xf32> to vector<2x32xf32>
    %31 = vector.extract_strided_slice %26 {offsets = [0, 96], sizes = [2, 32], strides = [1, 1]} : vector<2x128xf32> to vector<2x32xf32>
    %32 = arith.mulf %29, %16 : vector<2x32xf32>
    %33 = arith.mulf %28, %30 : vector<2x32xf32>
    %34 = arith.addf %32, %33 : vector<2x32xf32>
    %35 = math.tanh %34 : vector<2x32xf32>
    %36 = arith.mulf %31, %35 : vector<2x32xf32>
    %37 = arith.index_cast %c0_i32 : i32 to index
    %c0_21 = arith.constant 0 : index
    %c0_22 = arith.constant 0 : index
    %38 = vector.load %arg13[%37, %c0_21, %c0_22] : memref<8x2x32xf32, #tpu.memory_space<vmem>>, vector<1x2x32xf32>
    %39 = vector.shape_cast %38 : vector<1x2x32xf32> to vector<2x32xf32>
    %40 = vector.shape_cast %36 : vector<2x32xf32> to vector<1x2x32xf32>
    tpu.vector_store %arg13[%37, %c0_21, %c0_22], %40 {strides = array<i32>} : memref<8x2x32xf32, #tpu.memory_space<vmem>>, vector<1x2x32xf32>,
    %c1_i32 = arith.constant 1 : i32
    %41 = arith.index_cast %c1_i32 : i32 to index
    %c0_23 = arith.constant 0 : index
    %c0_24 = arith.constant 0 : index
    %42 = vector.load %arg15[%41, %c0_23, %c0_24] : memref<8x2x128xf32, #tpu.memory_space<vmem>>, vector<1x2x128xf32>
    %43 = vector.shape_cast %42 : vector<1x2x128xf32> to vector<2x128xf32>
    %cst_25 = arith.constant dense<0.000000e+00> : vector<2x128xf32>
    %44 = tpu.matmul %36, %12, %cst_25 {dimension_numbers = #tpu.dot_dimension_numbers<[1], [0], [0], [1], [0, 0, 1, 1], [], []>} : vector<2x32xf32>, vector<32x128xf32>, vector<2x128xf32> -> vector<2x128xf32>
    %45 = arith.addf %43, %44 : vector<2x128xf32>
    %46 = arith.negf %45 : vector<2x128xf32>
    %47 = math.exp %46 : vector<2x128xf32>
    %cst_26 = arith.constant 1.000000e+00 : f32
    %48 = vector.broadcast %cst_26 : f32 to vector<2x128xf32>
    %49 = arith.addf %48, %47 : vector<2x128xf32>
    %50 = arith.divf %48, %49 : vector<2x128xf32>
    %51 = math.tanh %45 : vector<2x128xf32>
    %52 = vector.extract_strided_slice %50 {offsets = [0, 0], sizes = [2, 32], strides = [1, 1]} : vector<2x128xf32> to vector<2x32xf32>
    %53 = vector.extract_strided_slice %50 {offsets = [0, 32], sizes = [2, 32], strides = [1, 1]} : vector<2x128xf32> to vector<2x32xf32>
    %54 = vector.extract_strided_slice %51 {offsets = [0, 64], sizes = [2, 32], strides = [1, 1]} : vector<2x128xf32> to vector<2x32xf32>
    %55 = vector.extract_strided_slice %50 {offsets = [0, 96], sizes = [2, 32], strides = [1, 1]} : vector<2x128xf32> to vector<2x32xf32>
    %56 = arith.mulf %53, %34 : vector<2x32xf32>
    %57 = arith.mulf %52, %54 : vector<2x32xf32>
    %58 = arith.addf %56, %57 : vector<2x32xf32>
    %59 = math.tanh %58 : vector<2x32xf32>
    %60 = arith.mulf %55, %59 : vector<2x32xf32>
    %61 = arith.index_cast %c1_i32 : i32 to index
    %c0_27 = arith.constant 0 : index
    %c0_28 = arith.constant 0 : index
    %62 = vector.load %arg13[%61, %c0_27, %c0_28] : memref<8x2x32xf32, #tpu.memory_space<vmem>>, vector<1x2x32xf32>
    %63 = vector.shape_cast %62 : vector<1x2x32xf32> to vector<2x32xf32>
    %64 = vector.shape_cast %60 : vector<2x32xf32> to vector<1x2x32xf32>
    tpu.vector_store %arg13[%61, %c0_27, %c0_28], %64 {strides = array<i32>} : memref<8x2x32xf32, #tpu.memory_space<vmem>>, vector<1x2x32xf32>,
    %c2_i32 = arith.constant 2 : i32
    %65 = arith.index_cast %c2_i32 : i32 to index
    %c0_29 = arith.constant 0 : index
    %c0_30 = arith.constant 0 : index
    %66 = vector.load %arg15[%65, %c0_29, %c0_30] : memref<8x2x128xf32, #tpu.memory_space<vmem>>, vector<1x2x128xf32>
    %67 = vector.shape_cast %66 : vector<1x2x128xf32> to vector<2x128xf32>
    %cst_31 = arith.constant dense<0.000000e+00> : vector<2x128xf32>
    %68 = tpu.matmul %60, %12, %cst_31 {dimension_numbers = #tpu.dot_dimension_numbers<[1], [0], [0], [1], [0, 0, 1, 1], [], []>} : vector<2x32xf32>, vector<32x128xf32>, vector<2x128xf32> -> vector<2x128xf32>
    %69 = arith.addf %67, %68 : vector<2x128xf32>
    %70 = arith.negf %69 : vector<2x128xf32>
    %71 = math.exp %70 : vector<2x128xf32>
    %cst_32 = arith.constant 1.000000e+00 : f32
    %72 = vector.broadcast %cst_32 : f32 to vector<2x128xf32>
    %73 = arith.addf %72, %71 : vector<2x128xf32>
    %74 = arith.divf %72, %73 : vector<2x128xf32>
    %75 = math.tanh %69 : vector<2x128xf32>
    %76 = vector.extract_strided_slice %74 {offsets = [0, 0], sizes = [2, 32], strides = [1, 1]} : vector<2x128xf32> to vector<2x32xf32>
    %77 = vector.extract_strided_slice %74 {offsets = [0, 32], sizes = [2, 32], strides = [1, 1]} : vector<2x128xf32> to vector<2x32xf32>
    %78 = vector.extract_strided_slice %75 {offsets = [0, 64], sizes = [2, 32], strides = [1, 1]} : vector<2x128xf32> to vector<2x32xf32>
    %79 = vector.extract_strided_slice %74 {offsets = [0, 96], sizes = [2, 32], strides = [1, 1]} : vector<2x128xf32> to vector<2x32xf32>
    %80 = arith.mulf %77, %58 : vector<2x32xf32>
    %81 = arith.mulf %76, %78 : vector<2x32xf32>
    %82 = arith.addf %80, %81 : vector<2x32xf32>
    %83 = math.tanh %82 : vector<2x32xf32>
    %84 = arith.mulf %79, %83 : vector<2x32xf32>
    %85 = arith.index_cast %c2_i32 : i32 to index
    %c0_33 = arith.constant 0 : index
    %c0_34 = arith.constant 0 : index
    %86 = vector.load %arg13[%85, %c0_33, %c0_34] : memref<8x2x32xf32, #tpu.memory_space<vmem>>, vector<1x2x32xf32>
    %87 = vector.shape_cast %86 : vector<1x2x32xf32> to vector<2x32xf32>
    %88 = vector.shape_cast %84 : vector<2x32xf32> to vector<1x2x32xf32>
    tpu.vector_store %arg13[%85, %c0_33, %c0_34], %88 {strides = array<i32>} : memref<8x2x32xf32, #tpu.memory_space<vmem>>, vector<1x2x32xf32>,
    %c3_i32 = arith.constant 3 : i32
    %89 = arith.index_cast %c3_i32 : i32 to index
    %c0_35 = arith.constant 0 : index
    %c0_36 = arith.constant 0 : index
    %90 = vector.load %arg15[%89, %c0_35, %c0_36] : memref<8x2x128xf32, #tpu.memory_space<vmem>>, vector<1x2x128xf32>
    %91 = vector.shape_cast %90 : vector<1x2x128xf32> to vector<2x128xf32>
    %cst_37 = arith.constant dense<0.000000e+00> : vector<2x128xf32>
    %92 = tpu.matmul %84, %12, %cst_37 {dimension_numbers = #tpu.dot_dimension_numbers<[1], [0], [0], [1], [0, 0, 1, 1], [], []>} : vector<2x32xf32>, vector<32x128xf32>, vector<2x128xf32> -> vector<2x128xf32>
    %93 = arith.addf %91, %92 : vector<2x128xf32>
    %94 = arith.negf %93 : vector<2x128xf32>
    %95 = math.exp %94 : vector<2x128xf32>
    %cst_38 = arith.constant 1.000000e+00 : f32
    %96 = vector.broadcast %cst_38 : f32 to vector<2x128xf32>
    %97 = arith.addf %96, %95 : vector<2x128xf32>
    %98 = arith.divf %96, %97 : vector<2x128xf32>
    %99 = math.tanh %93 : vector<2x128xf32>
    %100 = vector.extract_strided_slice %98 {offsets = [0, 0], sizes = [2, 32], strides = [1, 1]} : vector<2x128xf32> to vector<2x32xf32>
    %101 = vector.extract_strided_slice %98 {offsets = [0, 32], sizes = [2, 32], strides = [1, 1]} : vector<2x128xf32> to vector<2x32xf32>
    %102 = vector.extract_strided_slice %99 {offsets = [0, 64], sizes = [2, 32], strides = [1, 1]} : vector<2x128xf32> to vector<2x32xf32>
    %103 = vector.extract_strided_slice %98 {offsets = [0, 96], sizes = [2, 32], strides = [1, 1]} : vector<2x128xf32> to vector<2x32xf32>
    %104 = arith.mulf %101, %82 : vector<2x32xf32>
    %105 = arith.mulf %100, %102 : vector<2x32xf32>
    %106 = arith.addf %104, %105 : vector<2x32xf32>
    %107 = math.tanh %106 : vector<2x32xf32>
    %108 = arith.mulf %103, %107 : vector<2x32xf32>
    %109 = arith.index_cast %c3_i32 : i32 to index
    %c0_39 = arith.constant 0 : index
    %c0_40 = arith.constant 0 : index
    %110 = vector.load %arg13[%109, %c0_39, %c0_40] : memref<8x2x32xf32, #tpu.memory_space<vmem>>, vector<1x2x32xf32>
    %111 = vector.shape_cast %110 : vector<1x2x32xf32> to vector<2x32xf32>
    %112 = vector.shape_cast %108 : vector<2x32xf32> to vector<1x2x32xf32>
    tpu.vector_store %arg13[%109, %c0_39, %c0_40], %112 {strides = array<i32>} : memref<8x2x32xf32, #tpu.memory_space<vmem>>, vector<1x2x32xf32>,
    %c4_i32 = arith.constant 4 : i32
    %113 = arith.index_cast %c4_i32 : i32 to index
    %c0_41 = arith.constant 0 : index
    %c0_42 = arith.constant 0 : index
    %114 = vector.load %arg15[%113, %c0_41, %c0_42] : memref<8x2x128xf32, #tpu.memory_space<vmem>>, vector<1x2x128xf32>
    %115 = vector.shape_cast %114 : vector<1x2x128xf32> to vector<2x128xf32>
    %cst_43 = arith.constant dense<0.000000e+00> : vector<2x128xf32>
    %116 = tpu.matmul %108, %12, %cst_43 {dimension_numbers = #tpu.dot_dimension_numbers<[1], [0], [0], [1], [0, 0, 1, 1], [], []>} : vector<2x32xf32>, vector<32x128xf32>, vector<2x128xf32> -> vector<2x128xf32>
    %117 = arith.addf %115, %116 : vector<2x128xf32>
    %118 = arith.negf %117 : vector<2x128xf32>
    %119 = math.exp %118 : vector<2x128xf32>
    %cst_44 = arith.constant 1.000000e+00 : f32
    %120 = vector.broadcast %cst_44 : f32 to vector<2x128xf32>
    %121 = arith.addf %120, %119 : vector<2x128xf32>
    %122 = arith.divf %120, %121 : vector<2x128xf32>
    %123 = math.tanh %117 : vector<2x128xf32>
    %124 = vector.extract_strided_slice %122 {offsets = [0, 0], sizes = [2, 32], strides = [1, 1]} : vector<2x128xf32> to vector<2x32xf32>
    %125 = vector.extract_strided_slice %122 {offsets = [0, 32], sizes = [2, 32], strides = [1, 1]} : vector<2x128xf32> to vector<2x32xf32>
    %126 = vector.extract_strided_slice %123 {offsets = [0, 64], sizes = [2, 32], strides = [1, 1]} : vector<2x128xf32> to vector<2x32xf32>
    %127 = vector.extract_strided_slice %122 {offsets = [0, 96], sizes = [2, 32], strides = [1, 1]} : vector<2x128xf32> to vector<2x32xf32>
    %128 = arith.mulf %125, %106 : vector<2x32xf32>
    %129 = arith.mulf %124, %126 : vector<2x32xf32>
    %130 = arith.addf %128, %129 : vector<2x32xf32>
    %131 = math.tanh %130 : vector<2x32xf32>
    %132 = arith.mulf %127, %131 : vector<2x32xf32>
    %133 = arith.index_cast %c4_i32 : i32 to index
    %c0_45 = arith.constant 0 : index
    %c0_46 = arith.constant 0 : index
    %134 = vector.load %arg13[%133, %c0_45, %c0_46] : memref<8x2x32xf32, #tpu.memory_space<vmem>>, vector<1x2x32xf32>
    %135 = vector.shape_cast %134 : vector<1x2x32xf32> to vector<2x32xf32>
    %136 = vector.shape_cast %132 : vector<2x32xf32> to vector<1x2x32xf32>
    tpu.vector_store %arg13[%133, %c0_45, %c0_46], %136 {strides = array<i32>} : memref<8x2x32xf32, #tpu.memory_space<vmem>>, vector<1x2x32xf32>,
    %c5_i32 = arith.constant 5 : i32
    %137 = arith.index_cast %c5_i32 : i32 to index
    %c0_47 = arith.constant 0 : index
    %c0_48 = arith.constant 0 : index
    %138 = vector.load %arg15[%137, %c0_47, %c0_48] : memref<8x2x128xf32, #tpu.memory_space<vmem>>, vector<1x2x128xf32>
    %139 = vector.shape_cast %138 : vector<1x2x128xf32> to vector<2x128xf32>
    %cst_49 = arith.constant dense<0.000000e+00> : vector<2x128xf32>
    %140 = tpu.matmul %132, %12, %cst_49 {dimension_numbers = #tpu.dot_dimension_numbers<[1], [0], [0], [1], [0, 0, 1, 1], [], []>} : vector<2x32xf32>, vector<32x128xf32>, vector<2x128xf32> -> vector<2x128xf32>
    %141 = arith.addf %139, %140 : vector<2x128xf32>
    %142 = arith.negf %141 : vector<2x128xf32>
    %143 = math.exp %142 : vector<2x128xf32>
    %cst_50 = arith.constant 1.000000e+00 : f32
    %144 = vector.broadcast %cst_50 : f32 to vector<2x128xf32>
    %145 = arith.addf %144, %143 : vector<2x128xf32>
    %146 = arith.divf %144, %145 : vector<2x128xf32>
    %147 = math.tanh %141 : vector<2x128xf32>
    %148 = vector.extract_strided_slice %146 {offsets = [0, 0], sizes = [2, 32], strides = [1, 1]} : vector<2x128xf32> to vector<2x32xf32>
    %149 = vector.extract_strided_slice %146 {offsets = [0, 32], sizes = [2, 32], strides = [1, 1]} : vector<2x128xf32> to vector<2x32xf32>
    %150 = vector.extract_strided_slice %147 {offsets = [0, 64], sizes = [2, 32], strides = [1, 1]} : vector<2x128xf32> to vector<2x32xf32>
    %151 = vector.extract_strided_slice %146 {offsets = [0, 96], sizes = [2, 32], strides = [1, 1]} : vector<2x128xf32> to vector<2x32xf32>
    %152 = arith.mulf %149, %130 : vector<2x32xf32>
    %153 = arith.mulf %148, %150 : vector<2x32xf32>
    %154 = arith.addf %152, %153 : vector<2x32xf32>
    %155 = math.tanh %154 : vector<2x32xf32>
    %156 = arith.mulf %151, %155 : vector<2x32xf32>
    %157 = arith.index_cast %c5_i32 : i32 to index
    %c0_51 = arith.constant 0 : index
    %c0_52 = arith.constant 0 : index
    %158 = vector.load %arg13[%157, %c0_51, %c0_52] : memref<8x2x32xf32, #tpu.memory_space<vmem>>, vector<1x2x32xf32>
    %159 = vector.shape_cast %158 : vector<1x2x32xf32> to vector<2x32xf32>
    %160 = vector.shape_cast %156 : vector<2x32xf32> to vector<1x2x32xf32>
    tpu.vector_store %arg13[%157, %c0_51, %c0_52], %160 {strides = array<i32>} : memref<8x2x32xf32, #tpu.memory_space<vmem>>, vector<1x2x32xf32>,
    %c6_i32 = arith.constant 6 : i32
    %161 = arith.index_cast %c6_i32 : i32 to index
    %c0_53 = arith.constant 0 : index
    %c0_54 = arith.constant 0 : index
    %162 = vector.load %arg15[%161, %c0_53, %c0_54] : memref<8x2x128xf32, #tpu.memory_space<vmem>>, vector<1x2x128xf32>
    %163 = vector.shape_cast %162 : vector<1x2x128xf32> to vector<2x128xf32>
    %cst_55 = arith.constant dense<0.000000e+00> : vector<2x128xf32>
    %164 = tpu.matmul %156, %12, %cst_55 {dimension_numbers = #tpu.dot_dimension_numbers<[1], [0], [0], [1], [0, 0, 1, 1], [], []>} : vector<2x32xf32>, vector<32x128xf32>, vector<2x128xf32> -> vector<2x128xf32>
    %165 = arith.addf %163, %164 : vector<2x128xf32>
    %166 = arith.negf %165 : vector<2x128xf32>
    %167 = math.exp %166 : vector<2x128xf32>
    %cst_56 = arith.constant 1.000000e+00 : f32
    %168 = vector.broadcast %cst_56 : f32 to vector<2x128xf32>
    %169 = arith.addf %168, %167 : vector<2x128xf32>
    %170 = arith.divf %168, %169 : vector<2x128xf32>
    %171 = math.tanh %165 : vector<2x128xf32>
    %172 = vector.extract_strided_slice %170 {offsets = [0, 0], sizes = [2, 32], strides = [1, 1]} : vector<2x128xf32> to vector<2x32xf32>
    %173 = vector.extract_strided_slice %170 {offsets = [0, 32], sizes = [2, 32], strides = [1, 1]} : vector<2x128xf32> to vector<2x32xf32>
    %174 = vector.extract_strided_slice %171 {offsets = [0, 64], sizes = [2, 32], strides = [1, 1]} : vector<2x128xf32> to vector<2x32xf32>
    %175 = vector.extract_strided_slice %170 {offsets = [0, 96], sizes = [2, 32], strides = [1, 1]} : vector<2x128xf32> to vector<2x32xf32>
    %176 = arith.mulf %173, %154 : vector<2x32xf32>
    %177 = arith.mulf %172, %174 : vector<2x32xf32>
    %178 = arith.addf %176, %177 : vector<2x32xf32>
    %179 = math.tanh %178 : vector<2x32xf32>
    %180 = arith.mulf %175, %179 : vector<2x32xf32>
    %181 = arith.index_cast %c6_i32 : i32 to index
    %c0_57 = arith.constant 0 : index
    %c0_58 = arith.constant 0 : index
    %182 = vector.load %arg13[%181, %c0_57, %c0_58] : memref<8x2x32xf32, #tpu.memory_space<vmem>>, vector<1x2x32xf32>
    %183 = vector.shape_cast %182 : vector<1x2x32xf32> to vector<2x32xf32>
    %184 = vector.shape_cast %180 : vector<2x32xf32> to vector<1x2x32xf32>
    tpu.vector_store %arg13[%181, %c0_57, %c0_58], %184 {strides = array<i32>} : memref<8x2x32xf32, #tpu.memory_space<vmem>>, vector<1x2x32xf32>,
    %c7_i32 = arith.constant 7 : i32
    %185 = arith.index_cast %c7_i32 : i32 to index
    %c0_59 = arith.constant 0 : index
    %c0_60 = arith.constant 0 : index
    %186 = vector.load %arg15[%185, %c0_59, %c0_60] : memref<8x2x128xf32, #tpu.memory_space<vmem>>, vector<1x2x128xf32>
    %187 = vector.shape_cast %186 : vector<1x2x128xf32> to vector<2x128xf32>
    %cst_61 = arith.constant dense<0.000000e+00> : vector<2x128xf32>
    %188 = tpu.matmul %180, %12, %cst_61 {dimension_numbers = #tpu.dot_dimension_numbers<[1], [0], [0], [1], [0, 0, 1, 1], [], []>} : vector<2x32xf32>, vector<32x128xf32>, vector<2x128xf32> -> vector<2x128xf32>
    %189 = arith.addf %187, %188 : vector<2x128xf32>
    %190 = arith.negf %189 : vector<2x128xf32>
    %191 = math.exp %190 : vector<2x128xf32>
    %cst_62 = arith.constant 1.000000e+00 : f32
    %192 = vector.broadcast %cst_62 : f32 to vector<2x128xf32>
    %193 = arith.addf %192, %191 : vector<2x128xf32>
    %194 = arith.divf %192, %193 : vector<2x128xf32>
    %195 = math.tanh %189 : vector<2x128xf32>
    %196 = vector.extract_strided_slice %194 {offsets = [0, 0], sizes = [2, 32], strides = [1, 1]} : vector<2x128xf32> to vector<2x32xf32>
    %197 = vector.extract_strided_slice %194 {offsets = [0, 32], sizes = [2, 32], strides = [1, 1]} : vector<2x128xf32> to vector<2x32xf32>
    %198 = vector.extract_strided_slice %195 {offsets = [0, 64], sizes = [2, 32], strides = [1, 1]} : vector<2x128xf32> to vector<2x32xf32>
    %199 = vector.extract_strided_slice %194 {offsets = [0, 96], sizes = [2, 32], strides = [1, 1]} : vector<2x128xf32> to vector<2x32xf32>
    %200 = arith.mulf %197, %178 : vector<2x32xf32>
    %201 = arith.mulf %196, %198 : vector<2x32xf32>
    %202 = arith.addf %200, %201 : vector<2x32xf32>
    %203 = math.tanh %202 : vector<2x32xf32>
    %204 = arith.mulf %199, %203 : vector<2x32xf32>
    %205 = arith.index_cast %c7_i32 : i32 to index
    %c0_63 = arith.constant 0 : index
    %c0_64 = arith.constant 0 : index
    %206 = vector.load %arg13[%205, %c0_63, %c0_64] : memref<8x2x32xf32, #tpu.memory_space<vmem>>, vector<1x2x32xf32>
    %207 = vector.shape_cast %206 : vector<1x2x32xf32> to vector<2x32xf32>
    %208 = vector.shape_cast %204 : vector<2x32xf32> to vector<1x2x32xf32>
    tpu.vector_store %arg13[%205, %c0_63, %c0_64], %208 {strides = array<i32>} : memref<8x2x32xf32, #tpu.memory_space<vmem>>, vector<1x2x32xf32>,
    %c8_i32 = arith.constant 8 : i32
    %c0_65 = arith.constant 0 : index
    %c0_66 = arith.constant 0 : index
    %c0_67 = arith.constant 0 : index
    %209 = vector.load %arg11[%c0_65, %c0_66, %c0_67] : memref<2x2x32xf32, #tpu.memory_space<vmem>>, vector<1x2x32xf32>
    %210 = vector.shape_cast %209 : vector<1x2x32xf32> to vector<2x32xf32>
    %211 = vector.shape_cast %204 : vector<2x32xf32> to vector<1x2x32xf32>
    tpu.vector_store %arg11[%c0_65, %c0_66, %c0_67], %211 {strides = array<i32>} : memref<2x2x32xf32, #tpu.memory_space<vmem>>, vector<1x2x32xf32>,
    %c0_68 = arith.constant 0 : index
    %c0_69 = arith.constant 0 : index
    %c0_70 = arith.constant 0 : index
    %212 = vector.load %arg12[%c0_68, %c0_69, %c0_70] : memref<2x2x32xf32, #tpu.memory_space<vmem>>, vector<1x2x32xf32>
    %213 = vector.shape_cast %212 : vector<1x2x32xf32> to vector<2x32xf32>
    %214 = vector.shape_cast %202 : vector<2x32xf32> to vector<1x2x32xf32>
    tpu.vector_store %arg12[%c0_68, %c0_69, %c0_70], %214 {strides = array<i32>} : memref<2x2x32xf32, #tpu.memory_space<vmem>>, vector<1x2x32xf32>,
    %c0_71 = arith.constant 0 : index
    %c0_72 = arith.constant 0 : index
    %c0_73 = arith.constant 0 : index
    %215 = vector.load %arg5[%c0_71, %c0_72, %c0_73] : memref<1x32x128xf32, #tpu.memory_space<vmem>>, vector<1x32x128xf32>
    %216 = vector.shape_cast %215 : vector<1x32x128xf32> to vector<32x128xf32>
    %c1 = arith.constant 1 : index
    %c0_74 = arith.constant 0 : index
    %c0_75 = arith.constant 0 : index
    %217 = vector.load %arg6[%c1, %c0_74, %c0_75] : memref<2x32x128xf32, #tpu.memory_space<vmem>>, vector<1x32x128xf32>
    %218 = vector.shape_cast %217 : vector<1x32x128xf32> to vector<32x128xf32>
    %c0_76 = arith.constant 0 : index
    %c0_77 = arith.constant 0 : index
    %c0_78 = arith.constant 0 : index
    %219 = vector.load %arg13[%c0_76, %c0_77, %c0_78] : memref<8x2x32xf32, #tpu.memory_space<vmem>>, vector<8x2x32xf32>
    %220 = vector.shape_cast %219 : vector<8x2x32xf32> to vector<16x32xf32>
    %cst_79 = arith.constant dense<0.000000e+00> : vector<16x128xf32>
    %221 = tpu.matmul %220, %216, %cst_79 {dimension_numbers = #tpu.dot_dimension_numbers<[1], [0], [0], [1], [0, 0, 1, 1], [], []>} : vector<16x32xf32>, vector<32x128xf32>, vector<16x128xf32> -> vector<16x128xf32>
    %c1_80 = arith.constant 1 : index
    %c0_81 = arith.constant 0 : index
    %222 = vector.load %arg7[%c1_80, %c0_81] : memref<2x128xf32, #tpu.memory_space<vmem>>, vector<1x128xf32>
    %223 = vector.broadcast %222 : vector<1x128xf32> to vector<16x128xf32>
    %224 = arith.addf %221, %223 : vector<16x128xf32>
    %225 = vector.shape_cast %224 : vector<16x128xf32> to vector<8x2x128xf32>
    %c0_82 = arith.constant 0 : index
    %c0_83 = arith.constant 0 : index
    %c0_84 = arith.constant 0 : index
    %226 = vector.load %arg15[%c0_82, %c0_83, %c0_84] : memref<8x2x128xf32, #tpu.memory_space<vmem>>, vector<8x2x128xf32>
    tpu.vector_store %arg15[%c0_82, %c0_83, %c0_84], %225 {strides = array<i32>} : memref<8x2x128xf32, #tpu.memory_space<vmem>>, vector<8x2x128xf32>,
    %c1_85 = arith.constant 1 : index
    %c0_86 = arith.constant 0 : index
    %c0_87 = arith.constant 0 : index
    %227 = vector.load %arg2[%c1_85, %c0_86, %c0_87] : memref<2x2x32xf32, #tpu.memory_space<vmem>>, vector<1x2x32xf32>
    %228 = vector.shape_cast %227 : vector<1x2x32xf32> to vector<2x32xf32>
    %c1_88 = arith.constant 1 : index
    %c0_89 = arith.constant 0 : index
    %c0_90 = arith.constant 0 : index
    %229 = vector.load %arg3[%c1_88, %c0_89, %c0_90] : memref<2x2x32xf32, #tpu.memory_space<vmem>>, vector<1x2x32xf32>
    %230 = vector.shape_cast %229 : vector<1x2x32xf32> to vector<2x32xf32>
    %c0_i32_91 = arith.constant 0 : i32
    %231 = arith.index_cast %c0_i32_91 : i32 to index
    %c0_92 = arith.constant 0 : index
    %c0_93 = arith.constant 0 : index
    %232 = vector.load %arg15[%231, %c0_92, %c0_93] : memref<8x2x128xf32, #tpu.memory_space<vmem>>, vector<1x2x128xf32>
    %233 = vector.shape_cast %232 : vector<1x2x128xf32> to vector<2x128xf32>
    %cst_94 = arith.constant dense<0.000000e+00> : vector<2x128xf32>
    %234 = tpu.matmul %228, %218, %cst_94 {dimension_numbers = #tpu.dot_dimension_numbers<[1], [0], [0], [1], [0, 0, 1, 1], [], []>} : vector<2x32xf32>, vector<32x128xf32>, vector<2x128xf32> -> vector<2x128xf32>
    %235 = arith.addf %233, %234 : vector<2x128xf32>
    %236 = arith.negf %235 : vector<2x128xf32>
    %237 = math.exp %236 : vector<2x128xf32>
    %cst_95 = arith.constant 1.000000e+00 : f32
    %238 = vector.broadcast %cst_95 : f32 to vector<2x128xf32>
    %239 = arith.addf %238, %237 : vector<2x128xf32>
    %240 = arith.divf %238, %239 : vector<2x128xf32>
    %241 = math.tanh %235 : vector<2x128xf32>
    %242 = vector.extract_strided_slice %240 {offsets = [0, 0], sizes = [2, 32], strides = [1, 1]} : vector<2x128xf32> to vector<2x32xf32>
    %243 = vector.extract_strided_slice %240 {offsets = [0, 32], sizes = [2, 32], strides = [1, 1]} : vector<2x128xf32> to vector<2x32xf32>
    %244 = vector.extract_strided_slice %241 {offsets = [0, 64], sizes = [2, 32], strides = [1, 1]} : vector<2x128xf32> to vector<2x32xf32>
    %245 = vector.extract_strided_slice %240 {offsets = [0, 96], sizes = [2, 32], strides = [1, 1]} : vector<2x128xf32> to vector<2x32xf32>
    %246 = arith.mulf %243, %230 : vector<2x32xf32>
    %247 = arith.mulf %242, %244 : vector<2x32xf32>
    %248 = arith.addf %246, %247 : vector<2x32xf32>
    %249 = math.tanh %248 : vector<2x32xf32>
    %250 = arith.mulf %245, %249 : vector<2x32xf32>
    %251 = arith.index_cast %c0_i32_91 : i32 to index
    %c0_96 = arith.constant 0 : index
    %c0_97 = arith.constant 0 : index
    %252 = vector.load %arg14[%251, %c0_96, %c0_97] : memref<8x2x32xf32, #tpu.memory_space<vmem>>, vector<1x2x32xf32>
    %253 = vector.shape_cast %252 : vector<1x2x32xf32> to vector<2x32xf32>
    %254 = vector.shape_cast %250 : vector<2x32xf32> to vector<1x2x32xf32>
    tpu.vector_store %arg14[%251, %c0_96, %c0_97], %254 {strides = array<i32>} : memref<8x2x32xf32, #tpu.memory_space<vmem>>, vector<1x2x32xf32>,
    %c1_i32_98 = arith.constant 1 : i32
    %255 = arith.index_cast %c1_i32_98 : i32 to index
    %c0_99 = arith.constant 0 : index
    %c0_100 = arith.constant 0 : index
    %256 = vector.load %arg15[%255, %c0_99, %c0_100] : memref<8x2x128xf32, #tpu.memory_space<vmem>>, vector<1x2x128xf32>
    %257 = vector.shape_cast %256 : vector<1x2x128xf32> to vector<2x128xf32>
    %cst_101 = arith.constant dense<0.000000e+00> : vector<2x128xf32>
    %258 = tpu.matmul %250, %218, %cst_101 {dimension_numbers = #tpu.dot_dimension_numbers<[1], [0], [0], [1], [0, 0, 1, 1], [], []>} : vector<2x32xf32>, vector<32x128xf32>, vector<2x128xf32> -> vector<2x128xf32>
    %259 = arith.addf %257, %258 : vector<2x128xf32>
    %260 = arith.negf %259 : vector<2x128xf32>
    %261 = math.exp %260 : vector<2x128xf32>
    %cst_102 = arith.constant 1.000000e+00 : f32
    %262 = vector.broadcast %cst_102 : f32 to vector<2x128xf32>
    %263 = arith.addf %262, %261 : vector<2x128xf32>
    %264 = arith.divf %262, %263 : vector<2x128xf32>
    %265 = math.tanh %259 : vector<2x128xf32>
    %266 = vector.extract_strided_slice %264 {offsets = [0, 0], sizes = [2, 32], strides = [1, 1]} : vector<2x128xf32> to vector<2x32xf32>
    %267 = vector.extract_strided_slice %264 {offsets = [0, 32], sizes = [2, 32], strides = [1, 1]} : vector<2x128xf32> to vector<2x32xf32>
    %268 = vector.extract_strided_slice %265 {offsets = [0, 64], sizes = [2, 32], strides = [1, 1]} : vector<2x128xf32> to vector<2x32xf32>
    %269 = vector.extract_strided_slice %264 {offsets = [0, 96], sizes = [2, 32], strides = [1, 1]} : vector<2x128xf32> to vector<2x32xf32>
    %270 = arith.mulf %267, %248 : vector<2x32xf32>
    %271 = arith.mulf %266, %268 : vector<2x32xf32>
    %272 = arith.addf %270, %271 : vector<2x32xf32>
    %273 = math.tanh %272 : vector<2x32xf32>
    %274 = arith.mulf %269, %273 : vector<2x32xf32>
    %275 = arith.index_cast %c1_i32_98 : i32 to index
    %c0_103 = arith.constant 0 : index
    %c0_104 = arith.constant 0 : index
    %276 = vector.load %arg14[%275, %c0_103, %c0_104] : memref<8x2x32xf32, #tpu.memory_space<vmem>>, vector<1x2x32xf32>
    %277 = vector.shape_cast %276 : vector<1x2x32xf32> to vector<2x32xf32>
    %278 = vector.shape_cast %274 : vector<2x32xf32> to vector<1x2x32xf32>
    tpu.vector_store %arg14[%275, %c0_103, %c0_104], %278 {strides = array<i32>} : memref<8x2x32xf32, #tpu.memory_space<vmem>>, vector<1x2x32xf32>,
    %c2_i32_105 = arith.constant 2 : i32
    %279 = arith.index_cast %c2_i32_105 : i32 to index
    %c0_106 = arith.constant 0 : index
    %c0_107 = arith.constant 0 : index
    %280 = vector.load %arg15[%279, %c0_106, %c0_107] : memref<8x2x128xf32, #tpu.memory_space<vmem>>, vector<1x2x128xf32>
    %281 = vector.shape_cast %280 : vector<1x2x128xf32> to vector<2x128xf32>
    %cst_108 = arith.constant dense<0.000000e+00> : vector<2x128xf32>
    %282 = tpu.matmul %274, %218, %cst_108 {dimension_numbers = #tpu.dot_dimension_numbers<[1], [0], [0], [1], [0, 0, 1, 1], [], []>} : vector<2x32xf32>, vector<32x128xf32>, vector<2x128xf32> -> vector<2x128xf32>
    %283 = arith.addf %281, %282 : vector<2x128xf32>
    %284 = arith.negf %283 : vector<2x128xf32>
    %285 = math.exp %284 : vector<2x128xf32>
    %cst_109 = arith.constant 1.000000e+00 : f32
    %286 = vector.broadcast %cst_109 : f32 to vector<2x128xf32>
    %287 = arith.addf %286, %285 : vector<2x128xf32>
    %288 = arith.divf %286, %287 : vector<2x128xf32>
    %289 = math.tanh %283 : vector<2x128xf32>
    %290 = vector.extract_strided_slice %288 {offsets = [0, 0], sizes = [2, 32], strides = [1, 1]} : vector<2x128xf32> to vector<2x32xf32>
    %291 = vector.extract_strided_slice %288 {offsets = [0, 32], sizes = [2, 32], strides = [1, 1]} : vector<2x128xf32> to vector<2x32xf32>
    %292 = vector.extract_strided_slice %289 {offsets = [0, 64], sizes = [2, 32], strides = [1, 1]} : vector<2x128xf32> to vector<2x32xf32>
    %293 = vector.extract_strided_slice %288 {offsets = [0, 96], sizes = [2, 32], strides = [1, 1]} : vector<2x128xf32> to vector<2x32xf32>
    %294 = arith.mulf %291, %272 : vector<2x32xf32>
    %295 = arith.mulf %290, %292 : vector<2x32xf32>
    %296 = arith.addf %294, %295 : vector<2x32xf32>
    %297 = math.tanh %296 : vector<2x32xf32>
    %298 = arith.mulf %293, %297 : vector<2x32xf32>
    %299 = arith.index_cast %c2_i32_105 : i32 to index
    %c0_110 = arith.constant 0 : index
    %c0_111 = arith.constant 0 : index
    %300 = vector.load %arg14[%299, %c0_110, %c0_111] : memref<8x2x32xf32, #tpu.memory_space<vmem>>, vector<1x2x32xf32>
    %301 = vector.shape_cast %300 : vector<1x2x32xf32> to vector<2x32xf32>
    %302 = vector.shape_cast %298 : vector<2x32xf32> to vector<1x2x32xf32>
    tpu.vector_store %arg14[%299, %c0_110, %c0_111], %302 {strides = array<i32>} : memref<8x2x32xf32, #tpu.memory_space<vmem>>, vector<1x2x32xf32>,
    %c3_i32_112 = arith.constant 3 : i32
    %303 = arith.index_cast %c3_i32_112 : i32 to index
    %c0_113 = arith.constant 0 : index
    %c0_114 = arith.constant 0 : index
    %304 = vector.load %arg15[%303, %c0_113, %c0_114] : memref<8x2x128xf32, #tpu.memory_space<vmem>>, vector<1x2x128xf32>
    %305 = vector.shape_cast %304 : vector<1x2x128xf32> to vector<2x128xf32>
    %cst_115 = arith.constant dense<0.000000e+00> : vector<2x128xf32>
    %306 = tpu.matmul %298, %218, %cst_115 {dimension_numbers = #tpu.dot_dimension_numbers<[1], [0], [0], [1], [0, 0, 1, 1], [], []>} : vector<2x32xf32>, vector<32x128xf32>, vector<2x128xf32> -> vector<2x128xf32>
    %307 = arith.addf %305, %306 : vector<2x128xf32>
    %308 = arith.negf %307 : vector<2x128xf32>
    %309 = math.exp %308 : vector<2x128xf32>
    %cst_116 = arith.constant 1.000000e+00 : f32
    %310 = vector.broadcast %cst_116 : f32 to vector<2x128xf32>
    %311 = arith.addf %310, %309 : vector<2x128xf32>
    %312 = arith.divf %310, %311 : vector<2x128xf32>
    %313 = math.tanh %307 : vector<2x128xf32>
    %314 = vector.extract_strided_slice %312 {offsets = [0, 0], sizes = [2, 32], strides = [1, 1]} : vector<2x128xf32> to vector<2x32xf32>
    %315 = vector.extract_strided_slice %312 {offsets = [0, 32], sizes = [2, 32], strides = [1, 1]} : vector<2x128xf32> to vector<2x32xf32>
    %316 = vector.extract_strided_slice %313 {offsets = [0, 64], sizes = [2, 32], strides = [1, 1]} : vector<2x128xf32> to vector<2x32xf32>
    %317 = vector.extract_strided_slice %312 {offsets = [0, 96], sizes = [2, 32], strides = [1, 1]} : vector<2x128xf32> to vector<2x32xf32>
    %318 = arith.mulf %315, %296 : vector<2x32xf32>
    %319 = arith.mulf %314, %316 : vector<2x32xf32>
    %320 = arith.addf %318, %319 : vector<2x32xf32>
    %321 = math.tanh %320 : vector<2x32xf32>
    %322 = arith.mulf %317, %321 : vector<2x32xf32>
    %323 = arith.index_cast %c3_i32_112 : i32 to index
    %c0_117 = arith.constant 0 : index
    %c0_118 = arith.constant 0 : index
    %324 = vector.load %arg14[%323, %c0_117, %c0_118] : memref<8x2x32xf32, #tpu.memory_space<vmem>>, vector<1x2x32xf32>
    %325 = vector.shape_cast %324 : vector<1x2x32xf32> to vector<2x32xf32>
    %326 = vector.shape_cast %322 : vector<2x32xf32> to vector<1x2x32xf32>
    tpu.vector_store %arg14[%323, %c0_117, %c0_118], %326 {strides = array<i32>} : memref<8x2x32xf32, #tpu.memory_space<vmem>>, vector<1x2x32xf32>,
    %c4_i32_119 = arith.constant 4 : i32
    %327 = arith.index_cast %c4_i32_119 : i32 to index
    %c0_120 = arith.constant 0 : index
    %c0_121 = arith.constant 0 : index
    %328 = vector.load %arg15[%327, %c0_120, %c0_121] : memref<8x2x128xf32, #tpu.memory_space<vmem>>, vector<1x2x128xf32>
    %329 = vector.shape_cast %328 : vector<1x2x128xf32> to vector<2x128xf32>
    %cst_122 = arith.constant dense<0.000000e+00> : vector<2x128xf32>
    %330 = tpu.matmul %322, %218, %cst_122 {dimension_numbers = #tpu.dot_dimension_numbers<[1], [0], [0], [1], [0, 0, 1, 1], [], []>} : vector<2x32xf32>, vector<32x128xf32>, vector<2x128xf32> -> vector<2x128xf32>
    %331 = arith.addf %329, %330 : vector<2x128xf32>
    %332 = arith.negf %331 : vector<2x128xf32>
    %333 = math.exp %332 : vector<2x128xf32>
    %cst_123 = arith.constant 1.000000e+00 : f32
    %334 = vector.broadcast %cst_123 : f32 to vector<2x128xf32>
    %335 = arith.addf %334, %333 : vector<2x128xf32>
    %336 = arith.divf %334, %335 : vector<2x128xf32>
    %337 = math.tanh %331 : vector<2x128xf32>
    %338 = vector.extract_strided_slice %336 {offsets = [0, 0], sizes = [2, 32], strides = [1, 1]} : vector<2x128xf32> to vector<2x32xf32>
    %339 = vector.extract_strided_slice %336 {offsets = [0, 32], sizes = [2, 32], strides = [1, 1]} : vector<2x128xf32> to vector<2x32xf32>
    %340 = vector.extract_strided_slice %337 {offsets = [0, 64], sizes = [2, 32], strides = [1, 1]} : vector<2x128xf32> to vector<2x32xf32>
    %341 = vector.extract_strided_slice %336 {offsets = [0, 96], sizes = [2, 32], strides = [1, 1]} : vector<2x128xf32> to vector<2x32xf32>
    %342 = arith.mulf %339, %320 : vector<2x32xf32>
    %343 = arith.mulf %338, %340 : vector<2x32xf32>
    %344 = arith.addf %342, %343 : vector<2x32xf32>
    %345 = math.tanh %344 : vector<2x32xf32>
    %346 = arith.mulf %341, %345 : vector<2x32xf32>
    %347 = arith.index_cast %c4_i32_119 : i32 to index
    %c0_124 = arith.constant 0 : index
    %c0_125 = arith.constant 0 : index
    %348 = vector.load %arg14[%347, %c0_124, %c0_125] : memref<8x2x32xf32, #tpu.memory_space<vmem>>, vector<1x2x32xf32>
    %349 = vector.shape_cast %348 : vector<1x2x32xf32> to vector<2x32xf32>
    %350 = vector.shape_cast %346 : vector<2x32xf32> to vector<1x2x32xf32>
    tpu.vector_store %arg14[%347, %c0_124, %c0_125], %350 {strides = array<i32>} : memref<8x2x32xf32, #tpu.memory_space<vmem>>, vector<1x2x32xf32>,
    %c5_i32_126 = arith.constant 5 : i32
    %351 = arith.index_cast %c5_i32_126 : i32 to index
    %c0_127 = arith.constant 0 : index
    %c0_128 = arith.constant 0 : index
    %352 = vector.load %arg15[%351, %c0_127, %c0_128] : memref<8x2x128xf32, #tpu.memory_space<vmem>>, vector<1x2x128xf32>
    %353 = vector.shape_cast %352 : vector<1x2x128xf32> to vector<2x128xf32>
    %cst_129 = arith.constant dense<0.000000e+00> : vector<2x128xf32>
    %354 = tpu.matmul %346, %218, %cst_129 {dimension_numbers = #tpu.dot_dimension_numbers<[1], [0], [0], [1], [0, 0, 1, 1], [], []>} : vector<2x32xf32>, vector<32x128xf32>, vector<2x128xf32> -> vector<2x128xf32>
    %355 = arith.addf %353, %354 : vector<2x128xf32>
    %356 = arith.negf %355 : vector<2x128xf32>
    %357 = math.exp %356 : vector<2x128xf32>
    %cst_130 = arith.constant 1.000000e+00 : f32
    %358 = vector.broadcast %cst_130 : f32 to vector<2x128xf32>
    %359 = arith.addf %358, %357 : vector<2x128xf32>
    %360 = arith.divf %358, %359 : vector<2x128xf32>
    %361 = math.tanh %355 : vector<2x128xf32>
    %362 = vector.extract_strided_slice %360 {offsets = [0, 0], sizes = [2, 32], strides = [1, 1]} : vector<2x128xf32> to vector<2x32xf32>
    %363 = vector.extract_strided_slice %360 {offsets = [0, 32], sizes = [2, 32], strides = [1, 1]} : vector<2x128xf32> to vector<2x32xf32>
    %364 = vector.extract_strided_slice %361 {offsets = [0, 64], sizes = [2, 32], strides = [1, 1]} : vector<2x128xf32> to vector<2x32xf32>
    %365 = vector.extract_strided_slice %360 {offsets = [0, 96], sizes = [2, 32], strides = [1, 1]} : vector<2x128xf32> to vector<2x32xf32>
    %366 = arith.mulf %363, %344 : vector<2x32xf32>
    %367 = arith.mulf %362, %364 : vector<2x32xf32>
    %368 = arith.addf %366, %367 : vector<2x32xf32>
    %369 = math.tanh %368 : vector<2x32xf32>
    %370 = arith.mulf %365, %369 : vector<2x32xf32>
    %371 = arith.index_cast %c5_i32_126 : i32 to index
    %c0_131 = arith.constant 0 : index
    %c0_132 = arith.constant 0 : index
    %372 = vector.load %arg14[%371, %c0_131, %c0_132] : memref<8x2x32xf32, #tpu.memory_space<vmem>>, vector<1x2x32xf32>
    %373 = vector.shape_cast %372 : vector<1x2x32xf32> to vector<2x32xf32>
    %374 = vector.shape_cast %370 : vector<2x32xf32> to vector<1x2x32xf32>
    tpu.vector_store %arg14[%371, %c0_131, %c0_132], %374 {strides = array<i32>} : memref<8x2x32xf32, #tpu.memory_space<vmem>>, vector<1x2x32xf32>,
    %c6_i32_133 = arith.constant 6 : i32
    %375 = arith.index_cast %c6_i32_133 : i32 to index
    %c0_134 = arith.constant 0 : index
    %c0_135 = arith.constant 0 : index
    %376 = vector.load %arg15[%375, %c0_134, %c0_135] : memref<8x2x128xf32, #tpu.memory_space<vmem>>, vector<1x2x128xf32>
    %377 = vector.shape_cast %376 : vector<1x2x128xf32> to vector<2x128xf32>
    %cst_136 = arith.constant dense<0.000000e+00> : vector<2x128xf32>
    %378 = tpu.matmul %370, %218, %cst_136 {dimension_numbers = #tpu.dot_dimension_numbers<[1], [0], [0], [1], [0, 0, 1, 1], [], []>} : vector<2x32xf32>, vector<32x128xf32>, vector<2x128xf32> -> vector<2x128xf32>
    %379 = arith.addf %377, %378 : vector<2x128xf32>
    %380 = arith.negf %379 : vector<2x128xf32>
    %381 = math.exp %380 : vector<2x128xf32>
    %cst_137 = arith.constant 1.000000e+00 : f32
    %382 = vector.broadcast %cst_137 : f32 to vector<2x128xf32>
    %383 = arith.addf %382, %381 : vector<2x128xf32>
    %384 = arith.divf %382, %383 : vector<2x128xf32>
    %385 = math.tanh %379 : vector<2x128xf32>
    %386 = vector.extract_strided_slice %384 {offsets = [0, 0], sizes = [2, 32], strides = [1, 1]} : vector<2x128xf32> to vector<2x32xf32>
    %387 = vector.extract_strided_slice %384 {offsets = [0, 32], sizes = [2, 32], strides = [1, 1]} : vector<2x128xf32> to vector<2x32xf32>
    %388 = vector.extract_strided_slice %385 {offsets = [0, 64], sizes = [2, 32], strides = [1, 1]} : vector<2x128xf32> to vector<2x32xf32>
    %389 = vector.extract_strided_slice %384 {offsets = [0, 96], sizes = [2, 32], strides = [1, 1]} : vector<2x128xf32> to vector<2x32xf32>
    %390 = arith.mulf %387, %368 : vector<2x32xf32>
    %391 = arith.mulf %386, %388 : vector<2x32xf32>
    %392 = arith.addf %390, %391 : vector<2x32xf32>
    %393 = math.tanh %392 : vector<2x32xf32>
    %394 = arith.mulf %389, %393 : vector<2x32xf32>
    %395 = arith.index_cast %c6_i32_133 : i32 to index
    %c0_138 = arith.constant 0 : index
    %c0_139 = arith.constant 0 : index
    %396 = vector.load %arg14[%395, %c0_138, %c0_139] : memref<8x2x32xf32, #tpu.memory_space<vmem>>, vector<1x2x32xf32>
    %397 = vector.shape_cast %396 : vector<1x2x32xf32> to vector<2x32xf32>
    %398 = vector.shape_cast %394 : vector<2x32xf32> to vector<1x2x32xf32>
    tpu.vector_store %arg14[%395, %c0_138, %c0_139], %398 {strides = array<i32>} : memref<8x2x32xf32, #tpu.memory_space<vmem>>, vector<1x2x32xf32>,
    %c7_i32_140 = arith.constant 7 : i32
    %399 = arith.index_cast %c7_i32_140 : i32 to index
    %c0_141 = arith.constant 0 : index
    %c0_142 = arith.constant 0 : index
    %400 = vector.load %arg15[%399, %c0_141, %c0_142] : memref<8x2x128xf32, #tpu.memory_space<vmem>>, vector<1x2x128xf32>
    %401 = vector.shape_cast %400 : vector<1x2x128xf32> to vector<2x128xf32>
    %cst_143 = arith.constant dense<0.000000e+00> : vector<2x128xf32>
    %402 = tpu.matmul %394, %218, %cst_143 {dimension_numbers = #tpu.dot_dimension_numbers<[1], [0], [0], [1], [0, 0, 1, 1], [], []>} : vector<2x32xf32>, vector<32x128xf32>, vector<2x128xf32> -> vector<2x128xf32>
    %403 = arith.addf %401, %402 : vector<2x128xf32>
    %404 = arith.negf %403 : vector<2x128xf32>
    %405 = math.exp %404 : vector<2x128xf32>
    %cst_144 = arith.constant 1.000000e+00 : f32
    %406 = vector.broadcast %cst_144 : f32 to vector<2x128xf32>
    %407 = arith.addf %406, %405 : vector<2x128xf32>
    %408 = arith.divf %406, %407 : vector<2x128xf32>
    %409 = math.tanh %403 : vector<2x128xf32>
    %410 = vector.extract_strided_slice %408 {offsets = [0, 0], sizes = [2, 32], strides = [1, 1]} : vector<2x128xf32> to vector<2x32xf32>
    %411 = vector.extract_strided_slice %408 {offsets = [0, 32], sizes = [2, 32], strides = [1, 1]} : vector<2x128xf32> to vector<2x32xf32>
    %412 = vector.extract_strided_slice %409 {offsets = [0, 64], sizes = [2, 32], strides = [1, 1]} : vector<2x128xf32> to vector<2x32xf32>
    %413 = vector.extract_strided_slice %408 {offsets = [0, 96], sizes = [2, 32], strides = [1, 1]} : vector<2x128xf32> to vector<2x32xf32>
    %414 = arith.mulf %411, %392 : vector<2x32xf32>
    %415 = arith.mulf %410, %412 : vector<2x32xf32>
    %416 = arith.addf %414, %415 : vector<2x32xf32>
    %417 = math.tanh %416 : vector<2x32xf32>
    %418 = arith.mulf %413, %417 : vector<2x32xf32>
    %419 = arith.index_cast %c7_i32_140 : i32 to index
    %c0_145 = arith.constant 0 : index
    %c0_146 = arith.constant 0 : index
    %420 = vector.load %arg14[%419, %c0_145, %c0_146] : memref<8x2x32xf32, #tpu.memory_space<vmem>>, vector<1x2x32xf32>
    %421 = vector.shape_cast %420 : vector<1x2x32xf32> to vector<2x32xf32>
    %422 = vector.shape_cast %418 : vector<2x32xf32> to vector<1x2x32xf32>
    tpu.vector_store %arg14[%419, %c0_145, %c0_146], %422 {strides = array<i32>} : memref<8x2x32xf32, #tpu.memory_space<vmem>>, vector<1x2x32xf32>,
    %c8_i32_147 = arith.constant 8 : i32
    %c1_148 = arith.constant 1 : index
    %c0_149 = arith.constant 0 : index
    %c0_150 = arith.constant 0 : index
    %423 = vector.load %arg11[%c1_148, %c0_149, %c0_150] : memref<2x2x32xf32, #tpu.memory_space<vmem>>, vector<1x2x32xf32>
    %424 = vector.shape_cast %423 : vector<1x2x32xf32> to vector<2x32xf32>
    %425 = vector.shape_cast %418 : vector<2x32xf32> to vector<1x2x32xf32>
    tpu.vector_store %arg11[%c1_148, %c0_149, %c0_150], %425 {strides = array<i32>} : memref<2x2x32xf32, #tpu.memory_space<vmem>>, vector<1x2x32xf32>,
    %c1_151 = arith.constant 1 : index
    %c0_152 = arith.constant 0 : index
    %c0_153 = arith.constant 0 : index
    %426 = vector.load %arg12[%c1_151, %c0_152, %c0_153] : memref<2x2x32xf32, #tpu.memory_space<vmem>>, vector<1x2x32xf32>
    %427 = vector.shape_cast %426 : vector<1x2x32xf32> to vector<2x32xf32>
    %428 = vector.shape_cast %416 : vector<2x32xf32> to vector<1x2x32xf32>
    tpu.vector_store %arg12[%c1_151, %c0_152, %c0_153], %428 {strides = array<i32>} : memref<2x2x32xf32, #tpu.memory_space<vmem>>, vector<1x2x32xf32>,
    %c0_154 = arith.constant 0 : index
    %c0_155 = arith.constant 0 : index
    %c0_156 = arith.constant 0 : index
    %429 = vector.load %arg14[%c0_154, %c0_155, %c0_156] : memref<8x2x32xf32, #tpu.memory_space<vmem>>, vector<8x2x32xf32>
    %430 = vector.shape_cast %429 : vector<8x2x32xf32> to vector<16x32xf32>
    %c0_157 = arith.constant 0 : index
    %c0_158 = arith.constant 0 : index
    %431 = vector.load %arg8[%c0_157, %c0_158] : memref<32x128xf32, #tpu.memory_space<vmem>>, vector<32x128xf32>
    %cst_159 = arith.constant dense<0.000000e+00> : vector<16x128xf32>
    %432 = tpu.matmul %430, %431, %cst_159 {dimension_numbers = #tpu.dot_dimension_numbers<[1], [0], [0], [1], [0, 0, 1, 1], [], []>} : vector<16x32xf32>, vector<32x128xf32>, vector<16x128xf32> -> vector<16x128xf32>
    %c0_160 = arith.constant 0 : index
    %c0_161 = arith.constant 0 : index
    %433 = vector.load %arg9[%c0_160, %c0_161] : memref<1x128xf32, #tpu.memory_space<vmem>>, vector<1x128xf32>
    %434 = vector.broadcast %433 : vector<1x128xf32> to vector<16x128xf32>
    %435 = arith.addf %432, %434 : vector<16x128xf32>
    %436 = vector.shape_cast %435 : vector<16x128xf32> to vector<8x2x128xf32>
    %c0_162 = arith.constant 0 : index
    %c0_163 = arith.constant 0 : index
    %c0_164 = arith.constant 0 : index
    %437 = vector.load %arg10[%c0_162, %c0_163, %c0_164] : memref<8x2x128xf32, #tpu.memory_space<vmem>>, vector<8x2x128xf32>
    tpu.vector_store %arg10[%c0_162, %c0_163, %c0_164], %436 {strides = array<i32>} : memref<8x2x128xf32, #tpu.memory_space<vmem>>, vector<8x2x128xf32>,
    return
  }
  func.func @transform_0(%arg0: i32) -> (i32, i32, i32) {
    %c0_i32 = arith.constant 0 : i32
    %c0_i32_0 = arith.constant 0 : i32
    %c0_i32_1 = arith.constant 0 : i32
    %c0_i32_2 = arith.constant 0 : i32
    return %c0_i32, %c0_i32_0, %c0_i32_1 : i32, i32, i32
  }
  func.func @transform_1(%arg0: i32) -> (i32, i32, i32) {
    %c0_i32 = arith.constant 0 : i32
    %c0_i32_0 = arith.constant 0 : i32
    %c0_i32_1 = arith.constant 0 : i32
    %c0_i32_2 = arith.constant 0 : i32
    return %c0_i32, %c0_i32_0, %c0_i32_1 : i32, i32, i32
  }
  func.func @transform_2(%arg0: i32) -> (i32, i32, i32) {
    %c0_i32 = arith.constant 0 : i32
    %c0_i32_0 = arith.constant 0 : i32
    %c0_i32_1 = arith.constant 0 : i32
    %c0_i32_2 = arith.constant 0 : i32
    return %c0_i32, %c0_i32_0, %c0_i32_1 : i32, i32, i32
  }
  func.func @transform_3(%arg0: i32) -> (i32, i32) {
    %c0_i32 = arith.constant 0 : i32
    %c0_i32_0 = arith.constant 0 : i32
    %c0_i32_1 = arith.constant 0 : i32
    return %c0_i32, %c0_i32_0 : i32, i32
  }
  func.func @transform_4(%arg0: i32) -> (i32, i32, i32) {
    %c0_i32 = arith.constant 0 : i32
    %c0_i32_0 = arith.constant 0 : i32
    %c0_i32_1 = arith.constant 0 : i32
    %c0_i32_2 = arith.constant 0 : i32
    return %c0_i32, %c0_i32_0, %c0_i32_1 : i32, i32, i32
  }
  func.func @transform_5(%arg0: i32) -> (i32, i32, i32) {
    %c0_i32 = arith.constant 0 : i32
    %c0_i32_0 = arith.constant 0 : i32
    %c0_i32_1 = arith.constant 0 : i32
    %c0_i32_2 = arith.constant 0 : i32
    return %c0_i32, %c0_i32_0, %c0_i32_1 : i32, i32, i32
  }
  func.func @transform_6(%arg0: i32) -> (i32, i32) {
    %c0_i32 = arith.constant 0 : i32
    %c0_i32_0 = arith.constant 0 : i32
    %c0_i32_1 = arith.constant 0 : i32
    return %c0_i32, %c0_i32_0 : i32, i32
  }
  func.func @transform_7(%arg0: i32) -> (i32, i32) {
    %c0_i32 = arith.constant 0 : i32
    %c0_i32_0 = arith.constant 0 : i32
    %c0_i32_1 = arith.constant 0 : i32
    return %c0_i32, %c0_i32_0 : i32, i32
  }
  func.func @transform_8(%arg0: i32) -> (i32, i32) {
    %c0_i32 = arith.constant 0 : i32
    %c0_i32_0 = arith.constant 0 : i32
    %c0_i32_1 = arith.constant 0 : i32
    return %c0_i32, %c0_i32_0 : i32, i32
  }
  func.func @transform_9(%arg0: i32) -> (i32, i32, i32) {
    %c0_i32 = arith.constant 0 : i32
    %c0_i32_0 = arith.constant 0 : i32
    %c0_i32_1 = arith.constant 0 : i32
    %c0_i32_2 = arith.constant 0 : i32
    return %c0_i32, %c0_i32_0, %c0_i32_1 : i32, i32, i32
  }
  func.func @transform_10(%arg0: i32) -> (i32, i32, i32) {
    %c0_i32 = arith.constant 0 : i32
    %c0_i32_0 = arith.constant 0 : i32
    %c0_i32_1 = arith.constant 0 : i32
    %c0_i32_2 = arith.constant 0 : i32
    return %c0_i32, %c0_i32_0, %c0_i32_1 : i32, i32, i32
  }
  func.func @transform_11(%arg0: i32) -> (i32, i32, i32) {
    %c0_i32 = arith.constant 0 : i32
    %c0_i32_0 = arith.constant 0 : i32
    %c0_i32_1 = arith.constant 0 : i32
    %c0_i32_2 = arith.constant 0 : i32
    return %c0_i32, %c0_i32_0, %c0_i32_1 : i32, i32, i32
  }
}

</mosaic_0001>

<llo_original>
// kernel: tpu_custom_call.1
$region0: #{tpu_custom_call.1}
  #allocation0 [shape = 'u32[]', space=smem, size = 0x4, offset = 0x4, fixed_abs, tag = 'smem constant byte address 0x4 - core index']
  #allocation1 [shape = 'u32[144,128]{1,0:T(1,128)}', space=vmem, size = 0x12000, scoped, tag = 'internal scratch']
  #allocation2 [shape = 'f32[8,2,32]{2,1,0:T(2,128)}', space=vmem, size = 0x2000, scoped, tag = 'scratch operand']
  #allocation3 [shape = 'f32[8,2,32]{2,1,0:T(2,128)}', space=vmem, size = 0x2000, scoped, tag = 'scratch operand']
  #allocation4 [shape = 'f32[8,2,128]{2,1,0:T(2,128)}', space=vmem, size = 0x2000, scoped, tag = 'scratch operand']
  %s0 = inlined_call_operand.vmem [shape: f32[8,2,1], index: 0, kind: input, shape index: {}]
  %s1 = inlined_call_operand.hbm [shape: f32[2,2,32], index: 1, kind: input, shape index: {}]
  %s2 = inlined_call_operand.hbm [shape: f32[2,2,32], index: 2, kind: input, shape index: {}]
  %s3 = inlined_call_operand.vmem [shape: f32[1,128], index: 3, kind: input, shape index: {}]
  %s4 = inlined_call_operand.vmem [shape: f32[1,32,128], index: 4, kind: input, shape index: {}]
  %s5 = inlined_call_operand.hbm [shape: f32[2,32,128], index: 5, kind: input, shape index: {}]
  %s6 = inlined_call_operand.vmem [shape: f32[2,128], index: 6, kind: input, shape index: {}]
  %s7 = inlined_call_operand.hbm [shape: f32[32,128], index: 7, kind: input, shape index: {}]
  %s8 = inlined_call_operand.vmem [shape: f32[1,128], index: 8, kind: input, shape index: {}]
  %s9 = inlined_call_operand.hbm [shape: f32[8,2,128], index: 9, kind: output, shape index: {0}]
  %s10 = inlined_call_operand.hbm [shape: f32[2,2,32], index: 10, kind: output, shape index: {1}]
  %s11 = inlined_call_operand.hbm [shape: f32[2,2,32], index: 11, kind: output, shape index: {2}]
  %12 = xla_tuple %s9, %s10, %s11
  %s13 = sld [smem:[#allocation0]]
  $region78: #{tpu_custom_call.1} parent=0
    _
  %s15 = ssub.s32 1, %s13
  %s16 = scalar_select 0, %s15, %s13
  $region1: #{tpu_custom_call.1} parent=0
    #allocation5 [shape = 'u8[2048]{0}', space=vmem, size = 0x800, scoped, tag = 'input window, operand 1, single buffered']
    #allocation6 [shape = 's32[1]{0}', space=sflag, size = 0x4, scoped, tag = 'scoped memory for tpu_custom_call.1']
    #allocation7 [shape = 's32[1]{0}', space=sflag, size = 0x4, scoped, tag = 'scoped memory for tpu_custom_call.1']
    #allocation8 [shape = 'u8[2048]{0}', space=vmem, size = 0x800, scoped, tag = 'input window, operand 2, single buffered']
    #allocation9 [shape = 's32[1]{0}', space=sflag, size = 0x4, scoped, tag = 'scoped memory for tpu_custom_call.1']
    #allocation10 [shape = 'u8[32768]{0}', space=vmem, size = 0x8000, scoped, tag = 'input window, operand 5, single buffered']
    #allocation11 [shape = 'u8[16384]{0}', space=vmem, size = 0x4000, scoped, tag = 'input window, operand 7, single buffered']
    #allocation12 [shape = 's32[1]{0}', space=sflag, size = 0x4, scoped, tag = 'scoped memory for tpu_custom_call.1']
    #allocation13 [shape = 'u8[8192]{0}', space=vmem, size = 0x2000, scoped, tag = 'output window, operand 0, single buffered']
    #allocation14 [shape = 'u8[2048]{0}', space=vmem, size = 0x800, scoped, tag = 'output window, operand 1, single buffered']
    #allocation15 [shape = 's32[1]{0}', space=sflag, size = 0x4, scoped, tag = 'scoped memory for tpu_custom_call.1']
    #allocation16 [shape = 'u8[2048]{0}', space=vmem, size = 0x800, scoped, tag = 'output window, operand 2, single buffered']
    %17 = vsyncpa [#allocation6], 0
    %18 = vsyncpa [#allocation9], 0
    %19 = vsyncpa [#allocation12], 0
    %20 = vsyncpa [#allocation7], 0
    %21 = vsyncpa [#allocation15], 0
    // Predicated region
    $region2: #{tpu_custom_call.1} parent=1 // pred_check
      _
    $region3: #{tpu_custom_call.1} parent=1 // pred_check_branch
      %23 = sbr.rel (0) target = $region5
    $region4: #{tpu_custom_call.1} parent=1 // pred_region
      _
    $region5: #{tpu_custom_call.1} parent=1 // pred_fallthru
      _
    // Predicated region
    $region6: #{tpu_custom_call.1} parent=1 // pred_check
      _
    $region7: #{tpu_custom_call.1} parent=1 // pred_check_branch
      %25 = sbr.rel (0) target = $region9
    $region8: #{tpu_custom_call.1} parent=1 // pred_region
      %s27 = ssub.s32 64, 64
      %28 = vsyncadd [#allocation6], %s27
      %s29 = sshll.u32 [#allocation5], 4
      %s30 = int_to_ptr.vmem [resolvable:$true] %s29
      %35 = dma.hbm_to_vmem [thread:$0]  %s1, 64, %s30, [#allocation6], 32, 32, 2
    $region9: #{tpu_custom_call.1} parent=1 // pred_fallthru
      _
    // Predicated region
    $region10: #{tpu_custom_call.1} parent=1 // pred_check
      _
    $region11: #{tpu_custom_call.1} parent=1 // pred_check_branch
      %37 = sbr.rel (0) target = $region13
    $region12: #{tpu_custom_call.1} parent=1 // pred_region
      %s39 = ssub.s32 64, 64
      %40 = vsyncadd [#allocation9], %s39
      %s41 = sshll.u32 [#allocation8], 4
      %s42 = int_to_ptr.vmem [resolvable:$true] %s41
      %47 = dma.hbm_to_vmem [thread:$0]  %s2, 64, %s42, [#allocation9], 32, 32, 2
    $region13: #{tpu_custom_call.1} parent=1 // pred_fallthru
      _
    // Predicated region
    $region14: #{tpu_custom_call.1} parent=1 // pred_check
      _
    $region15: #{tpu_custom_call.1} parent=1 // pred_check_branch
      %49 = sbr.rel (0) target = $region17
    $region16: #{tpu_custom_call.1} parent=1 // pred_region
      _
    $region17: #{tpu_custom_call.1} parent=1 // pred_fallthru
      _
    // Predicated region
    $region18: #{tpu_custom_call.1} parent=1 // pred_check
      _
    $region19: #{tpu_custom_call.1} parent=1 // pred_check_branch
      %51 = sbr.rel (0) target = $region21
    $region20: #{tpu_custom_call.1} parent=1 // pred_region
      _
    $region21: #{tpu_custom_call.1} parent=1 // pred_fallthru
      _
    // Predicated region
    $region22: #{tpu_custom_call.1} parent=1 // pred_check
      _
    $region23: #{tpu_custom_call.1} parent=1 // pred_check_branch
      %53 = sbr.rel (0) target = $region25
    $region24: #{tpu_custom_call.1} parent=1 // pred_region
      %s55 = ssub.s32 1024, 1024
      %56 = vsyncadd [#allocation9], %s55
      %s57 = sshll.u32 [#allocation10], 4
      %s58 = int_to_ptr.vmem [resolvable:$true] %s57
      %63 = dma.hbm_to_vmem [thread:$0]  %s5, 1024, %s58, [#allocation9], 128, 128, 8
    $region25: #{tpu_custom_call.1} parent=1 // pred_fallthru
      _
    // Predicated region
    $region26: #{tpu_custom_call.1} parent=1 // pred_check
      _
    $region27: #{tpu_custom_call.1} parent=1 // pred_check_branch
      %65 = sbr.rel (0) target = $region29
    $region28: #{tpu_custom_call.1} parent=1 // pred_region
      _
    $region29: #{tpu_custom_call.1} parent=1 // pred_fallthru
      _
    // Predicated region
    $region30: #{tpu_custom_call.1} parent=1 // pred_check
      _
    $region31: #{tpu_custom_call.1} parent=1 // pred_check_branch
      %67 = sbr.rel (0) target = $region33
    $region32: #{tpu_custom_call.1} parent=1 // pred_region
      %s69 = ssub.s32 512, 512
      %70 = vsyncadd [#allocation12], %s69
      %s71 = sshll.u32 [#allocation11], 4
      %s72 = int_to_ptr.vmem [resolvable:$true] %s71
      %77 = dma.hbm_to_vmem [thread:$0]  %s7, 512, %s72, [#allocation12], 128, 128, 8
    $region33: #{tpu_custom_call.1} parent=1 // pred_fallthru
      _
    // Predicated region
    $region34: #{tpu_custom_call.1} parent=1 // pred_check
      _
    $region35: #{tpu_custom_call.1} parent=1 // pred_check_branch
      %79 = sbr.rel (0) target = $region37
    $region36: #{tpu_custom_call.1} parent=1 // pred_region
      _
    $region37: #{tpu_custom_call.1} parent=1 // pred_fallthru
      _
    // Predicated region
    $region38: #{tpu_custom_call.1} parent=1 // pred_check
      _
    $region39: #{tpu_custom_call.1} parent=1 // pred_check_branch
      %81 = sbr.rel (0) target = $region41
    $region40: #{tpu_custom_call.1} parent=1 // pred_region
      %82 = dma.done [#allocation6], 64
    $region41: #{tpu_custom_call.1} parent=1 // pred_fallthru
      _
    // Predicated region
    $region42: #{tpu_custom_call.1} parent=1 // pred_check
      _
    $region43: #{tpu_custom_call.1} parent=1 // pred_check_branch
      %84 = sbr.rel (0) target = $region45
    $region44: #{tpu_custom_call.1} parent=1 // pred_region
      %85 = dma.done [#allocation9], 64
    $region45: #{tpu_custom_call.1} parent=1 // pred_fallthru
      _
    // Predicated region
    $region46: #{tpu_custom_call.1} parent=1 // pred_check
      _
    $region47: #{tpu_custom_call.1} parent=1 // pred_check_branch
      %87 = sbr.rel (0) target = $region49
    $region48: #{tpu_custom_call.1} parent=1 // pred_region
      %88 = dma.done [#allocation9], 1024
    $region49: #{tpu_custom_call.1} parent=1 // pred_fallthru
      _
    // Predicated region
    $region50: #{tpu_custom_call.1} parent=1 // pred_check
      _
    $region51: #{tpu_custom_call.1} parent=1 // pred_check_branch
      %90 = sbr.rel (0) target = $region53
    $region52: #{tpu_custom_call.1} parent=1 // pred_region
      %91 = dma.done [#allocation12], 512
    $region53: #{tpu_custom_call.1} parent=1 // pred_fallthru
      _
    %v92 = vld [vmem:[%s0] sm:$0x3]
    %v93 = vld [vmem:[%s0 + $0x2] sm:$0x3]
    %v94 = vld [vmem:[%s0 + $0x4] sm:$0x3]
    %v95 = vld [vmem:[%s0 + $0x6] sm:$0x3]
    %v96 = vld [vmem:[%s0 + $0x8] sm:$0x3]
    %v97 = vld [vmem:[%s0 + $0xa] sm:$0x3]
    %v98 = vld [vmem:[%s0 + $0xc] sm:$0x3]
    %v99 = vld [vmem:[%s0 + $0xe] sm:$0x3]
    %v100 = vld [vmem:[%s3] sm:$0x1]
    %102 = vset.pattern.permute.xlu0 0
    %103 = vperm.xlu0 %102, %v92
    %v104 = vpop.permute.xlu0 %103
    %107 = vset.pattern.permute.xlu0 0
    %108 = vperm.xlu0 %107, %v93
    %v109 = vpop.permute.xlu0 %108
    %112 = vset.pattern.permute.xlu0 0
    %113 = vperm.xlu0 %112, %v94
    %v114 = vpop.permute.xlu0 %113
    %117 = vset.pattern.permute.xlu0 0
    %118 = vperm.xlu0 %117, %v95
    %v119 = vpop.permute.xlu0 %118
    %122 = vset.pattern.permute.xlu0 0
    %123 = vperm.xlu0 %122, %v96
    %v124 = vpop.permute.xlu0 %123
    %127 = vset.pattern.permute.xlu0 0
    %128 = vperm.xlu0 %127, %v97
    %v129 = vpop.permute.xlu0 %128
    %132 = vset.pattern.permute.xlu0 0
    %133 = vperm.xlu0 %132, %v98
    %v134 = vpop.permute.xlu0 %133
    %137 = vset.pattern.permute.xlu0 0
    %138 = vperm.xlu0 %137, %v99
    %v139 = vpop.permute.xlu0 %138
    %v142 = vlaneseq
    %v143 = vshrl.u32 %v142, 7
    %v144 = vsub.s32 0, %v143
    %v145 = vrot.slane %v100, %v144
    %v147 = vmul.f32 %v104, %v145
    %v148 = vmul.f32 %v109, %v145
    %v149 = vmul.f32 %v114, %v145
    %v150 = vmul.f32 %v119, %v145
    %v151 = vmul.f32 %v124, %v145
    %v152 = vmul.f32 %v129, %v145
    %v153 = vmul.f32 %v134, %v145
    %v154 = vmul.f32 %v139, %v145
    %v155 = vld [vmem:[%s6] sm:$0x1]
    %v156 = vlaneseq
    %v157 = vshrl.u32 %v156, 7
    %v158 = vsub.s32 0, %v157
    %v159 = vrot.slane %v155, %v158
    %v160 = vadd.f32 %v147, %v159
    %v161 = vadd.f32 %v148, %v159
    %v162 = vadd.f32 %v149, %v159
    %v163 = vadd.f32 %v150, %v159
    %v164 = vadd.f32 %v151, %v159
    %v165 = vadd.f32 %v152, %v159
    %v166 = vadd.f32 %v153, %v159
    %v167 = vadd.f32 %v154, %v159
    %168 = vst [vmem:[#allocation4] sm:$0x3] %v160
    %169 = vst [vmem:[#allocation4 + $0x2] sm:$0x3] %v161
    %170 = vst [vmem:[#allocation4 + $0x4] sm:$0x3] %v162
    %171 = vst [vmem:[#allocation4 + $0x6] sm:$0x3] %v163
    %172 = vst [vmem:[#allocation4 + $0x8] sm:$0x3] %v164
    %173 = vst [vmem:[#allocation4 + $0xa] sm:$0x3] %v165
    %174 = vst [vmem:[#allocation4 + $0xc] sm:$0x3] %v166
    %175 = vst [vmem:[#allocation4 + $0xe] sm:$0x3] %v167
    %v176 = vld [vmem:[#allocation10] sm:$0xff]
    %v177 = vld [vmem:[#allocation10 + $0x8] sm:$0xff]
    %v178 = vld [vmem:[#allocation10 + $0x10] sm:$0xff]
    %v179 = vld [vmem:[#allocation10 + $0x18] sm:$0xff]
    %v180 = vld [vmem:[#allocation5] sm:$0x3]
    %v181 = vld [vmem:[#allocation8] sm:$0x3]
    %v182 = vld [vmem:[#allocation4] sm:$0x3]
    %vm183 = vcmask 261120
    %v185 = vsel %vm183, %v180, 0
    %187 = vmatprep.subr.mxu0 0.0
    %188 = vmatpush1.msra.mxu0 %v176
    %189 = vmatprep.subr.mxu0 0.0
    %190 = vmatpush1.msra.mxu0 %v177
    %191 = vmatprep.subr.mxu0 0.0
    %192 = vmatpush1.msra.mxu0 %v178
    %193 = vmatprep.subr.mxu0 0.0
    %194 = vmatpush1.msra.mxu0 %v179
    %195 = vmatprep.subr.mxu0 0.0
    %196 = vmatpush1.msra.mxu0 0.0
    %197 = vmatprep.subr.mxu0 0.0
    %198 = vmatpush1.msra.mxu0 0.0
    %199 = vmatprep.subr.mxu0 0.0
    %200 = vmatpush1.msra.mxu0 0.0
    %201 = vmatprep.subr.mxu0 0.0
    %202 = vmatpush1.msra.mxu0 0.0
    %203 = vmatprep.subr.mxu0 0.0
    %204 = vmatpush1.msra.mxu0 0.0
    %205 = vmatprep.subr.mxu0 0.0
    %206 = vmatpush1.msra.mxu0 0.0
    %207 = vmatprep.subr.mxu0 0.0
    %208 = vmatpush1.msra.mxu0 0.0
    %209 = vmatprep.subr.mxu0 0.0
    %210 = vmatpush1.msra.mxu0 0.0
    %211 = vmatprep.subr.mxu0 0.0
    %212 = vmatpush1.msra.mxu0 0.0
    %213 = vmatprep.subr.mxu0 0.0
    %214 = vmatpush1.msra.mxu0 0.0
    %215 = vmatprep.subr.mxu0 0.0
    %216 = vmatpush1.msra.mxu0 0.0
    %217 = vmatprep.subr.mxu0 0.0
    %218 = vmatpush1.msra.mxu0 0.0
    %219 = vmatprep.subr.mxu0 0.0
    %220 = vmatpush1.msra.mxu0 0.0
    %221 = vmatprep.subr.mxu0 0.0
    %222 = vmatpush1.msra.mxu0 0.0
    %223 = vmatprep.subr.mxu0 0.0
    %224 = vmatpush1.msra.mxu0 0.0
    %225 = vmatprep.subr.mxu0 0.0
    %226 = vmatpush1.msra.mxu0 0.0
    %227 = vmatprep.subr.mxu0 0.0
    %228 = vmatpush1.msra.mxu0 0.0
    %229 = vmatprep.subr.mxu0 0.0
    %230 = vmatpush1.msra.mxu0 0.0
    %231 = vmatprep.subr.mxu0 0.0
    %232 = vmatpush1.msra.mxu0 0.0
    %233 = vmatprep.subr.mxu0 0.0
    %234 = vmatpush1.msra.mxu0 0.0
    %235 = vmatprep.subr.mxu0 0.0
    %236 = vmatpush1.msra.mxu0 0.0
    %237 = vmatprep.subr.mxu0 0.0
    %238 = vmatpush1.msra.mxu0 0.0
    %239 = vmatprep.subr.mxu0 0.0
    %240 = vmatpush1.msra.mxu0 0.0
    %241 = vmatprep.subr.mxu0 0.0
    %242 = vmatpush1.msra.mxu0 0.0
    %243 = vmatprep.subr.mxu0 0.0
    %244 = vmatpush1.msra.mxu0 0.0
    %245 = vmatprep.subr.mxu0 0.0
    %246 = vmatpush1.msra.mxu0 0.0
    %247 = vmatprep.subr.mxu0 0.0
    %248 = vmatpush1.msra.mxu0 0.0
    %249 = vmatprep.subr.mxu0 0.0
    %250 = vmatpush1.msra.mxu0 0.0
    %251 = vmatprep.mubr.f32.mxu0 0.0
    %252 = vmatmul.mubr.f32.gmra.mrb[0].mxu0 %v185
    %v253 = vpop.f32.mrb[0].mxu0
    %v254 = vadd.f32 0.0, %v253
    %v255 = vpop.f32.mrb[0].mxu0
    %256 = vdwg.mxu0
    %v257 = vadd.f32 %v182, %v254
    %v258 = vxor.u32 %v257, 2147483648
    %v259 = vmul.f32 %v258, 1.442695
    %v260 = vpow.pop %v259
    %v261 = vadd.f32 %v260, 1.0
    %v262 = vrcp.pop %v261
    %v263 = vmul.f32 1.0, %v262
    %v264 = vtanh.pop %v257
    %266 = vrot.lane.b32.xlu0 %v181, 32
    %v267 = vpop.permute.xlu0 %266
    %v269 = vmul.f32 %v263, %v267
    %271 = vrot.lane.b32.xlu0 %v264, 64
    %v272 = vpop.permute.xlu0 %271
    %v274 = vmul.f32 %v263, %v272
    %276 = vrot.lane.b32.xlu0 %v274, 32
    %v277 = vpop.permute.xlu0 %276
    %v279 = vadd.f32 %v269, %v277
    %v280 = vtanh.pop %v279
    %282 = vrot.lane.b32.xlu0 %v280, 64
    %v283 = vpop.permute.xlu0 %282
    %v285 = vmul.f32 %v263, %v283
    %287 = vrot.lane.b32.xlu0 %v285, 32
    %v288 = vpop.permute.xlu0 %287
    %vm290 = vcmask 254976
    %291 = vst.msk [vmem:[#allocation2] sm:$0x3] %vm290, %v288
    %s292 = scalar_lea.vmem [#allocation4], 2
    %v293 = vld [vmem:[%s292] sm:$0x3]
    %v294 = vsel %vm183, %v288, 0
    %296 = vmatprep.subr.mxu0 0.0
    %297 = vmatpush1.msra.mxu0 %v176
    %298 = vmatprep.subr.mxu0 0.0
    %299 = vmatpush1.msra.mxu0 %v177
    %300 = vmatprep.subr.mxu0 0.0
    %301 = vmatpush1.msra.mxu0 %v178
    %302 = vmatprep.subr.mxu0 0.0
    %303 = vmatpush1.msra.mxu0 %v179
    %304 = vmatprep.subr.mxu0 0.0
    %305 = vmatpush1.msra.mxu0 0.0
    %306 = vmatprep.subr.mxu0 0.0
    %307 = vmatpush1.msra.mxu0 0.0
    %308 = vmatprep.subr.mxu0 0.0
    %309 = vmatpush1.msra.mxu0 0.0
    %310 = vmatprep.subr.mxu0 0.0
    %311 = vmatpush1.msra.mxu0 0.0
    %312 = vmatprep.subr.mxu0 0.0
    %313 = vmatpush1.msra.mxu0 0.0
    %314 = vmatprep.subr.mxu0 0.0
    %315 = vmatpush1.msra.mxu0 0.0
    %316 = vmatprep.subr.mxu0 0.0
    %317 = vmatpush1.msra.mxu0 0.0
    %318 = vmatprep.subr.mxu0 0.0
    %319 = vmatpush1.msra.mxu0 0.0
    %320 = vmatprep.subr.mxu0 0.0
    %321 = vmatpush1.msra.mxu0 0.0
    %322 = vmatprep.subr.mxu0 0.0
    %323 = vmatpush1.msra.mxu0 0.0
    %324 = vmatprep.subr.mxu0 0.0
    %325 = vmatpush1.msra.mxu0 0.0
    %326 = vmatprep.subr.mxu0 0.0
    %327 = vmatpush1.msra.mxu0 0.0
    %328 = vmatprep.subr.mxu0 0.0
    %329 = vmatpush1.msra.mxu0 0.0
    %330 = vmatprep.subr.mxu0 0.0
    %331 = vmatpush1.msra.mxu0 0.0
    %332 = vmatprep.subr.mxu0 0.0
    %333 = vmatpush1.msra.mxu0 0.0
    %334 = vmatprep.subr.mxu0 0.0
    %335 = vmatpush1.msra.mxu0 0.0
    %336 = vmatprep.subr.mxu0 0.0
    %337 = vmatpush1.msra.mxu0 0.0
    %338 = vmatprep.subr.mxu0 0.0
    %339 = vmatpush1.msra.mxu0 0.0
    %340 = vmatprep.subr.mxu0 0.0
    %341 = vmatpush1.msra.mxu0 0.0
    %342 = vmatprep.subr.mxu0 0.0
    %343 = vmatpush1.msra.mxu0 0.0
    %344 = vmatprep.subr.mxu0 0.0
    %345 = vmatpush1.msra.mxu0 0.0
    %346 = vmatprep.subr.mxu0 0.0
    %347 = vmatpush1.msra.mxu0 0.0
    %348 = vmatprep.subr.mxu0 0.0
    %349 = vmatpush1.msra.mxu0 0.0
    %350 = vmatprep.subr.mxu0 0.0
    %351 = vmatpush1.msra.mxu0 0.0
    %352 = vmatprep.subr.mxu0 0.0
    %353 = vmatpush1.msra.mxu0 0.0
    %354 = vmatprep.subr.mxu0 0.0
    %355 = vmatpush1.msra.mxu0 0.0
    %356 = vmatprep.subr.mxu0 0.0
    %357 = vmatpush1.msra.mxu0 0.0
    %358 = vmatprep.subr.mxu0 0.0
    %359 = vmatpush1.msra.mxu0 0.0
    %360 = vmatprep.mubr.f32.mxu0 0.0
    %361 = vmatmul.mubr.f32.gmra.mrb[0].mxu0 %v294
    %v362 = vpop.f32.mrb[0].mxu0
    %v363 = vadd.f32 0.0, %v362
    %v364 = vpop.f32.mrb[0].mxu0
    %365 = vdwg.mxu0
    %v366 = vadd.f32 %v293, %v363
    %v367 = vxor.u32 %v366, 2147483648
    %v368 = vmul.f32 %v367, 1.442695
    %v369 = vpow.pop %v368
    %v370 = vadd.f32 %v369, 1.0
    %v371 = vrcp.pop %v370
    %v372 = vmul.f32 1.0, %v371
    %v373 = vtanh.pop %v366
    %v374 = vmul.f32 %v372, %v279
    %376 = vrot.lane.b32.xlu0 %v373, 64
    %v377 = vpop.permute.xlu0 %376
    %v379 = vmul.f32 %v372, %v377
    %381 = vrot.lane.b32.xlu0 %v379, 32
    %v382 = vpop.permute.xlu0 %381
    %v384 = vadd.f32 %v374, %v382
    %v385 = vtanh.pop %v384
    %387 = vrot.lane.b32.xlu0 %v385, 64
    %v388 = vpop.permute.xlu0 %387
    %v390 = vmul.f32 %v372, %v388
    %392 = vrot.lane.b32.xlu0 %v390, 32
    %v393 = vpop.permute.xlu0 %392
    %s395 = scalar_lea.vmem [#allocation2], 2
    %396 = vst.msk [vmem:[%s395] sm:$0x3] %vm290, %v393
    %s397 = scalar_lea.vmem [#allocation4], 4
    %v398 = vld [vmem:[%s397] sm:$0x3]
    %v399 = vsel %vm183, %v393, 0
    %401 = vmatprep.subr.mxu0 0.0
    %402 = vmatpush1.msra.mxu0 %v176
    %403 = vmatprep.subr.mxu0 0.0
    %404 = vmatpush1.msra.mxu0 %v177
    %405 = vmatprep.subr.mxu0 0.0
    %406 = vmatpush1.msra.mxu0 %v178
    %407 = vmatprep.subr.mxu0 0.0
    %408 = vmatpush1.msra.mxu0 %v179
    %409 = vmatprep.subr.mxu0 0.0
    %410 = vmatpush1.msra.mxu0 0.0
    %411 = vmatprep.subr.mxu0 0.0
    %412 = vmatpush1.msra.mxu0 0.0
    %413 = vmatprep.subr.mxu0 0.0
    %414 = vmatpush1.msra.mxu0 0.0
    %415 = vmatprep.subr.mxu0 0.0
    %416 = vmatpush1.msra.mxu0 0.0
    %417 = vmatprep.subr.mxu0 0.0
    %418 = vmatpush1.msra.mxu0 0.0
    %419 = vmatprep.subr.mxu0 0.0
    %420 = vmatpush1.msra.mxu0 0.0
    %421 = vmatprep.subr.mxu0 0.0
    %422 = vmatpush1.msra.mxu0 0.0
    %423 = vmatprep.subr.mxu0 0.0
    %424 = vmatpush1.msra.mxu0 0.0
    %425 = vmatprep.subr.mxu0 0.0
    %426 = vmatpush1.msra.mxu0 0.0
    %427 = vmatprep.subr.mxu0 0.0
    %428 = vmatpush1.msra.mxu0 0.0
    %429 = vmatprep.subr.mxu0 0.0
    %430 = vmatpush1.msra.mxu0 0.0
    %431 = vmatprep.subr.mxu0 0.0
    %432 = vmatpush1.msra.mxu0 0.0
    %433 = vmatprep.subr.mxu0 0.0
    %434 = vmatpush1.msra.mxu0 0.0
    %435 = vmatprep.subr.mxu0 0.0
    %436 = vmatpush1.msra.mxu0 0.0
    %437 = vmatprep.subr.mxu0 0.0
    %438 = vmatpush1.msra.mxu0 0.0
    %439 = vmatprep.subr.mxu0 0.0
    %440 = vmatpush1.msra.mxu0 0.0
    %441 = vmatprep.subr.mxu0 0.0
    %442 = vmatpush1.msra.mxu0 0.0
    %443 = vmatprep.subr.mxu0 0.0
    %444 = vmatpush1.msra.mxu0 0.0
    %445 = vmatprep.subr.mxu0 0.0
    %446 = vmatpush1.msra.mxu0 0.0
    %447 = vmatprep.subr.mxu0 0.0
    %448 = vmatpush1.msra.mxu0 0.0
    %449 = vmatprep.subr.mxu0 0.0
    %450 = vmatpush1.msra.mxu0 0.0
    %451 = vmatprep.subr.mxu0 0.0
    %452 = vmatpush1.msra.mxu0 0.0
    %453 = vmatprep.subr.mxu0 0.0
    %454 = vmatpush1.msra.mxu0 0.0
    %455 = vmatprep.subr.mxu0 0.0
    %456 = vmatpush1.msra.mxu0 0.0
    %457 = vmatprep.subr.mxu0 0.0
    %458 = vmatpush1.msra.mxu0 0.0
    %459 = vmatprep.subr.mxu0 0.0
    %460 = vmatpush1.msra.mxu0 0.0
    %461 = vmatprep.subr.mxu0 0.0
    %462 = vmatpush1.msra.mxu0 0.0
    %463 = vmatprep.subr.mxu0 0.0
    %464 = vmatpush1.msra.mxu0 0.0
    %465 = vmatprep.mubr.f32.mxu0 0.0
    %466 = vmatmul.mubr.f32.gmra.mrb[0].mxu0 %v399
    %v467 = vpop.f32.mrb[0].mxu0
    %v468 = vadd.f32 0.0, %v467
    %v469 = vpop.f32.mrb[0].mxu0
    %470 = vdwg.mxu0
    %v471 = vadd.f32 %v398, %v468
    %v472 = vxor.u32 %v471, 2147483648
    %v473 = vmul.f32 %v472, 1.442695
    %v474 = vpow.pop %v473
    %v475 = vadd.f32 %v474, 1.0
    %v476 = vrcp.pop %v475
    %v477 = vmul.f32 1.0, %v476
    %v478 = vtanh.pop %v471
    %v479 = vmul.f32 %v477, %v384
    %481 = vrot.lane.b32.xlu0 %v478, 64
    %v482 = vpop.permute.xlu0 %481
    %v484 = vmul.f32 %v477, %v482
    %486 = vrot.lane.b32.xlu0 %v484, 32
    %v487 = vpop.permute.xlu0 %486
    %v489 = vadd.f32 %v479, %v487
    %v490 = vtanh.pop %v489
    %492 = vrot.lane.b32.xlu0 %v490, 64
    %v493 = vpop.permute.xlu0 %492
    %v495 = vmul.f32 %v477, %v493
    %497 = vrot.lane.b32.xlu0 %v495, 32
    %v498 = vpop.permute.xlu0 %497
    %s500 = scalar_lea.vmem [#allocation2], 4
    %501 = vst.msk [vmem:[%s500] sm:$0x3] %vm290, %v498
    %s502 = scalar_lea.vmem [#allocation4], 6
    %v503 = vld [vmem:[%s502] sm:$0x3]
    %v504 = vsel %vm183, %v498, 0
    %506 = vmatprep.subr.mxu0 0.0
    %507 = vmatpush1.msra.mxu0 %v176
    %508 = vmatprep.subr.mxu0 0.0
    %509 = vmatpush1.msra.mxu0 %v177
    %510 = vmatprep.subr.mxu0 0.0
    %511 = vmatpush1.msra.mxu0 %v178
    %512 = vmatprep.subr.mxu0 0.0
    %513 = vmatpush1.msra.mxu0 %v179
    %514 = vmatprep.subr.mxu0 0.0
    %515 = vmatpush1.msra.mxu0 0.0
    %516 = vmatprep.subr.mxu0 0.0
    %517 = vmatpush1.msra.mxu0 0.0
    %518 = vmatprep.subr.mxu0 0.0
    %519 = vmatpush1.msra.mxu0 0.0
    %520 = vmatprep.subr.mxu0 0.0
    %521 = vmatpush1.msra.mxu0 0.0
    %522 = vmatprep.subr.mxu0 0.0
    %523 = vmatpush1.msra.mxu0 0.0
    %524 = vmatprep.subr.mxu0 0.0
    %525 = vmatpush1.msra.mxu0 0.0
    %526 = vmatprep.subr.mxu0 0.0
    %527 = vmatpush1.msra.mxu0 0.0
    %528 = vmatprep.subr.mxu0 0.0
    %529 = vmatpush1.msra.mxu0 0.0
    %530 = vmatprep.subr.mxu0 0.0
    %531 = vmatpush1.msra.mxu0 0.0
    %532 = vmatprep.subr.mxu0 0.0
    %533 = vmatpush1.msra.mxu0 0.0
    %534 = vmatprep.subr.mxu0 0.0
    %535 = vmatpush1.msra.mxu0 0.0
    %536 = vmatprep.subr.mxu0 0.0
    %537 = vmatpush1.msra.mxu0 0.0
    %538 = vmatprep.subr.mxu0 0.0
    %539 = vmatpush1.msra.mxu0 0.0
    %540 = vmatprep.subr.mxu0 0.0
    %541 = vmatpush1.msra.mxu0 0.0
    %542 = vmatprep.subr.mxu0 0.0
    %543 = vmatpush1.msra.mxu0 0.0
    %544 = vmatprep.subr.mxu0 0.0
    %545 = vmatpush1.msra.mxu0 0.0
    %546 = vmatprep.subr.mxu0 0.0
    %547 = vmatpush1.msra.mxu0 0.0
    %548 = vmatprep.subr.mxu0 0.0
    %549 = vmatpush1.msra.mxu0 0.0
    %550 = vmatprep.subr.mxu0 0.0
    %551 = vmatpush1.msra.mxu0 0.0
    %552 = vmatprep.subr.mxu0 0.0
    %553 = vmatpush1.msra.mxu0 0.0
    %554 = vmatprep.subr.mxu0 0.0
    %555 = vmatpush1.msra.mxu0 0.0
    %556 = vmatprep.subr.mxu0 0.0
    %557 = vmatpush1.msra.mxu0 0.0
    %558 = vmatprep.subr.mxu0 0.0
    %559 = vmatpush1.msra.mxu0 0.0
    %560 = vmatprep.subr.mxu0 0.0
    %561 = vmatpush1.msra.mxu0 0.0
    %562 = vmatprep.subr.mxu0 0.0
    %563 = vmatpush1.msra.mxu0 0.0
    %564 = vmatprep.subr.mxu0 0.0
    %565 = vmatpush1.msra.mxu0 0.0
    %566 = vmatprep.subr.mxu0 0.0
    %567 = vmatpush1.msra.mxu0 0.0
    %568 = vmatprep.subr.mxu0 0.0
    %569 = vmatpush1.msra.mxu0 0.0
    %570 = vmatprep.mubr.f32.mxu0 0.0
    %571 = vmatmul.mubr.f32.gmra.mrb[0].mxu0 %v504
    %v572 = vpop.f32.mrb[0].mxu0
    %v573 = vadd.f32 0.0, %v572
    %v574 = vpop.f32.mrb[0].mxu0
    %575 = vdwg.mxu0
    %v576 = vadd.f32 %v503, %v573
    %v577 = vxor.u32 %v576, 2147483648
    %v578 = vmul.f32 %v577, 1.442695
    %v579 = vpow.pop %v578
    %v580 = vadd.f32 %v579, 1.0
    %v581 = vrcp.pop %v580
    %v582 = vmul.f32 1.0, %v581
    %v583 = vtanh.pop %v576
    %v584 = vmul.f32 %v582, %v489
    %586 = vrot.lane.b32.xlu0 %v583, 64
    %v587 = vpop.permute.xlu0 %586
    %v589 = vmul.f32 %v582, %v587
    %591 = vrot.lane.b32.xlu0 %v589, 32
    %v592 = vpop.permute.xlu0 %591
    %v594 = vadd.f32 %v584, %v592
    %v595 = vtanh.pop %v594
    %597 = vrot.lane.b32.xlu0 %v595, 64
    %v598 = vpop.permute.xlu0 %597
    %v600 = vmul.f32 %v582, %v598
    %602 = vrot.lane.b32.xlu0 %v600, 32
    %v603 = vpop.permute.xlu0 %602
    %s605 = scalar_lea.vmem [#allocation2], 6
    %606 = vst.msk [vmem:[%s605] sm:$0x3] %vm290, %v603
    %s607 = scalar_lea.vmem [#allocation4], 8
    %v608 = vld [vmem:[%s607] sm:$0x3]
    %v609 = vsel %vm183, %v603, 0
    %611 = vmatprep.subr.mxu0 0.0
    %612 = vmatpush1.msra.mxu0 %v176
    %613 = vmatprep.subr.mxu0 0.0
    %614 = vmatpush1.msra.mxu0 %v177
    %615 = vmatprep.subr.mxu0 0.0
    %616 = vmatpush1.msra.mxu0 %v178
    %617 = vmatprep.subr.mxu0 0.0
    %618 = vmatpush1.msra.mxu0 %v179
    %619 = vmatprep.subr.mxu0 0.0
    %620 = vmatpush1.msra.mxu0 0.0
    %621 = vmatprep.subr.mxu0 0.0
    %622 = vmatpush1.msra.mxu0 0.0
    %623 = vmatprep.subr.mxu0 0.0
    %624 = vmatpush1.msra.mxu0 0.0
    %625 = vmatprep.subr.mxu0 0.0
    %626 = vmatpush1.msra.mxu0 0.0
    %627 = vmatprep.subr.mxu0 0.0
    %628 = vmatpush1.msra.mxu0 0.0
    %629 = vmatprep.subr.mxu0 0.0
    %630 = vmatpush1.msra.mxu0 0.0
    %631 = vmatprep.subr.mxu0 0.0
    %632 = vmatpush1.msra.mxu0 0.0
    %633 = vmatprep.subr.mxu0 0.0
    %634 = vmatpush1.msra.mxu0 0.0
    %635 = vmatprep.subr.mxu0 0.0
    %636 = vmatpush1.msra.mxu0 0.0
    %637 = vmatprep.subr.mxu0 0.0
    %638 = vmatpush1.msra.mxu0 0.0
    %639 = vmatprep.subr.mxu0 0.0
    %640 = vmatpush1.msra.mxu0 0.0
    %641 = vmatprep.subr.mxu0 0.0
    %642 = vmatpush1.msra.mxu0 0.0
    %643 = vmatprep.subr.mxu0 0.0
    %644 = vmatpush1.msra.mxu0 0.0
    %645 = vmatprep.subr.mxu0 0.0
    %646 = vmatpush1.msra.mxu0 0.0
    %647 = vmatprep.subr.mxu0 0.0
    %648 = vmatpush1.msra.mxu0 0.0
    %649 = vmatprep.subr.mxu0 0.0
    %650 = vmatpush1.msra.mxu0 0.0
    %651 = vmatprep.subr.mxu0 0.0
    %652 = vmatpush1.msra.mxu0 0.0
    %653 = vmatprep.subr.mxu0 0.0
    %654 = vmatpush1.msra.mxu0 0.0
    %655 = vmatprep.subr.mxu0 0.0
    %656 = vmatpush1.msra.mxu0 0.0
    %657 = vmatprep.subr.mxu0 0.0
    %658 = vmatpush1.msra.mxu0 0.0
    %659 = vmatprep.subr.mxu0 0.0
    %660 = vmatpush1.msra.mxu0 0.0
    %661 = vmatprep.subr.mxu0 0.0
    %662 = vmatpush1.msra.mxu0 0.0
    %663 = vmatprep.subr.mxu0 0.0
    %664 = vmatpush1.msra.mxu0 0.0
    %665 = vmatprep.subr.mxu0 0.0
    %666 = vmatpush1.msra.mxu0 0.0
    %667 = vmatprep.subr.mxu0 0.0
    %668 = vmatpush1.msra.mxu0 0.0
    %669 = vmatprep.subr.mxu0 0.0
    %670 = vmatpush1.msra.mxu0 0.0
    %671 = vmatprep.subr.mxu0 0.0
    %672 = vmatpush1.msra.mxu0 0.0
    %673 = vmatprep.subr.mxu0 0.0
    %674 = vmatpush1.msra.mxu0 0.0
    %675 = vmatprep.mubr.f32.mxu0 0.0
    %676 = vmatmul.mubr.f32.gmra.mrb[0].mxu0 %v609
    %v677 = vpop.f32.mrb[0].mxu0
    %v678 = vadd.f32 0.0, %v677
    %v679 = vpop.f32.mrb[0].mxu0
    %680 = vdwg.mxu0
    %v681 = vadd.f32 %v608, %v678
    %v682 = vxor.u32 %v681, 2147483648
    %v683 = vmul.f32 %v682, 1.442695
    %v684 = vpow.pop %v683
    %v685 = vadd.f32 %v684, 1.0
    %v686 = vrcp.pop %v685
    %v687 = vmul.f32 1.0, %v686
    %v688 = vtanh.pop %v681
    %v689 = vmul.f32 %v687, %v594
    %691 = vrot.lane.b32.xlu0 %v688, 64
    %v692 = vpop.permute.xlu0 %691
    %v694 = vmul.f32 %v687, %v692
    %696 = vrot.lane.b32.xlu0 %v694, 32
    %v697 = vpop.permute.xlu0 %696
    %v699 = vadd.f32 %v689, %v697
    %v700 = vtanh.pop %v699
    %702 = vrot.lane.b32.xlu0 %v700, 64
    %v703 = vpop.permute.xlu0 %702
    %v705 = vmul.f32 %v687, %v703
    %707 = vrot.lane.b32.xlu0 %v705, 32
    %v708 = vpop.permute.xlu0 %707
    %s710 = scalar_lea.vmem [#allocation2], 8
    %711 = vst.msk [vmem:[%s710] sm:$0x3] %vm290, %v708
    %s712 = scalar_lea.vmem [#allocation4], 10
    %v713 = vld [vmem:[%s712] sm:$0x3]
    %v714 = vsel %vm183, %v708, 0
    %716 = vmatprep.subr.mxu0 0.0
    %717 = vmatpush1.msra.mxu0 %v176
    %718 = vmatprep.subr.mxu0 0.0
    %719 = vmatpush1.msra.mxu0 %v177
    %720 = vmatprep.subr.mxu0 0.0
    %721 = vmatpush1.msra.mxu0 %v178
    %722 = vmatprep.subr.mxu0 0.0
    %723 = vmatpush1.msra.mxu0 %v179
    %724 = vmatprep.subr.mxu0 0.0
    %725 = vmatpush1.msra.mxu0 0.0
    %726 = vmatprep.subr.mxu0 0.0
    %727 = vmatpush1.msra.mxu0 0.0
    %728 = vmatprep.subr.mxu0 0.0
    %729 = vmatpush1.msra.mxu0 0.0
    %730 = vmatprep.subr.mxu0 0.0
    %731 = vmatpush1.msra.mxu0 0.0
    %732 = vmatprep.subr.mxu0 0.0
    %733 = vmatpush1.msra.mxu0 0.0
    %734 = vmatprep.subr.mxu0 0.0
    %735 = vmatpush1.msra.mxu0 0.0
    %736 = vmatprep.subr.mxu0 0.0
    %737 = vmatpush1.msra.mxu0 0.0
    %738 = vmatprep.subr.mxu0 0.0
    %739 = vmatpush1.msra.mxu0 0.0
    %740 = vmatprep.subr.mxu0 0.0
    %741 = vmatpush1.msra.mxu0 0.0
    %742 = vmatprep.subr.mxu0 0.0
    %743 = vmatpush1.msra.mxu0 0.0
    %744 = vmatprep.subr.mxu0 0.0
    %745 = vmatpush1.msra.mxu0 0.0
    %746 = vmatprep.subr.mxu0 0.0
    %747 = vmatpush1.msra.mxu0 0.0
    %748 = vmatprep.subr.mxu0 0.0
    %749 = vmatpush1.msra.mxu0 0.0
    %750 = vmatprep.subr.mxu0 0.0
    %751 = vmatpush1.msra.mxu0 0.0
    %752 = vmatprep.subr.mxu0 0.0
    %753 = vmatpush1.msra.mxu0 0.0
    %754 = vmatprep.subr.mxu0 0.0
    %755 = vmatpush1.msra.mxu0 0.0
    %756 = vmatprep.subr.mxu0 0.0
    %757 = vmatpush1.msra.mxu0 0.0
    %758 = vmatprep.subr.mxu0 0.0
    %759 = vmatpush1.msra.mxu0 0.0
    %760 = vmatprep.subr.mxu0 0.0
    %761 = vmatpush1.msra.mxu0 0.0
    %762 = vmatprep.subr.mxu0 0.0
    %763 = vmatpush1.msra.mxu0 0.0
    %764 = vmatprep.subr.mxu0 0.0
    %765 = vmatpush1.msra.mxu0 0.0
    %766 = vmatprep.subr.mxu0 0.0
    %767 = vmatpush1.msra.mxu0 0.0
    %768 = vmatprep.subr.mxu0 0.0
    %769 = vmatpush1.msra.mxu0 0.0
    %770 = vmatprep.subr.mxu0 0.0
    %771 = vmatpush1.msra.mxu0 0.0
    %772 = vmatprep.subr.mxu0 0.0
    %773 = vmatpush1.msra.mxu0 0.0
    %774 = vmatprep.subr.mxu0 0.0
    %775 = vmatpush1.msra.mxu0 0.0
    %776 = vmatprep.subr.mxu0 0.0
    %777 = vmatpush1.msra.mxu0 0.0
    %778 = vmatprep.subr.mxu0 0.0
    %779 = vmatpush1.msra.mxu0 0.0
    %780 = vmatprep.mubr.f32.mxu0 0.0
    %781 = vmatmul.mubr.f32.gmra.mrb[0].mxu0 %v714
    %v782 = vpop.f32.mrb[0].mxu0
    %v783 = vadd.f32 0.0, %v782
    %v784 = vpop.f32.mrb[0].mxu0
    %785 = vdwg.mxu0
    %v786 = vadd.f32 %v713, %v783
    %v787 = vxor.u32 %v786, 2147483648
    %v788 = vmul.f32 %v787, 1.442695
    %v789 = vpow.pop %v788
    %v790 = vadd.f32 %v789, 1.0
    %v791 = vrcp.pop %v790
    %v792 = vmul.f32 1.0, %v791
    %v793 = vtanh.pop %v786
    %v794 = vmul.f32 %v792, %v699
    %796 = vrot.lane.b32.xlu0 %v793, 64
    %v797 = vpop.permute.xlu0 %796
    %v799 = vmul.f32 %v792, %v797
    %801 = vrot.lane.b32.xlu0 %v799, 32
    %v802 = vpop.permute.xlu0 %801
    %v804 = vadd.f32 %v794, %v802
    %v805 = vtanh.pop %v804
    %807 = vrot.lane.b32.xlu0 %v805, 64
    %v808 = vpop.permute.xlu0 %807
    %v810 = vmul.f32 %v792, %v808
    %812 = vrot.lane.b32.xlu0 %v810, 32
    %v813 = vpop.permute.xlu0 %812
    %s815 = scalar_lea.vmem [#allocation2], 10
    %816 = vst.msk [vmem:[%s815] sm:$0x3] %vm290, %v813
    %s817 = scalar_lea.vmem [#allocation4], 12
    %v818 = vld [vmem:[%s817] sm:$0x3]
    %v819 = vsel %vm183, %v813, 0
    %821 = vmatprep.subr.mxu0 0.0
    %822 = vmatpush1.msra.mxu0 %v176
    %823 = vmatprep.subr.mxu0 0.0
    %824 = vmatpush1.msra.mxu0 %v177
    %825 = vmatprep.subr.mxu0 0.0
    %826 = vmatpush1.msra.mxu0 %v178
    %827 = vmatprep.subr.mxu0 0.0
    %828 = vmatpush1.msra.mxu0 %v179
    %829 = vmatprep.subr.mxu0 0.0
    %830 = vmatpush1.msra.mxu0 0.0
    %831 = vmatprep.subr.mxu0 0.0
    %832 = vmatpush1.msra.mxu0 0.0
    %833 = vmatprep.subr.mxu0 0.0
    %834 = vmatpush1.msra.mxu0 0.0
    %835 = vmatprep.subr.mxu0 0.0
    %836 = vmatpush1.msra.mxu0 0.0
    %837 = vmatprep.subr.mxu0 0.0
    %838 = vmatpush1.msra.mxu0 0.0
    %839 = vmatprep.subr.mxu0 0.0
    %840 = vmatpush1.msra.mxu0 0.0
    %841 = vmatprep.subr.mxu0 0.0
    %842 = vmatpush1.msra.mxu0 0.0
    %843 = vmatprep.subr.mxu0 0.0
    %844 = vmatpush1.msra.mxu0 0.0
    %845 = vmatprep.subr.mxu0 0.0
    %846 = vmatpush1.msra.mxu0 0.0
    %847 = vmatprep.subr.mxu0 0.0
    %848 = vmatpush1.msra.mxu0 0.0
    %849 = vmatprep.subr.mxu0 0.0
    %850 = vmatpush1.msra.mxu0 0.0
    %851 = vmatprep.subr.mxu0 0.0
    %852 = vmatpush1.msra.mxu0 0.0
    %853 = vmatprep.subr.mxu0 0.0
    %854 = vmatpush1.msra.mxu0 0.0
    %855 = vmatprep.subr.mxu0 0.0
    %856 = vmatpush1.msra.mxu0 0.0
    %857 = vmatprep.subr.mxu0 0.0
    %858 = vmatpush1.msra.mxu0 0.0
    %859 = vmatprep.subr.mxu0 0.0
    %860 = vmatpush1.msra.mxu0 0.0
    %861 = vmatprep.subr.mxu0 0.0
    %862 = vmatpush1.msra.mxu0 0.0
    %863 = vmatprep.subr.mxu0 0.0
    %864 = vmatpush1.msra.mxu0 0.0
    %865 = vmatprep.subr.mxu0 0.0
    %866 = vmatpush1.msra.mxu0 0.0
    %867 = vmatprep.subr.mxu0 0.0
    %868 = vmatpush1.msra.mxu0 0.0
    %869 = vmatprep.subr.mxu0 0.0
    %870 = vmatpush1.msra.mxu0 0.0
    %871 = vmatprep.subr.mxu0 0.0
    %872 = vmatpush1.msra.mxu0 0.0
    %873 = vmatprep.subr.mxu0 0.0
    %874 = vmatpush1.msra.mxu0 0.0
    %875 = vmatprep.subr.mxu0 0.0
    %876 = vmatpush1.msra.mxu0 0.0
    %877 = vmatprep.subr.mxu0 0.0
    %878 = vmatpush1.msra.mxu0 0.0
    %879 = vmatprep.subr.mxu0 0.0
    %880 = vmatpush1.msra.mxu0 0.0
    %881 = vmatprep.subr.mxu0 0.0
    %882 = vmatpush1.msra.mxu0 0.0
    %883 = vmatprep.subr.mxu0 0.0
    %884 = vmatpush1.msra.mxu0 0.0
    %885 = vmatprep.mubr.f32.mxu0 0.0
    %886 = vmatmul.mubr.f32.gmra.mrb[0].mxu0 %v819
    %v887 = vpop.f32.mrb[0].mxu0
    %v888 = vadd.f32 0.0, %v887
    %v889 = vpop.f32.mrb[0].mxu0
    %890 = vdwg.mxu0
    %v891 = vadd.f32 %v818, %v888
    %v892 = vxor.u32 %v891, 2147483648
    %v893 = vmul.f32 %v892, 1.442695
    %v894 = vpow.pop %v893
    %v895 = vadd.f32 %v894, 1.0
    %v896 = vrcp.pop %v895
    %v897 = vmul.f32 1.0, %v896
    %v898 = vtanh.pop %v891
    %v899 = vmul.f32 %v897, %v804
    %901 = vrot.lane.b32.xlu0 %v898, 64
    %v902 = vpop.permute.xlu0 %901
    %v904 = vmul.f32 %v897, %v902
    %906 = vrot.lane.b32.xlu0 %v904, 32
    %v907 = vpop.permute.xlu0 %906
    %v909 = vadd.f32 %v899, %v907
    %v910 = vtanh.pop %v909
    %912 = vrot.lane.b32.xlu0 %v910, 64
    %v913 = vpop.permute.xlu0 %912
    %v915 = vmul.f32 %v897, %v913
    %917 = vrot.lane.b32.xlu0 %v915, 32
    %v918 = vpop.permute.xlu0 %917
    %s920 = scalar_lea.vmem [#allocation2], 12
    %921 = vst.msk [vmem:[%s920] sm:$0x3] %vm290, %v918
    %s922 = scalar_lea.vmem [#allocation4], 14
    %v923 = vld [vmem:[%s922] sm:$0x3]
    %v924 = vsel %vm183, %v918, 0
    %926 = vmatprep.subr.mxu0 0.0
    %927 = vmatpush1.msra.mxu0 %v176
    %928 = vmatprep.subr.mxu0 0.0
    %929 = vmatpush1.msra.mxu0 %v177
    %930 = vmatprep.subr.mxu0 0.0
    %931 = vmatpush1.msra.mxu0 %v178
    %932 = vmatprep.subr.mxu0 0.0
    %933 = vmatpush1.msra.mxu0 %v179
    %934 = vmatprep.subr.mxu0 0.0
    %935 = vmatpush1.msra.mxu0 0.0
    %936 = vmatprep.subr.mxu0 0.0
    %937 = vmatpush1.msra.mxu0 0.0
    %938 = vmatprep.subr.mxu0 0.0
    %939 = vmatpush1.msra.mxu0 0.0
    %940 = vmatprep.subr.mxu0 0.0
    %941 = vmatpush1.msra.mxu0 0.0
    %942 = vmatprep.subr.mxu0 0.0
    %943 = vmatpush1.msra.mxu0 0.0
    %944 = vmatprep.subr.mxu0 0.0
    %945 = vmatpush1.msra.mxu0 0.0
    %946 = vmatprep.subr.mxu0 0.0
    %947 = vmatpush1.msra.mxu0 0.0
    %948 = vmatprep.subr.mxu0 0.0
    %949 = vmatpush1.msra.mxu0 0.0
    %950 = vmatprep.subr.mxu0 0.0
    %951 = vmatpush1.msra.mxu0 0.0
    %952 = vmatprep.subr.mxu0 0.0
    %953 = vmatpush1.msra.mxu0 0.0
    %954 = vmatprep.subr.mxu0 0.0
    %955 = vmatpush1.msra.mxu0 0.0
    %956 = vmatprep.subr.mxu0 0.0
    %957 = vmatpush1.msra.mxu0 0.0
    %958 = vmatprep.subr.mxu0 0.0
    %959 = vmatpush1.msra.mxu0 0.0
    %960 = vmatprep.subr.mxu0 0.0
    %961 = vmatpush1.msra.mxu0 0.0
    %962 = vmatprep.subr.mxu0 0.0
    %963 = vmatpush1.msra.mxu0 0.0
    %964 = vmatprep.subr.mxu0 0.0
    %965 = vmatpush1.msra.mxu0 0.0
    %966 = vmatprep.subr.mxu0 0.0
    %967 = vmatpush1.msra.mxu0 0.0
    %968 = vmatprep.subr.mxu0 0.0
    %969 = vmatpush1.msra.mxu0 0.0
    %970 = vmatprep.subr.mxu0 0.0
    %971 = vmatpush1.msra.mxu0 0.0
    %972 = vmatprep.subr.mxu0 0.0
    %973 = vmatpush1.msra.mxu0 0.0
    %974 = vmatprep.subr.mxu0 0.0
    %975 = vmatpush1.msra.mxu0 0.0
    %976 = vmatprep.subr.mxu0 0.0
    %977 = vmatpush1.msra.mxu0 0.0
    %978 = vmatprep.subr.mxu0 0.0
    %979 = vmatpush1.msra.mxu0 0.0
    %980 = vmatprep.subr.mxu0 0.0
    %981 = vmatpush1.msra.mxu0 0.0
    %982 = vmatprep.subr.mxu0 0.0
    %983 = vmatpush1.msra.mxu0 0.0
    %984 = vmatprep.subr.mxu0 0.0
    %985 = vmatpush1.msra.mxu0 0.0
    %986 = vmatprep.subr.mxu0 0.0
    %987 = vmatpush1.msra.mxu0 0.0
    %988 = vmatprep.subr.mxu0 0.0
    %989 = vmatpush1.msra.mxu0 0.0
    %990 = vmatprep.mubr.f32.mxu0 0.0
    %991 = vmatmul.mubr.f32.gmra.mrb[0].mxu0 %v924
    %v992 = vpop.f32.mrb[0].mxu0
    %v993 = vadd.f32 0.0, %v992
    %v994 = vpop.f32.mrb[0].mxu0
    %995 = vdwg.mxu0
    %v996 = vadd.f32 %v923, %v993
    %v997 = vxor.u32 %v996, 2147483648
    %v998 = vmul.f32 %v997, 1.442695
    %v999 = vpow.pop %v998
    %v1000 = vadd.f32 %v999, 1.0
    %v1001 = vrcp.pop %v1000
    %v1002 = vmul.f32 1.0, %v1001
    %v1003 = vtanh.pop %v996
    %v1004 = vmul.f32 %v1002, %v909
    %1006 = vrot.lane.b32.xlu0 %v1003, 64
    %v1007 = vpop.permute.xlu0 %1006
    %v1009 = vmul.f32 %v1002, %v1007
    %1011 = vrot.lane.b32.xlu0 %v1009, 32
    %v1012 = vpop.permute.xlu0 %1011
    %v1014 = vadd.f32 %v1004, %v1012
    %v1015 = vtanh.pop %v1014
    %1017 = vrot.lane.b32.xlu0 %v1015, 64
    %v1018 = vpop.permute.xlu0 %1017
    %v1020 = vmul.f32 %v1002, %v1018
    %1022 = vrot.lane.b32.xlu0 %v1020, 32
    %v1023 = vpop.permute.xlu0 %1022
    %s1025 = scalar_lea.vmem [#allocation2], 14
    %1026 = vst.msk [vmem:[%s1025] sm:$0x3] %vm290, %v1023
    %1027 = vst.msk [vmem:[#allocation14] sm:$0x3] %vm290, %v1023
    %1029 = vrot.lane.b32.xlu0 %v1014, 96
    %v1030 = vpop.permute.xlu0 %1029
    %1032 = vst.msk [vmem:[#allocation16] sm:$0x3] %vm290, %v1030
    %v1033 = vld [vmem:[%s4] sm:$0xff]
    %v1034 = vld [vmem:[%s4 + $0x8] sm:$0xff]
    %v1035 = vld [vmem:[%s4 + $0x10] sm:$0xff]
    %v1036 = vld [vmem:[%s4 + $0x18] sm:$0xff]
    %s1037 = scalar_lea.vmem [#allocation10], 32
    %v1038 = vld [vmem:[%s1037] sm:$0xff]
    %v1039 = vld [vmem:[%s1037 + $0x8] sm:$0xff]
    %v1040 = vld [vmem:[%s1037 + $0x10] sm:$0xff]
    %v1041 = vld [vmem:[%s1037 + $0x18] sm:$0xff]
    %v1042 = vld [vmem:[#allocation2] sm:$0x3]
    %v1043 = vld [vmem:[#allocation2 + $0x2] sm:$0x3]
    %v1044 = vld [vmem:[#allocation2 + $0x4] sm:$0x3]
    %v1045 = vld [vmem:[#allocation2 + $0x6] sm:$0x3]
    %v1046 = vld [vmem:[#allocation2 + $0x8] sm:$0x3]
    %v1047 = vld [vmem:[#allocation2 + $0xa] sm:$0x3]
    %v1048 = vld [vmem:[#allocation2 + $0xc] sm:$0x3]
    %v1049 = vld [vmem:[#allocation2 + $0xe] sm:$0x3]
    %v1050 = vld [vmem:[%s6 + $0x1] sm:$0x1]
    %v1051 = vlaneseq
    %v1052 = vshrl.u32 %v1051, 7
    %v1053 = vsub.s32 0, %v1052
    %v1054 = vrot.slane %v1050, %v1053
    %v1063 = vcombine.low %v1042, %v1043
    %v1064 = vcombine.low %v1044, %v1045
    %v1066 = vunpack.c.l.s4 1983009808
    %v1067 = vunpack.c.0.s8 %v1066
    %v1068 = vlaneseq
    %v1069 = vshrl.u32 %v1068, 7
    %v1070 = vsub.s32 %v1067, %v1069
    %v1071 = vrot.slane %v1063, %v1070
    %v1073 = vunpack.c.l.s4 1983009808
    %v1074 = vunpack.c.0.s8 %v1073
    %v1075 = vlaneseq
    %v1076 = vshrl.u32 %v1075, 7
    %v1077 = vsub.s32 %v1074, %v1076
    %v1078 = vrot.slane %v1064, %v1077
    %v1079 = vcombine.low %v1071, %v1078
    %v1080 = vcombine.low %v1046, %v1047
    %v1081 = vcombine.low %v1048, %v1049
    %v1083 = vunpack.c.l.s4 1983009808
    %v1084 = vunpack.c.0.s8 %v1083
    %v1085 = vlaneseq
    %v1086 = vshrl.u32 %v1085, 7
    %v1087 = vsub.s32 %v1084, %v1086
    %v1088 = vrot.slane %v1080, %v1087
    %v1090 = vunpack.c.l.s4 1983009808
    %v1091 = vunpack.c.0.s8 %v1090
    %v1092 = vlaneseq
    %v1093 = vshrl.u32 %v1092, 7
    %v1094 = vsub.s32 %v1091, %v1093
    %v1095 = vrot.slane %v1081, %v1094
    %v1096 = vcombine.low %v1088, %v1095
    %v1097 = vsel %vm183, %v1079, 0
    %v1099 = vsel %vm183, %v1096, 0
    %1101 = vmatprep.subr.mxu0 0.0
    %1102 = vmatpush1.msra.mxu0 %v1033
    %1103 = vmatprep.subr.mxu0 0.0
    %1104 = vmatpush1.msra.mxu0 %v1034
    %1105 = vmatprep.subr.mxu0 0.0
    %1106 = vmatpush1.msra.mxu0 %v1035
    %1107 = vmatprep.subr.mxu0 0.0
    %1108 = vmatpush1.msra.mxu0 %v1036
    %1109 = vmatprep.subr.mxu0 0.0
    %1110 = vmatpush1.msra.mxu0 0.0
    %1111 = vmatprep.subr.mxu0 0.0
    %1112 = vmatpush1.msra.mxu0 0.0
    %1113 = vmatprep.subr.mxu0 0.0
    %1114 = vmatpush1.msra.mxu0 0.0
    %1115 = vmatprep.subr.mxu0 0.0
    %1116 = vmatpush1.msra.mxu0 0.0
    %1117 = vmatprep.subr.mxu0 0.0
    %1118 = vmatpush1.msra.mxu0 0.0
    %1119 = vmatprep.subr.mxu0 0.0
    %1120 = vmatpush1.msra.mxu0 0.0
    %1121 = vmatprep.subr.mxu0 0.0
    %1122 = vmatpush1.msra.mxu0 0.0
    %1123 = vmatprep.subr.mxu0 0.0
    %1124 = vmatpush1.msra.mxu0 0.0
    %1125 = vmatprep.subr.mxu0 0.0
    %1126 = vmatpush1.msra.mxu0 0.0
    %1127 = vmatprep.subr.mxu0 0.0
    %1128 = vmatpush1.msra.mxu0 0.0
    %1129 = vmatprep.subr.mxu0 0.0
    %1130 = vmatpush1.msra.mxu0 0.0
    %1131 = vmatprep.subr.mxu0 0.0
    %1132 = vmatpush1.msra.mxu0 0.0
    %1133 = vmatprep.subr.mxu0 0.0
    %1134 = vmatpush1.msra.mxu0 0.0
    %1135 = vmatprep.subr.mxu0 0.0
    %1136 = vmatpush1.msra.mxu0 0.0
    %1137 = vmatprep.subr.mxu0 0.0
    %1138 = vmatpush1.msra.mxu0 0.0
    %1139 = vmatprep.subr.mxu0 0.0
    %1140 = vmatpush1.msra.mxu0 0.0
    %1141 = vmatprep.subr.mxu0 0.0
    %1142 = vmatpush1.msra.mxu0 0.0
    %1143 = vmatprep.subr.mxu0 0.0
    %1144 = vmatpush1.msra.mxu0 0.0
    %1145 = vmatprep.subr.mxu0 0.0
    %1146 = vmatpush1.msra.mxu0 0.0
    %1147 = vmatprep.subr.mxu0 0.0
    %1148 = vmatpush1.msra.mxu0 0.0
    %1149 = vmatprep.subr.mxu0 0.0
    %1150 = vmatpush1.msra.mxu0 0.0
    %1151 = vmatprep.subr.mxu0 0.0
    %1152 = vmatpush1.msra.mxu0 0.0
    %1153 = vmatprep.subr.mxu0 0.0
    %1154 = vmatpush1.msra.mxu0 0.0
    %1155 = vmatprep.subr.mxu0 0.0
    %1156 = vmatpush1.msra.mxu0 0.0
    %1157 = vmatprep.subr.mxu0 0.0
    %1158 = vmatpush1.msra.mxu0 0.0
    %1159 = vmatprep.subr.mxu0 0.0
    %1160 = vmatpush1.msra.mxu0 0.0
    %1161 = vmatprep.subr.mxu0 0.0
    %1162 = vmatpush1.msra.mxu0 0.0
    %1163 = vmatprep.subr.mxu0 0.0
    %1164 = vmatpush1.msra.mxu0 0.0
    %1165 = vmatprep.mubr.f32.mxu0 0.0
    %1166 = vmatmul.mubr.f32.gmra.mrb[0].mxu0 %v1097
    %v1167 = vpop.f32.mrb[0].mxu0
    %v1168 = vadd.f32 %v1054, %v1167
    %v1169 = vpop.f32.mrb[0].mxu0
    %1170 = vmatprep.mubr.f32.mxu0 0.0
    %1171 = vmatmul.mubr.f32.gmra.mrb[0].mxu0 %v1099
    %v1172 = vpop.f32.mrb[0].mxu0
    %v1173 = vadd.f32 %v1054, %v1172
    %v1174 = vpop.f32.mrb[0].mxu0
    %1175 = vdwg.mxu0
    %v1178 = vcombine.high %v1168, %v1168
    %v1180 = vunpack.c.l.s4 1983009808
    %v1181 = vunpack.c.0.s8 %v1180
    %v1182 = vlaneseq
    %v1183 = vshrl.u32 %v1182, 7
    %v1184 = vsub.s32 %v1181, %v1183
    %v1185 = vrot.slane %v1168, %v1184
    %v1187 = vunpack.c.l.s4 1983009808
    %v1188 = vunpack.c.0.s8 %v1187
    %v1189 = vlaneseq
    %v1190 = vshrl.u32 %v1189, 7
    %v1191 = vsub.s32 %v1188, %v1190
    %v1192 = vrot.slane %v1178, %v1191
    %v1193 = vcombine.high %v1185, %v1185
    %v1194 = vcombine.high %v1192, %v1192
    %v1195 = vcombine.high %v1173, %v1173
    %v1197 = vunpack.c.l.s4 1983009808
    %v1198 = vunpack.c.0.s8 %v1197
    %v1199 = vlaneseq
    %v1200 = vshrl.u32 %v1199, 7
    %v1201 = vsub.s32 %v1198, %v1200
    %v1202 = vrot.slane %v1173, %v1201
    %v1204 = vunpack.c.l.s4 1983009808
    %v1205 = vunpack.c.0.s8 %v1204
    %v1206 = vlaneseq
    %v1207 = vshrl.u32 %v1206, 7
    %v1208 = vsub.s32 %v1205, %v1207
    %v1209 = vrot.slane %v1195, %v1208
    %v1210 = vcombine.high %v1202, %v1202
    %v1211 = vcombine.high %v1209, %v1209
    %1220 = vst [vmem:[#allocation4] sm:$0x3] %v1185
    %1221 = vst [vmem:[#allocation4 + $0x2] sm:$0x3] %v1193
    %1222 = vst [vmem:[#allocation4 + $0x4] sm:$0x3] %v1192
    %1223 = vst [vmem:[#allocation4 + $0x6] sm:$0x3] %v1194
    %1224 = vst [vmem:[#allocation4 + $0x8] sm:$0x3] %v1202
    %1225 = vst [vmem:[#allocation4 + $0xa] sm:$0x3] %v1210
    %1226 = vst [vmem:[#allocation4 + $0xc] sm:$0x3] %v1209
    %1227 = vst [vmem:[#allocation4 + $0xe] sm:$0x3] %v1211
    %s1228 = scalar_lea.vmem [#allocation5], 2
    %v1229 = vld [vmem:[%s1228] sm:$0x3]
    %s1230 = scalar_lea.vmem [#allocation8], 2
    %v1231 = vld [vmem:[%s1230] sm:$0x3]
    %v1232 = vld [vmem:[#allocation4] sm:$0x3]
    %v1234 = vsel %vm183, %v1229, 0
    %1236 = vmatprep.subr.mxu0 0.0
    %1237 = vmatpush1.msra.mxu0 %v1038
    %1238 = vmatprep.subr.mxu0 0.0
    %1239 = vmatpush1.msra.mxu0 %v1039
    %1240 = vmatprep.subr.mxu0 0.0
    %1241 = vmatpush1.msra.mxu0 %v1040
    %1242 = vmatprep.subr.mxu0 0.0
    %1243 = vmatpush1.msra.mxu0 %v1041
    %1244 = vmatprep.subr.mxu0 0.0
    %1245 = vmatpush1.msra.mxu0 0.0
    %1246 = vmatprep.subr.mxu0 0.0
    %1247 = vmatpush1.msra.mxu0 0.0
    %1248 = vmatprep.subr.mxu0 0.0
    %1249 = vmatpush1.msra.mxu0 0.0
    %1250 = vmatprep.subr.mxu0 0.0
    %1251 = vmatpush1.msra.mxu0 0.0
    %1252 = vmatprep.subr.mxu0 0.0
    %1253 = vmatpush1.msra.mxu0 0.0
    %1254 = vmatprep.subr.mxu0 0.0
    %1255 = vmatpush1.msra.mxu0 0.0
    %1256 = vmatprep.subr.mxu0 0.0
    %1257 = vmatpush1.msra.mxu0 0.0
    %1258 = vmatprep.subr.mxu0 0.0
    %1259 = vmatpush1.msra.mxu0 0.0
    %1260 = vmatprep.subr.mxu0 0.0
    %1261 = vmatpush1.msra.mxu0 0.0
    %1262 = vmatprep.subr.mxu0 0.0
    %1263 = vmatpush1.msra.mxu0 0.0
    %1264 = vmatprep.subr.mxu0 0.0
    %1265 = vmatpush1.msra.mxu0 0.0
    %1266 = vmatprep.subr.mxu0 0.0
    %1267 = vmatpush1.msra.mxu0 0.0
    %1268 = vmatprep.subr.mxu0 0.0
    %1269 = vmatpush1.msra.mxu0 0.0
    %1270 = vmatprep.subr.mxu0 0.0
    %1271 = vmatpush1.msra.mxu0 0.0
    %1272 = vmatprep.subr.mxu0 0.0
    %1273 = vmatpush1.msra.mxu0 0.0
    %1274 = vmatprep.subr.mxu0 0.0
    %1275 = vmatpush1.msra.mxu0 0.0
    %1276 = vmatprep.subr.mxu0 0.0
    %1277 = vmatpush1.msra.mxu0 0.0
    %1278 = vmatprep.subr.mxu0 0.0
    %1279 = vmatpush1.msra.mxu0 0.0
    %1280 = vmatprep.subr.mxu0 0.0
    %1281 = vmatpush1.msra.mxu0 0.0
    %1282 = vmatprep.subr.mxu0 0.0
    %1283 = vmatpush1.msra.mxu0 0.0
    %1284 = vmatprep.subr.mxu0 0.0
    %1285 = vmatpush1.msra.mxu0 0.0
    %1286 = vmatprep.subr.mxu0 0.0
    %1287 = vmatpush1.msra.mxu0 0.0
    %1288 = vmatprep.subr.mxu0 0.0
    %1289 = vmatpush1.msra.mxu0 0.0
    %1290 = vmatprep.subr.mxu0 0.0
    %1291 = vmatpush1.msra.mxu0 0.0
    %1292 = vmatprep.subr.mxu0 0.0
    %1293 = vmatpush1.msra.mxu0 0.0
    %1294 = vmatprep.subr.mxu0 0.0
    %1295 = vmatpush1.msra.mxu0 0.0
    %1296 = vmatprep.subr.mxu0 0.0
    %1297 = vmatpush1.msra.mxu0 0.0
    %1298 = vmatprep.subr.mxu0 0.0
    %1299 = vmatpush1.msra.mxu0 0.0
    %1300 = vmatprep.mubr.f32.mxu0 0.0
    %1301 = vmatmul.mubr.f32.gmra.mrb[0].mxu0 %v1234
    %v1302 = vpop.f32.mrb[0].mxu0
    %v1303 = vadd.f32 0.0, %v1302
    %v1304 = vpop.f32.mrb[0].mxu0
    %1305 = vdwg.mxu0
    %v1306 = vadd.f32 %v1232, %v1303
    %v1307 = vxor.u32 %v1306, 2147483648
    %v1308 = vmul.f32 %v1307, 1.442695
    %v1309 = vpow.pop %v1308
    %v1310 = vadd.f32 %v1309, 1.0
    %v1311 = vrcp.pop %v1310
    %v1312 = vmul.f32 1.0, %v1311
    %v1313 = vtanh.pop %v1306
    %1315 = vrot.lane.b32.xlu0 %v1231, 32
    %v1316 = vpop.permute.xlu0 %1315
    %v1318 = vmul.f32 %v1312, %v1316
    %1320 = vrot.lane.b32.xlu0 %v1313, 64
    %v1321 = vpop.permute.xlu0 %1320
    %v1323 = vmul.f32 %v1312, %v1321
    %1325 = vrot.lane.b32.xlu0 %v1323, 32
    %v1326 = vpop.permute.xlu0 %1325
    %v1328 = vadd.f32 %v1318, %v1326
    %v1329 = vtanh.pop %v1328
    %1331 = vrot.lane.b32.xlu0 %v1329, 64
    %v1332 = vpop.permute.xlu0 %1331
    %v1334 = vmul.f32 %v1312, %v1332
    %1336 = vrot.lane.b32.xlu0 %v1334, 32
    %v1337 = vpop.permute.xlu0 %1336
    %1339 = vst.msk [vmem:[#allocation3] sm:$0x3] %vm290, %v1337
    %v1340 = vld [vmem:[%s292] sm:$0x3]
    %v1341 = vsel %vm183, %v1337, 0
    %1343 = vmatprep.subr.mxu0 0.0
    %1344 = vmatpush1.msra.mxu0 %v1038
    %1345 = vmatprep.subr.mxu0 0.0
    %1346 = vmatpush1.msra.mxu0 %v1039
    %1347 = vmatprep.subr.mxu0 0.0
    %1348 = vmatpush1.msra.mxu0 %v1040
    %1349 = vmatprep.subr.mxu0 0.0
    %1350 = vmatpush1.msra.mxu0 %v1041
    %1351 = vmatprep.subr.mxu0 0.0
    %1352 = vmatpush1.msra.mxu0 0.0
    %1353 = vmatprep.subr.mxu0 0.0
    %1354 = vmatpush1.msra.mxu0 0.0
    %1355 = vmatprep.subr.mxu0 0.0
    %1356 = vmatpush1.msra.mxu0 0.0
    %1357 = vmatprep.subr.mxu0 0.0
    %1358 = vmatpush1.msra.mxu0 0.0
    %1359 = vmatprep.subr.mxu0 0.0
    %1360 = vmatpush1.msra.mxu0 0.0
    %1361 = vmatprep.subr.mxu0 0.0
    %1362 = vmatpush1.msra.mxu0 0.0
    %1363 = vmatprep.subr.mxu0 0.0
    %1364 = vmatpush1.msra.mxu0 0.0
    %1365 = vmatprep.subr.mxu0 0.0
    %1366 = vmatpush1.msra.mxu0 0.0
    %1367 = vmatprep.subr.mxu0 0.0
    %1368 = vmatpush1.msra.mxu0 0.0
    %1369 = vmatprep.subr.mxu0 0.0
    %1370 = vmatpush1.msra.mxu0 0.0
    %1371 = vmatprep.subr.mxu0 0.0
    %1372 = vmatpush1.msra.mxu0 0.0
    %1373 = vmatprep.subr.mxu0 0.0
    %1374 = vmatpush1.msra.mxu0 0.0
    %1375 = vmatprep.subr.mxu0 0.0
    %1376 = vmatpush1.msra.mxu0 0.0
    %1377 = vmatprep.subr.mxu0 0.0
    %1378 = vmatpush1.msra.mxu0 0.0
    %1379 = vmatprep.subr.mxu0 0.0
    %1380 = vmatpush1.msra.mxu0 0.0
    %1381 = vmatprep.subr.mxu0 0.0
    %1382 = vmatpush1.msra.mxu0 0.0
    %1383 = vmatprep.subr.mxu0 0.0
    %1384 = vmatpush1.msra.mxu0 0.0
    %1385 = vmatprep.subr.mxu0 0.0
    %1386 = vmatpush1.msra.mxu0 0.0
    %1387 = vmatprep.subr.mxu0 0.0
    %1388 = vmatpush1.msra.mxu0 0.0
    %1389 = vmatprep.subr.mxu0 0.0
    %1390 = vmatpush1.msra.mxu0 0.0
    %1391 = vmatprep.subr.mxu0 0.0
    %1392 = vmatpush1.msra.mxu0 0.0
    %1393 = vmatprep.subr.mxu0 0.0
    %1394 = vmatpush1.msra.mxu0 0.0
    %1395 = vmatprep.subr.mxu0 0.0
    %1396 = vmatpush1.msra.mxu0 0.0
    %1397 = vmatprep.subr.mxu0 0.0
    %1398 = vmatpush1.msra.mxu0 0.0
    %1399 = vmatprep.subr.mxu0 0.0
    %1400 = vmatpush1.msra.mxu0 0.0
    %1401 = vmatprep.subr.mxu0 0.0
    %1402 = vmatpush1.msra.mxu0 0.0
    %1403 = vmatprep.subr.mxu0 0.0
    %1404 = vmatpush1.msra.mxu0 0.0
    %1405 = vmatprep.subr.mxu0 0.0
    %1406 = vmatpush1.msra.mxu0 0.0
    %1407 = vmatprep.mubr.f32.mxu0 0.0
    %1408 = vmatmul.mubr.f32.gmra.mrb[0].mxu0 %v1341
    %v1409 = vpop.f32.mrb[0].mxu0
    %v1410 = vadd.f32 0.0, %v1409
    %v1411 = vpop.f32.mrb[0].mxu0
    %1412 = vdwg.mxu0
    %v1413 = vadd.f32 %v1340, %v1410
    %v1414 = vxor.u32 %v1413, 2147483648
    %v1415 = vmul.f32 %v1414, 1.442695
    %v1416 = vpow.pop %v1415
    %v1417 = vadd.f32 %v1416, 1.0
    %v1418 = vrcp.pop %v1417
    %v1419 = vmul.f32 1.0, %v1418
    %v1420 = vtanh.pop %v1413
    %v1421 = vmul.f32 %v1419, %v1328
    %1423 = vrot.lane.b32.xlu0 %v1420, 64
    %v1424 = vpop.permute.xlu0 %1423
    %v1426 = vmul.f32 %v1419, %v1424
    %1428 = vrot.lane.b32.xlu0 %v1426, 32
    %v1429 = vpop.permute.xlu0 %1428
    %v1431 = vadd.f32 %v1421, %v1429
    %v1432 = vtanh.pop %v1431
    %1434 = vrot.lane.b32.xlu0 %v1432, 64
    %v1435 = vpop.permute.xlu0 %1434
    %v1437 = vmul.f32 %v1419, %v1435
    %1439 = vrot.lane.b32.xlu0 %v1437, 32
    %v1440 = vpop.permute.xlu0 %1439
    %s1442 = scalar_lea.vmem [#allocation3], 2
    %1443 = vst.msk [vmem:[%s1442] sm:$0x3] %vm290, %v1440
    %v1444 = vld [vmem:[%s397] sm:$0x3]
    %v1445 = vsel %vm183, %v1440, 0
    %1447 = vmatprep.subr.mxu0 0.0
    %1448 = vmatpush1.msra.mxu0 %v1038
    %1449 = vmatprep.subr.mxu0 0.0
    %1450 = vmatpush1.msra.mxu0 %v1039
    %1451 = vmatprep.subr.mxu0 0.0
    %1452 = vmatpush1.msra.mxu0 %v1040
    %1453 = vmatprep.subr.mxu0 0.0
    %1454 = vmatpush1.msra.mxu0 %v1041
    %1455 = vmatprep.subr.mxu0 0.0
    %1456 = vmatpush1.msra.mxu0 0.0
    %1457 = vmatprep.subr.mxu0 0.0
    %1458 = vmatpush1.msra.mxu0 0.0
    %1459 = vmatprep.subr.mxu0 0.0
    %1460 = vmatpush1.msra.mxu0 0.0
    %1461 = vmatprep.subr.mxu0 0.0
    %1462 = vmatpush1.msra.mxu0 0.0
    %1463 = vmatprep.subr.mxu0 0.0
    %1464 = vmatpush1.msra.mxu0 0.0
    %1465 = vmatprep.subr.mxu0 0.0
    %1466 = vmatpush1.msra.mxu0 0.0
    %1467 = vmatprep.subr.mxu0 0.0
    %1468 = vmatpush1.msra.mxu0 0.0
    %1469 = vmatprep.subr.mxu0 0.0
    %1470 = vmatpush1.msra.mxu0 0.0
    %1471 = vmatprep.subr.mxu0 0.0
    %1472 = vmatpush1.msra.mxu0 0.0
    %1473 = vmatprep.subr.mxu0 0.0
    %1474 = vmatpush1.msra.mxu0 0.0
    %1475 = vmatprep.subr.mxu0 0.0
    %1476 = vmatpush1.msra.mxu0 0.0
    %1477 = vmatprep.subr.mxu0 0.0
    %1478 = vmatpush1.msra.mxu0 0.0
    %1479 = vmatprep.subr.mxu0 0.0
    %1480 = vmatpush1.msra.mxu0 0.0
    %1481 = vmatprep.subr.mxu0 0.0
    %1482 = vmatpush1.msra.mxu0 0.0
    %1483 = vmatprep.subr.mxu0 0.0
    %1484 = vmatpush1.msra.mxu0 0.0
    %1485 = vmatprep.subr.mxu0 0.0
    %1486 = vmatpush1.msra.mxu0 0.0
    %1487 = vmatprep.subr.mxu0 0.0
    %1488 = vmatpush1.msra.mxu0 0.0
    %1489 = vmatprep.subr.mxu0 0.0
    %1490 = vmatpush1.msra.mxu0 0.0
    %1491 = vmatprep.subr.mxu0 0.0
    %1492 = vmatpush1.msra.mxu0 0.0
    %1493 = vmatprep.subr.mxu0 0.0
    %1494 = vmatpush1.msra.mxu0 0.0
    %1495 = vmatprep.subr.mxu0 0.0
    %1496 = vmatpush1.msra.mxu0 0.0
    %1497 = vmatprep.subr.mxu0 0.0
    %1498 = vmatpush1.msra.mxu0 0.0
    %1499 = vmatprep.subr.mxu0 0.0
    %1500 = vmatpush1.msra.mxu0 0.0
    %1501 = vmatprep.subr.mxu0 0.0
    %1502 = vmatpush1.msra.mxu0 0.0
    %1503 = vmatprep.subr.mxu0 0.0
    %1504 = vmatpush1.msra.mxu0 0.0
    %1505 = vmatprep.subr.mxu0 0.0
    %1506 = vmatpush1.msra.mxu0 0.0
    %1507 = vmatprep.subr.mxu0 0.0
    %1508 = vmatpush1.msra.mxu0 0.0
    %1509 = vmatprep.subr.mxu0 0.0
    %1510 = vmatpush1.msra.mxu0 0.0
    %1511 = vmatprep.mubr.f32.mxu0 0.0
    %1512 = vmatmul.mubr.f32.gmra.mrb[0].mxu0 %v1445
    %v1513 = vpop.f32.mrb[0].mxu0
    %v1514 = vadd.f32 0.0, %v1513
    %v1515 = vpop.f32.mrb[0].mxu0
    %1516 = vdwg.mxu0
    %v1517 = vadd.f32 %v1444, %v1514
    %v1518 = vxor.u32 %v1517, 2147483648
    %v1519 = vmul.f32 %v1518, 1.442695
    %v1520 = vpow.pop %v1519
    %v1521 = vadd.f32 %v1520, 1.0
    %v1522 = vrcp.pop %v1521
    %v1523 = vmul.f32 1.0, %v1522
    %v1524 = vtanh.pop %v1517
    %v1525 = vmul.f32 %v1523, %v1431
    %1527 = vrot.lane.b32.xlu0 %v1524, 64
    %v1528 = vpop.permute.xlu0 %1527
    %v1530 = vmul.f32 %v1523, %v1528
    %1532 = vrot.lane.b32.xlu0 %v1530, 32
    %v1533 = vpop.permute.xlu0 %1532
    %v1535 = vadd.f32 %v1525, %v1533
    %v1536 = vtanh.pop %v1535
    %1538 = vrot.lane.b32.xlu0 %v1536, 64
    %v1539 = vpop.permute.xlu0 %1538
    %v1541 = vmul.f32 %v1523, %v1539
    %1543 = vrot.lane.b32.xlu0 %v1541, 32
    %v1544 = vpop.permute.xlu0 %1543
    %s1546 = scalar_lea.vmem [#allocation3], 4
    %1547 = vst.msk [vmem:[%s1546] sm:$0x3] %vm290, %v1544
    %v1548 = vld [vmem:[%s502] sm:$0x3]
    %v1549 = vsel %vm183, %v1544, 0
    %1551 = vmatprep.subr.mxu0 0.0
    %1552 = vmatpush1.msra.mxu0 %v1038
    %1553 = vmatprep.subr.mxu0 0.0
    %1554 = vmatpush1.msra.mxu0 %v1039
    %1555 = vmatprep.subr.mxu0 0.0
    %1556 = vmatpush1.msra.mxu0 %v1040
    %1557 = vmatprep.subr.mxu0 0.0
    %1558 = vmatpush1.msra.mxu0 %v1041
    %1559 = vmatprep.subr.mxu0 0.0
    %1560 = vmatpush1.msra.mxu0 0.0
    %1561 = vmatprep.subr.mxu0 0.0
    %1562 = vmatpush1.msra.mxu0 0.0
    %1563 = vmatprep.subr.mxu0 0.0
    %1564 = vmatpush1.msra.mxu0 0.0
    %1565 = vmatprep.subr.mxu0 0.0
    %1566 = vmatpush1.msra.mxu0 0.0
    %1567 = vmatprep.subr.mxu0 0.0
    %1568 = vmatpush1.msra.mxu0 0.0
    %1569 = vmatprep.subr.mxu0 0.0
    %1570 = vmatpush1.msra.mxu0 0.0
    %1571 = vmatprep.subr.mxu0 0.0
    %1572 = vmatpush1.msra.mxu0 0.0
    %1573 = vmatprep.subr.mxu0 0.0
    %1574 = vmatpush1.msra.mxu0 0.0
    %1575 = vmatprep.subr.mxu0 0.0
    %1576 = vmatpush1.msra.mxu0 0.0
    %1577 = vmatprep.subr.mxu0 0.0
    %1578 = vmatpush1.msra.mxu0 0.0
    %1579 = vmatprep.subr.mxu0 0.0
    %1580 = vmatpush1.msra.mxu0 0.0
    %1581 = vmatprep.subr.mxu0 0.0
    %1582 = vmatpush1.msra.mxu0 0.0
    %1583 = vmatprep.subr.mxu0 0.0
    %1584 = vmatpush1.msra.mxu0 0.0
    %1585 = vmatprep.subr.mxu0 0.0
    %1586 = vmatpush1.msra.mxu0 0.0
    %1587 = vmatprep.subr.mxu0 0.0
    %1588 = vmatpush1.msra.mxu0 0.0
    %1589 = vmatprep.subr.mxu0 0.0
    %1590 = vmatpush1.msra.mxu0 0.0
    %1591 = vmatprep.subr.mxu0 0.0
    %1592 = vmatpush1.msra.mxu0 0.0
    %1593 = vmatprep.subr.mxu0 0.0
    %1594 = vmatpush1.msra.mxu0 0.0
    %1595 = vmatprep.subr.mxu0 0.0
    %1596 = vmatpush1.msra.mxu0 0.0
    %1597 = vmatprep.subr.mxu0 0.0
    %1598 = vmatpush1.msra.mxu0 0.0
    %1599 = vmatprep.subr.mxu0 0.0
    %1600 = vmatpush1.msra.mxu0 0.0
    %1601 = vmatprep.subr.mxu0 0.0
    %1602 = vmatpush1.msra.mxu0 0.0
    %1603 = vmatprep.subr.mxu0 0.0
    %1604 = vmatpush1.msra.mxu0 0.0
    %1605 = vmatprep.subr.mxu0 0.0
    %1606 = vmatpush1.msra.mxu0 0.0
    %1607 = vmatprep.subr.mxu0 0.0
    %1608 = vmatpush1.msra.mxu0 0.0
    %1609 = vmatprep.subr.mxu0 0.0
    %1610 = vmatpush1.msra.mxu0 0.0
    %1611 = vmatprep.subr.mxu0 0.0
    %1612 = vmatpush1.msra.mxu0 0.0
    %1613 = vmatprep.subr.mxu0 0.0
    %1614 = vmatpush1.msra.mxu0 0.0
    %1615 = vmatprep.mubr.f32.mxu0 0.0
    %1616 = vmatmul.mubr.f32.gmra.mrb[0].mxu0 %v1549
    %v1617 = vpop.f32.mrb[0].mxu0
    %v1618 = vadd.f32 0.0, %v1617
    %v1619 = vpop.f32.mrb[0].mxu0
    %1620 = vdwg.mxu0
    %v1621 = vadd.f32 %v1548, %v1618
    %v1622 = vxor.u32 %v1621, 2147483648
    %v1623 = vmul.f32 %v1622, 1.442695
    %v1624 = vpow.pop %v1623
    %v1625 = vadd.f32 %v1624, 1.0
    %v1626 = vrcp.pop %v1625
    %v1627 = vmul.f32 1.0, %v1626
    %v1628 = vtanh.pop %v1621
    %v1629 = vmul.f32 %v1627, %v1535
    %1631 = vrot.lane.b32.xlu0 %v1628, 64
    %v1632 = vpop.permute.xlu0 %1631
    %v1634 = vmul.f32 %v1627, %v1632
    %1636 = vrot.lane.b32.xlu0 %v1634, 32
    %v1637 = vpop.permute.xlu0 %1636
    %v1639 = vadd.f32 %v1629, %v1637
    %v1640 = vtanh.pop %v1639
    %1642 = vrot.lane.b32.xlu0 %v1640, 64
    %v1643 = vpop.permute.xlu0 %1642
    %v1645 = vmul.f32 %v1627, %v1643
    %1647 = vrot.lane.b32.xlu0 %v1645, 32
    %v1648 = vpop.permute.xlu0 %1647
    %s1650 = scalar_lea.vmem [#allocation3], 6
    %1651 = vst.msk [vmem:[%s1650] sm:$0x3] %vm290, %v1648
    %v1652 = vld [vmem:[%s607] sm:$0x3]
    %v1653 = vsel %vm183, %v1648, 0
    %1655 = vmatprep.subr.mxu0 0.0
    %1656 = vmatpush1.msra.mxu0 %v1038
    %1657 = vmatprep.subr.mxu0 0.0
    %1658 = vmatpush1.msra.mxu0 %v1039
    %1659 = vmatprep.subr.mxu0 0.0
    %1660 = vmatpush1.msra.mxu0 %v1040
    %1661 = vmatprep.subr.mxu0 0.0
    %1662 = vmatpush1.msra.mxu0 %v1041
    %1663 = vmatprep.subr.mxu0 0.0
    %1664 = vmatpush1.msra.mxu0 0.0
    %1665 = vmatprep.subr.mxu0 0.0
    %1666 = vmatpush1.msra.mxu0 0.0
    %1667 = vmatprep.subr.mxu0 0.0
    %1668 = vmatpush1.msra.mxu0 0.0
    %1669 = vmatprep.subr.mxu0 0.0
    %1670 = vmatpush1.msra.mxu0 0.0
    %1671 = vmatprep.subr.mxu0 0.0
    %1672 = vmatpush1.msra.mxu0 0.0
    %1673 = vmatprep.subr.mxu0 0.0
    %1674 = vmatpush1.msra.mxu0 0.0
    %1675 = vmatprep.subr.mxu0 0.0
    %1676 = vmatpush1.msra.mxu0 0.0
    %1677 = vmatprep.subr.mxu0 0.0
    %1678 = vmatpush1.msra.mxu0 0.0
    %1679 = vmatprep.subr.mxu0 0.0
    %1680 = vmatpush1.msra.mxu0 0.0
    %1681 = vmatprep.subr.mxu0 0.0
    %1682 = vmatpush1.msra.mxu0 0.0
    %1683 = vmatprep.subr.mxu0 0.0
    %1684 = vmatpush1.msra.mxu0 0.0
    %1685 = vmatprep.subr.mxu0 0.0
    %1686 = vmatpush1.msra.mxu0 0.0
    %1687 = vmatprep.subr.mxu0 0.0
    %1688 = vmatpush1.msra.mxu0 0.0
    %1689 = vmatprep.subr.mxu0 0.0
    %1690 = vmatpush1.msra.mxu0 0.0
    %1691 = vmatprep.subr.mxu0 0.0
    %1692 = vmatpush1.msra.mxu0 0.0
    %1693 = vmatprep.subr.mxu0 0.0
    %1694 = vmatpush1.msra.mxu0 0.0
    %1695 = vmatprep.subr.mxu0 0.0
    %1696 = vmatpush1.msra.mxu0 0.0
    %1697 = vmatprep.subr.mxu0 0.0
    %1698 = vmatpush1.msra.mxu0 0.0
    %1699 = vmatprep.subr.mxu0 0.0
    %1700 = vmatpush1.msra.mxu0 0.0
    %1701 = vmatprep.subr.mxu0 0.0
    %1702 = vmatpush1.msra.mxu0 0.0
    %1703 = vmatprep.subr.mxu0 0.0
    %1704 = vmatpush1.msra.mxu0 0.0
    %1705 = vmatprep.subr.mxu0 0.0
    %1706 = vmatpush1.msra.mxu0 0.0
    %1707 = vmatprep.subr.mxu0 0.0
    %1708 = vmatpush1.msra.mxu0 0.0
    %1709 = vmatprep.subr.mxu0 0.0
    %1710 = vmatpush1.msra.mxu0 0.0
    %1711 = vmatprep.subr.mxu0 0.0
    %1712 = vmatpush1.msra.mxu0 0.0
    %1713 = vmatprep.subr.mxu0 0.0
    %1714 = vmatpush1.msra.mxu0 0.0
    %1715 = vmatprep.subr.mxu0 0.0
    %1716 = vmatpush1.msra.mxu0 0.0
    %1717 = vmatprep.subr.mxu0 0.0
    %1718 = vmatpush1.msra.mxu0 0.0
    %1719 = vmatprep.mubr.f32.mxu0 0.0
    %1720 = vmatmul.mubr.f32.gmra.mrb[0].mxu0 %v1653
    %v1721 = vpop.f32.mrb[0].mxu0
    %v1722 = vadd.f32 0.0, %v1721
    %v1723 = vpop.f32.mrb[0].mxu0
    %1724 = vdwg.mxu0
    %v1725 = vadd.f32 %v1652, %v1722
    %v1726 = vxor.u32 %v1725, 2147483648
    %v1727 = vmul.f32 %v1726, 1.442695
    %v1728 = vpow.pop %v1727
    %v1729 = vadd.f32 %v1728, 1.0
    %v1730 = vrcp.pop %v1729
    %v1731 = vmul.f32 1.0, %v1730
    %v1732 = vtanh.pop %v1725
    %v1733 = vmul.f32 %v1731, %v1639
    %1735 = vrot.lane.b32.xlu0 %v1732, 64
    %v1736 = vpop.permute.xlu0 %1735
    %v1738 = vmul.f32 %v1731, %v1736
    %1740 = vrot.lane.b32.xlu0 %v1738, 32
    %v1741 = vpop.permute.xlu0 %1740
    %v1743 = vadd.f32 %v1733, %v1741
    %v1744 = vtanh.pop %v1743
    %1746 = vrot.lane.b32.xlu0 %v1744, 64
    %v1747 = vpop.permute.xlu0 %1746
    %v1749 = vmul.f32 %v1731, %v1747
    %1751 = vrot.lane.b32.xlu0 %v1749, 32
    %v1752 = vpop.permute.xlu0 %1751
    %s1754 = scalar_lea.vmem [#allocation3], 8
    %1755 = vst.msk [vmem:[%s1754] sm:$0x3] %vm290, %v1752
    %v1756 = vld [vmem:[%s712] sm:$0x3]
    %v1757 = vsel %vm183, %v1752, 0
    %1759 = vmatprep.subr.mxu0 0.0
    %1760 = vmatpush1.msra.mxu0 %v1038
    %1761 = vmatprep.subr.mxu0 0.0
    %1762 = vmatpush1.msra.mxu0 %v1039
    %1763 = vmatprep.subr.mxu0 0.0
    %1764 = vmatpush1.msra.mxu0 %v1040
    %1765 = vmatprep.subr.mxu0 0.0
    %1766 = vmatpush1.msra.mxu0 %v1041
    %1767 = vmatprep.subr.mxu0 0.0
    %1768 = vmatpush1.msra.mxu0 0.0
    %1769 = vmatprep.subr.mxu0 0.0
    %1770 = vmatpush1.msra.mxu0 0.0
    %1771 = vmatprep.subr.mxu0 0.0
    %1772 = vmatpush1.msra.mxu0 0.0
    %1773 = vmatprep.subr.mxu0 0.0
    %1774 = vmatpush1.msra.mxu0 0.0
    %1775 = vmatprep.subr.mxu0 0.0
    %1776 = vmatpush1.msra.mxu0 0.0
    %1777 = vmatprep.subr.mxu0 0.0
    %1778 = vmatpush1.msra.mxu0 0.0
    %1779 = vmatprep.subr.mxu0 0.0
    %1780 = vmatpush1.msra.mxu0 0.0
    %1781 = vmatprep.subr.mxu0 0.0
    %1782 = vmatpush1.msra.mxu0 0.0
    %1783 = vmatprep.subr.mxu0 0.0
    %1784 = vmatpush1.msra.mxu0 0.0
    %1785 = vmatprep.subr.mxu0 0.0
    %1786 = vmatpush1.msra.mxu0 0.0
    %1787 = vmatprep.subr.mxu0 0.0
    %1788 = vmatpush1.msra.mxu0 0.0
    %1789 = vmatprep.subr.mxu0 0.0
    %1790 = vmatpush1.msra.mxu0 0.0
    %1791 = vmatprep.subr.mxu0 0.0
    %1792 = vmatpush1.msra.mxu0 0.0
    %1793 = vmatprep.subr.mxu0 0.0
    %1794 = vmatpush1.msra.mxu0 0.0
    %1795 = vmatprep.subr.mxu0 0.0
    %1796 = vmatpush1.msra.mxu0 0.0
    %1797 = vmatprep.subr.mxu0 0.0
    %1798 = vmatpush1.msra.mxu0 0.0
    %1799 = vmatprep.subr.mxu0 0.0
    %1800 = vmatpush1.msra.mxu0 0.0
    %1801 = vmatprep.subr.mxu0 0.0
    %1802 = vmatpush1.msra.mxu0 0.0
    %1803 = vmatprep.subr.mxu0 0.0
    %1804 = vmatpush1.msra.mxu0 0.0
    %1805 = vmatprep.subr.mxu0 0.0
    %1806 = vmatpush1.msra.mxu0 0.0
    %1807 = vmatprep.subr.mxu0 0.0
    %1808 = vmatpush1.msra.mxu0 0.0
    %1809 = vmatprep.subr.mxu0 0.0
    %1810 = vmatpush1.msra.mxu0 0.0
    %1811 = vmatprep.subr.mxu0 0.0
    %1812 = vmatpush1.msra.mxu0 0.0
    %1813 = vmatprep.subr.mxu0 0.0
    %1814 = vmatpush1.msra.mxu0 0.0
    %1815 = vmatprep.subr.mxu0 0.0
    %1816 = vmatpush1.msra.mxu0 0.0
    %1817 = vmatprep.subr.mxu0 0.0
    %1818 = vmatpush1.msra.mxu0 0.0
    %1819 = vmatprep.subr.mxu0 0.0
    %1820 = vmatpush1.msra.mxu0 0.0
    %1821 = vmatprep.subr.mxu0 0.0
    %1822 = vmatpush1.msra.mxu0 0.0
    %1823 = vmatprep.mubr.f32.mxu0 0.0
    %1824 = vmatmul.mubr.f32.gmra.mrb[0].mxu0 %v1757
    %v1825 = vpop.f32.mrb[0].mxu0
    %v1826 = vadd.f32 0.0, %v1825
    %v1827 = vpop.f32.mrb[0].mxu0
    %1828 = vdwg.mxu0
    %v1829 = vadd.f32 %v1756, %v1826
    %v1830 = vxor.u32 %v1829, 2147483648
    %v1831 = vmul.f32 %v1830, 1.442695
    %v1832 = vpow.pop %v1831
    %v1833 = vadd.f32 %v1832, 1.0
    %v1834 = vrcp.pop %v1833
    %v1835 = vmul.f32 1.0, %v1834
    %v1836 = vtanh.pop %v1829
    %v1837 = vmul.f32 %v1835, %v1743
    %1839 = vrot.lane.b32.xlu0 %v1836, 64
    %v1840 = vpop.permute.xlu0 %1839
    %v1842 = vmul.f32 %v1835, %v1840
    %1844 = vrot.lane.b32.xlu0 %v1842, 32
    %v1845 = vpop.permute.xlu0 %1844
    %v1847 = vadd.f32 %v1837, %v1845
    %v1848 = vtanh.pop %v1847
    %1850 = vrot.lane.b32.xlu0 %v1848, 64
    %v1851 = vpop.permute.xlu0 %1850
    %v1853 = vmul.f32 %v1835, %v1851
    %1855 = vrot.lane.b32.xlu0 %v1853, 32
    %v1856 = vpop.permute.xlu0 %1855
    %s1858 = scalar_lea.vmem [#allocation3], 10
    %1859 = vst.msk [vmem:[%s1858] sm:$0x3] %vm290, %v1856
    %v1860 = vld [vmem:[%s817] sm:$0x3]
    %v1861 = vsel %vm183, %v1856, 0
    %1863 = vmatprep.subr.mxu0 0.0
    %1864 = vmatpush1.msra.mxu0 %v1038
    %1865 = vmatprep.subr.mxu0 0.0
    %1866 = vmatpush1.msra.mxu0 %v1039
    %1867 = vmatprep.subr.mxu0 0.0
    %1868 = vmatpush1.msra.mxu0 %v1040
    %1869 = vmatprep.subr.mxu0 0.0
    %1870 = vmatpush1.msra.mxu0 %v1041
    %1871 = vmatprep.subr.mxu0 0.0
    %1872 = vmatpush1.msra.mxu0 0.0
    %1873 = vmatprep.subr.mxu0 0.0
    %1874 = vmatpush1.msra.mxu0 0.0
    %1875 = vmatprep.subr.mxu0 0.0
    %1876 = vmatpush1.msra.mxu0 0.0
    %1877 = vmatprep.subr.mxu0 0.0
    %1878 = vmatpush1.msra.mxu0 0.0
    %1879 = vmatprep.subr.mxu0 0.0
    %1880 = vmatpush1.msra.mxu0 0.0
    %1881 = vmatprep.subr.mxu0 0.0
    %1882 = vmatpush1.msra.mxu0 0.0
    %1883 = vmatprep.subr.mxu0 0.0
    %1884 = vmatpush1.msra.mxu0 0.0
    %1885 = vmatprep.subr.mxu0 0.0
    %1886 = vmatpush1.msra.mxu0 0.0
    %1887 = vmatprep.subr.mxu0 0.0
    %1888 = vmatpush1.msra.mxu0 0.0
    %1889 = vmatprep.subr.mxu0 0.0
    %1890 = vmatpush1.msra.mxu0 0.0
    %1891 = vmatprep.subr.mxu0 0.0
    %1892 = vmatpush1.msra.mxu0 0.0
    %1893 = vmatprep.subr.mxu0 0.0
    %1894 = vmatpush1.msra.mxu0 0.0
    %1895 = vmatprep.subr.mxu0 0.0
    %1896 = vmatpush1.msra.mxu0 0.0
    %1897 = vmatprep.subr.mxu0 0.0
    %1898 = vmatpush1.msra.mxu0 0.0
    %1899 = vmatprep.subr.mxu0 0.0
    %1900 = vmatpush1.msra.mxu0 0.0
    %1901 = vmatprep.subr.mxu0 0.0
    %1902 = vmatpush1.msra.mxu0 0.0
    %1903 = vmatprep.subr.mxu0 0.0
    %1904 = vmatpush1.msra.mxu0 0.0
    %1905 = vmatprep.subr.mxu0 0.0
    %1906 = vmatpush1.msra.mxu0 0.0
    %1907 = vmatprep.subr.mxu0 0.0
    %1908 = vmatpush1.msra.mxu0 0.0
    %1909 = vmatprep.subr.mxu0 0.0
    %1910 = vmatpush1.msra.mxu0 0.0
    %1911 = vmatprep.subr.mxu0 0.0
    %1912 = vmatpush1.msra.mxu0 0.0
    %1913 = vmatprep.subr.mxu0 0.0
    %1914 = vmatpush1.msra.mxu0 0.0
    %1915 = vmatprep.subr.mxu0 0.0
    %1916 = vmatpush1.msra.mxu0 0.0
    %1917 = vmatprep.subr.mxu0 0.0
    %1918 = vmatpush1.msra.mxu0 0.0
    %1919 = vmatprep.subr.mxu0 0.0
    %1920 = vmatpush1.msra.mxu0 0.0
    %1921 = vmatprep.subr.mxu0 0.0
    %1922 = vmatpush1.msra.mxu0 0.0
    %1923 = vmatprep.subr.mxu0 0.0
    %1924 = vmatpush1.msra.mxu0 0.0
    %1925 = vmatprep.subr.mxu0 0.0
    %1926 = vmatpush1.msra.mxu0 0.0
    %1927 = vmatprep.mubr.f32.mxu0 0.0
    %1928 = vmatmul.mubr.f32.gmra.mrb[0].mxu0 %v1861
    %v1929 = vpop.f32.mrb[0].mxu0
    %v1930 = vadd.f32 0.0, %v1929
    %v1931 = vpop.f32.mrb[0].mxu0
    %1932 = vdwg.mxu0
    %v1933 = vadd.f32 %v1860, %v1930
    %v1934 = vxor.u32 %v1933, 2147483648
    %v1935 = vmul.f32 %v1934, 1.442695
    %v1936 = vpow.pop %v1935
    %v1937 = vadd.f32 %v1936, 1.0
    %v1938 = vrcp.pop %v1937
    %v1939 = vmul.f32 1.0, %v1938
    %v1940 = vtanh.pop %v1933
    %v1941 = vmul.f32 %v1939, %v1847
    %1943 = vrot.lane.b32.xlu0 %v1940, 64
    %v1944 = vpop.permute.xlu0 %1943
    %v1946 = vmul.f32 %v1939, %v1944
    %1948 = vrot.lane.b32.xlu0 %v1946, 32
    %v1949 = vpop.permute.xlu0 %1948
    %v1951 = vadd.f32 %v1941, %v1949
    %v1952 = vtanh.pop %v1951
    %1954 = vrot.lane.b32.xlu0 %v1952, 64
    %v1955 = vpop.permute.xlu0 %1954
    %v1957 = vmul.f32 %v1939, %v1955
    %1959 = vrot.lane.b32.xlu0 %v1957, 32
    %v1960 = vpop.permute.xlu0 %1959
    %s1962 = scalar_lea.vmem [#allocation3], 12
    %1963 = vst.msk [vmem:[%s1962] sm:$0x3] %vm290, %v1960
    %v1964 = vld [vmem:[%s922] sm:$0x3]
    %v1965 = vsel %vm183, %v1960, 0
    %1967 = vmatprep.subr.mxu0 0.0
    %1968 = vmatpush1.msra.mxu0 %v1038
    %1969 = vmatprep.subr.mxu0 0.0
    %1970 = vmatpush1.msra.mxu0 %v1039
    %1971 = vmatprep.subr.mxu0 0.0
    %1972 = vmatpush1.msra.mxu0 %v1040
    %1973 = vmatprep.subr.mxu0 0.0
    %1974 = vmatpush1.msra.mxu0 %v1041
    %1975 = vmatprep.subr.mxu0 0.0
    %1976 = vmatpush1.msra.mxu0 0.0
    %1977 = vmatprep.subr.mxu0 0.0
    %1978 = vmatpush1.msra.mxu0 0.0
    %1979 = vmatprep.subr.mxu0 0.0
    %1980 = vmatpush1.msra.mxu0 0.0
    %1981 = vmatprep.subr.mxu0 0.0
    %1982 = vmatpush1.msra.mxu0 0.0
    %1983 = vmatprep.subr.mxu0 0.0
    %1984 = vmatpush1.msra.mxu0 0.0
    %1985 = vmatprep.subr.mxu0 0.0
    %1986 = vmatpush1.msra.mxu0 0.0
    %1987 = vmatprep.subr.mxu0 0.0
    %1988 = vmatpush1.msra.mxu0 0.0
    %1989 = vmatprep.subr.mxu0 0.0
    %1990 = vmatpush1.msra.mxu0 0.0
    %1991 = vmatprep.subr.mxu0 0.0
    %1992 = vmatpush1.msra.mxu0 0.0
    %1993 = vmatprep.subr.mxu0 0.0
    %1994 = vmatpush1.msra.mxu0 0.0
    %1995 = vmatprep.subr.mxu0 0.0
    %1996 = vmatpush1.msra.mxu0 0.0
    %1997 = vmatprep.subr.mxu0 0.0
    %1998 = vmatpush1.msra.mxu0 0.0
    %1999 = vmatprep.subr.mxu0 0.0
    %2000 = vmatpush1.msra.mxu0 0.0
    %2001 = vmatprep.subr.mxu0 0.0
    %2002 = vmatpush1.msra.mxu0 0.0
    %2003 = vmatprep.subr.mxu0 0.0
    %2004 = vmatpush1.msra.mxu0 0.0
    %2005 = vmatprep.subr.mxu0 0.0
    %2006 = vmatpush1.msra.mxu0 0.0
    %2007 = vmatprep.subr.mxu0 0.0
    %2008 = vmatpush1.msra.mxu0 0.0
    %2009 = vmatprep.subr.mxu0 0.0
    %2010 = vmatpush1.msra.mxu0 0.0
    %2011 = vmatprep.subr.mxu0 0.0
    %2012 = vmatpush1.msra.mxu0 0.0
    %2013 = vmatprep.subr.mxu0 0.0
    %2014 = vmatpush1.msra.mxu0 0.0
    %2015 = vmatprep.subr.mxu0 0.0
    %2016 = vmatpush1.msra.mxu0 0.0
    %2017 = vmatprep.subr.mxu0 0.0
    %2018 = vmatpush1.msra.mxu0 0.0
    %2019 = vmatprep.subr.mxu0 0.0
    %2020 = vmatpush1.msra.mxu0 0.0
    %2021 = vmatprep.subr.mxu0 0.0
    %2022 = vmatpush1.msra.mxu0 0.0
    %2023 = vmatprep.subr.mxu0 0.0
    %2024 = vmatpush1.msra.mxu0 0.0
    %2025 = vmatprep.subr.mxu0 0.0
    %2026 = vmatpush1.msra.mxu0 0.0
    %2027 = vmatprep.subr.mxu0 0.0
    %2028 = vmatpush1.msra.mxu0 0.0
    %2029 = vmatprep.subr.mxu0 0.0
    %2030 = vmatpush1.msra.mxu0 0.0
    %2031 = vmatprep.mubr.f32.mxu0 0.0
    %2032 = vmatmul.mubr.f32.gmra.mrb[0].mxu0 %v1965
    %v2033 = vpop.f32.mrb[0].mxu0
    %v2034 = vadd.f32 0.0, %v2033
    %v2035 = vpop.f32.mrb[0].mxu0
    %2036 = vdwg.mxu0
    %v2037 = vadd.f32 %v1964, %v2034
    %v2038 = vxor.u32 %v2037, 2147483648
    %v2039 = vmul.f32 %v2038, 1.442695
    %v2040 = vpow.pop %v2039
    %v2041 = vadd.f32 %v2040, 1.0
    %v2042 = vrcp.pop %v2041
    %v2043 = vmul.f32 1.0, %v2042
    %v2044 = vtanh.pop %v2037
    %v2045 = vmul.f32 %v2043, %v1951
    %2047 = vrot.lane.b32.xlu0 %v2044, 64
    %v2048 = vpop.permute.xlu0 %2047
    %v2050 = vmul.f32 %v2043, %v2048
    %2052 = vrot.lane.b32.xlu0 %v2050, 32
    %v2053 = vpop.permute.xlu0 %2052
    %v2055 = vadd.f32 %v2045, %v2053
    %v2056 = vtanh.pop %v2055
    %2058 = vrot.lane.b32.xlu0 %v2056, 64
    %v2059 = vpop.permute.xlu0 %2058
    %v2061 = vmul.f32 %v2043, %v2059
    %2063 = vrot.lane.b32.xlu0 %v2061, 32
    %v2064 = vpop.permute.xlu0 %2063
    %s2066 = scalar_lea.vmem [#allocation3], 14
    %2067 = vst.msk [vmem:[%s2066] sm:$0x3] %vm290, %v2064
    %s2068 = scalar_lea.vmem [#allocation14], 2
    %2069 = vst.msk [vmem:[%s2068] sm:$0x3] %vm290, %v2064
    %2071 = vrot.lane.b32.xlu0 %v2055, 96
    %v2072 = vpop.permute.xlu0 %2071
    %s2074 = scalar_lea.vmem [#allocation16], 2
    %2075 = vst.msk [vmem:[%s2074] sm:$0x3] %vm290, %v2072
    %v2076 = vld [vmem:[#allocation3] sm:$0x3]
    %v2077 = vld [vmem:[#allocation3 + $0x2] sm:$0x3]
    %v2078 = vld [vmem:[#allocation3 + $0x4] sm:$0x3]
    %v2079 = vld [vmem:[#allocation3 + $0x6] sm:$0x3]
    %v2080 = vld [vmem:[#allocation3 + $0x8] sm:$0x3]
    %v2081 = vld [vmem:[#allocation3 + $0xa] sm:$0x3]
    %v2082 = vld [vmem:[#allocation3 + $0xc] sm:$0x3]
    %v2083 = vld [vmem:[#allocation3 + $0xe] sm:$0x3]
    %v2084 = vld [vmem:[#allocation11] sm:$0xff]
    %v2085 = vld [vmem:[#allocation11 + $0x8] sm:$0xff]
    %v2086 = vld [vmem:[#allocation11 + $0x10] sm:$0xff]
    %v2087 = vld [vmem:[#allocation11 + $0x18] sm:$0xff]
    %v2088 = vld [vmem:[%s8] sm:$0x1]
    %v2090 = vlaneseq
    %v2091 = vshrl.u32 %v2090, 7
    %v2092 = vsub.s32 0, %v2091
    %v2093 = vrot.slane %v2088, %v2092
    %v2103 = vcombine.low %v2076, %v2077
    %v2104 = vcombine.low %v2078, %v2079
    %v2106 = vunpack.c.l.s4 1983009808
    %v2107 = vunpack.c.0.s8 %v2106
    %v2108 = vlaneseq
    %v2109 = vshrl.u32 %v2108, 7
    %v2110 = vsub.s32 %v2107, %v2109
    %v2111 = vrot.slane %v2103, %v2110
    %v2113 = vunpack.c.l.s4 1983009808
    %v2114 = vunpack.c.0.s8 %v2113
    %v2115 = vlaneseq
    %v2116 = vshrl.u32 %v2115, 7
    %v2117 = vsub.s32 %v2114, %v2116
    %v2118 = vrot.slane %v2104, %v2117
    %v2119 = vcombine.low %v2111, %v2118
    %v2120 = vcombine.low %v2080, %v2081
    %v2121 = vcombine.low %v2082, %v2083
    %v2123 = vunpack.c.l.s4 1983009808
    %v2124 = vunpack.c.0.s8 %v2123
    %v2125 = vlaneseq
    %v2126 = vshrl.u32 %v2125, 7
    %v2127 = vsub.s32 %v2124, %v2126
    %v2128 = vrot.slane %v2120, %v2127
    %v2130 = vunpack.c.l.s4 1983009808
    %v2131 = vunpack.c.0.s8 %v2130
    %v2132 = vlaneseq
    %v2133 = vshrl.u32 %v2132, 7
    %v2134 = vsub.s32 %v2131, %v2133
    %v2135 = vrot.slane %v2121, %v2134
    %v2136 = vcombine.low %v2128, %v2135
    %v2137 = vsel %vm183, %v2119, 0
    %v2139 = vsel %vm183, %v2136, 0
    %2141 = vmatprep.subr.mxu0 0.0
    %2142 = vmatpush1.msra.mxu0 %v2084
    %2143 = vmatprep.subr.mxu0 0.0
    %2144 = vmatpush1.msra.mxu0 %v2085
    %2145 = vmatprep.subr.mxu0 0.0
    %2146 = vmatpush1.msra.mxu0 %v2086
    %2147 = vmatprep.subr.mxu0 0.0
    %2148 = vmatpush1.msra.mxu0 %v2087
    %2149 = vmatprep.subr.mxu0 0.0
    %2150 = vmatpush1.msra.mxu0 0.0
    %2151 = vmatprep.subr.mxu0 0.0
    %2152 = vmatpush1.msra.mxu0 0.0
    %2153 = vmatprep.subr.mxu0 0.0
    %2154 = vmatpush1.msra.mxu0 0.0
    %2155 = vmatprep.subr.mxu0 0.0
    %2156 = vmatpush1.msra.mxu0 0.0
    %2157 = vmatprep.subr.mxu0 0.0
    %2158 = vmatpush1.msra.mxu0 0.0
    %2159 = vmatprep.subr.mxu0 0.0
    %2160 = vmatpush1.msra.mxu0 0.0
    %2161 = vmatprep.subr.mxu0 0.0
    %2162 = vmatpush1.msra.mxu0 0.0
    %2163 = vmatprep.subr.mxu0 0.0
    %2164 = vmatpush1.msra.mxu0 0.0
    %2165 = vmatprep.subr.mxu0 0.0
    %2166 = vmatpush1.msra.mxu0 0.0
    %2167 = vmatprep.subr.mxu0 0.0
    %2168 = vmatpush1.msra.mxu0 0.0
    %2169 = vmatprep.subr.mxu0 0.0
    %2170 = vmatpush1.msra.mxu0 0.0
    %2171 = vmatprep.subr.mxu0 0.0
    %2172 = vmatpush1.msra.mxu0 0.0
    %2173 = vmatprep.subr.mxu0 0.0
    %2174 = vmatpush1.msra.mxu0 0.0
    %2175 = vmatprep.subr.mxu0 0.0
    %2176 = vmatpush1.msra.mxu0 0.0
    %2177 = vmatprep.subr.mxu0 0.0
    %2178 = vmatpush1.msra.mxu0 0.0
    %2179 = vmatprep.subr.mxu0 0.0
    %2180 = vmatpush1.msra.mxu0 0.0
    %2181 = vmatprep.subr.mxu0 0.0
    %2182 = vmatpush1.msra.mxu0 0.0
    %2183 = vmatprep.subr.mxu0 0.0
    %2184 = vmatpush1.msra.mxu0 0.0
    %2185 = vmatprep.subr.mxu0 0.0
    %2186 = vmatpush1.msra.mxu0 0.0
    %2187 = vmatprep.subr.mxu0 0.0
    %2188 = vmatpush1.msra.mxu0 0.0
    %2189 = vmatprep.subr.mxu0 0.0
    %2190 = vmatpush1.msra.mxu0 0.0
    %2191 = vmatprep.subr.mxu0 0.0
    %2192 = vmatpush1.msra.mxu0 0.0
    %2193 = vmatprep.subr.mxu0 0.0
    %2194 = vmatpush1.msra.mxu0 0.0
    %2195 = vmatprep.subr.mxu0 0.0
    %2196 = vmatpush1.msra.mxu0 0.0
    %2197 = vmatprep.subr.mxu0 0.0
    %2198 = vmatpush1.msra.mxu0 0.0
    %2199 = vmatprep.subr.mxu0 0.0
    %2200 = vmatpush1.msra.mxu0 0.0
    %2201 = vmatprep.subr.mxu0 0.0
    %2202 = vmatpush1.msra.mxu0 0.0
    %2203 = vmatprep.subr.mxu0 0.0
    %2204 = vmatpush1.msra.mxu0 0.0
    %2205 = vmatprep.mubr.f32.mxu0 0.0
    %2206 = vmatmul.mubr.f32.gmra.mrb[0].mxu0 %v2137
    %v2207 = vpop.f32.mrb[0].mxu0
    %v2208 = vadd.f32 %v2093, %v2207
    %v2209 = vpop.f32.mrb[0].mxu0
    %2210 = vmatprep.mubr.f32.mxu0 0.0
    %2211 = vmatmul.mubr.f32.gmra.mrb[0].mxu0 %v2139
    %v2212 = vpop.f32.mrb[0].mxu0
    %v2213 = vadd.f32 %v2093, %v2212
    %v2214 = vpop.f32.mrb[0].mxu0
    %2215 = vdwg.mxu0
    %v2218 = vcombine.high %v2208, %v2208
    %v2220 = vunpack.c.l.s4 1983009808
    %v2221 = vunpack.c.0.s8 %v2220
    %v2222 = vlaneseq
    %v2223 = vshrl.u32 %v2222, 7
    %v2224 = vsub.s32 %v2221, %v2223
    %v2225 = vrot.slane %v2208, %v2224
    %v2227 = vunpack.c.l.s4 1983009808
    %v2228 = vunpack.c.0.s8 %v2227
    %v2229 = vlaneseq
    %v2230 = vshrl.u32 %v2229, 7
    %v2231 = vsub.s32 %v2228, %v2230
    %v2232 = vrot.slane %v2218, %v2231
    %v2233 = vcombine.high %v2225, %v2225
    %v2234 = vcombine.high %v2232, %v2232
    %v2235 = vcombine.high %v2213, %v2213
    %v2237 = vunpack.c.l.s4 1983009808
    %v2238 = vunpack.c.0.s8 %v2237
    %v2239 = vlaneseq
    %v2240 = vshrl.u32 %v2239, 7
    %v2241 = vsub.s32 %v2238, %v2240
    %v2242 = vrot.slane %v2213, %v2241
    %v2244 = vunpack.c.l.s4 1983009808
    %v2245 = vunpack.c.0.s8 %v2244
    %v2246 = vlaneseq
    %v2247 = vshrl.u32 %v2246, 7
    %v2248 = vsub.s32 %v2245, %v2247
    %v2249 = vrot.slane %v2235, %v2248
    %v2250 = vcombine.high %v2242, %v2242
    %v2251 = vcombine.high %v2249, %v2249
    %2260 = vst [vmem:[#allocation13] sm:$0x3] %v2225
    %2261 = vst [vmem:[#allocation13 + $0x2] sm:$0x3] %v2233
    %2262 = vst [vmem:[#allocation13 + $0x4] sm:$0x3] %v2232
    %2263 = vst [vmem:[#allocation13 + $0x6] sm:$0x3] %v2234
    %2264 = vst [vmem:[#allocation13 + $0x8] sm:$0x3] %v2242
    %2265 = vst [vmem:[#allocation13 + $0xa] sm:$0x3] %v2250
    %2266 = vst [vmem:[#allocation13 + $0xc] sm:$0x3] %v2249
    %2267 = vst [vmem:[#allocation13 + $0xe] sm:$0x3] %v2251
    // Predicated region
    $region54: #{tpu_custom_call.1} parent=1 // pred_check
      _
    $region55: #{tpu_custom_call.1} parent=1 // pred_check_branch
      %2269 = sbr.rel (0) target = $region57
    $region56: #{tpu_custom_call.1} parent=1 // pred_region
      %s2271 = ssub.s32 256, 256
      %2272 = vsyncadd [#allocation7], %s2271
      %s2273 = sshll.u32 [#allocation13], 4
      %s2274 = int_to_ptr.vmem [resolvable:$true] %s2273
      %2279 = dma.vmem_to_hbm [thread:$0]  %s2274, 256, %s9, [#allocation7], 32, 32, 2
    $region57: #{tpu_custom_call.1} parent=1 // pred_fallthru
      _
    // Predicated region
    $region58: #{tpu_custom_call.1} parent=1 // pred_check
      _
    $region59: #{tpu_custom_call.1} parent=1 // pred_check_branch
      %2281 = sbr.rel (0) target = $region61
    $region60: #{tpu_custom_call.1} parent=1 // pred_region
      %s2283 = ssub.s32 64, 64
      %2284 = vsyncadd [#allocation15], %s2283
      %s2285 = sshll.u32 [#allocation14], 4
      %s2286 = int_to_ptr.vmem [resolvable:$true] %s2285
      %2291 = dma.vmem_to_hbm [thread:$0]  %s2286, 64, %s10, [#allocation15], 32, 32, 2
    $region61: #{tpu_custom_call.1} parent=1 // pred_fallthru
      _
    // Predicated region
    $region62: #{tpu_custom_call.1} parent=1 // pred_check
      _
    $region63: #{tpu_custom_call.1} parent=1 // pred_check_branch
      %2293 = sbr.rel (0) target = $region65
    $region64: #{tpu_custom_call.1} parent=1 // pred_region
      %s2295 = ssub.s32 64, 64
      %2296 = vsyncadd [#allocation15], %s2295
      %s2297 = sshll.u32 [#allocation16], 4
      %s2298 = int_to_ptr.vmem [resolvable:$true] %s2297
      %2303 = dma.vmem_to_hbm [thread:$0]  %s2298, 64, %s11, [#allocation15], 32, 32, 2
    $region65: #{tpu_custom_call.1} parent=1 // pred_fallthru
      _
    // Predicated region
    $region66: #{tpu_custom_call.1} parent=1 // pred_check
      _
    $region67: #{tpu_custom_call.1} parent=1 // pred_check_branch
      %2305 = sbr.rel (0) target = $region69
    $region68: #{tpu_custom_call.1} parent=1 // pred_region
      %2306 = dma.done [#allocation7], 256
    $region69: #{tpu_custom_call.1} parent=1 // pred_fallthru
      _
    // Predicated region
    $region70: #{tpu_custom_call.1} parent=1 // pred_check
      _
    $region71: #{tpu_custom_call.1} parent=1 // pred_check_branch
      %2308 = sbr.rel (0) target = $region73
    $region72: #{tpu_custom_call.1} parent=1 // pred_region
      %2309 = dma.done [#allocation15], 64
    $region73: #{tpu_custom_call.1} parent=1 // pred_fallthru
      _
    // Predicated region
    $region74: #{tpu_custom_call.1} parent=1 // pred_check
      _
    $region75: #{tpu_custom_call.1} parent=1 // pred_check_branch
      %2311 = sbr.rel (0) target = $region77
    $region76: #{tpu_custom_call.1} parent=1 // pred_region
      %2312 = dma.done [#allocation15], 64
    $region77: #{tpu_custom_call.1} parent=1 // pred_fallthru
      _
    %2313 = vsyncpa [#allocation6], 1
    %2314 = vsyncpa [#allocation9], 1
    %2315 = vsyncpa [#allocation12], 1
    %2316 = vsyncpa [#allocation7], 1
    %2317 = vsyncpa [#allocation15], 1

</llo_original>
